<compile_context>
chip_gen: v5e
topology: v5e:2x2
jax: 0.10.0
libtpu: 0.0.40
codegen_flags: <defaults>
</compile_context>

<pallas_src>
import jax
import jax.numpy as jnp
from jax.experimental import pallas as pl
from jax.experimental.pallas import tpu as pltpu


def _make_kernel(C, rows, Wo):
    """Fused conv(2x2) + bias + PReLU kernel for one (image, row-tile) grid step."""
    taps = ((0, 0), (0, 1), (1, 0), (1, 1))

    def kernel(x_ref, w_ref, b_ref, a_ref, o_ref, col_ref):
        # x_ref:   (C, Hp, P)   zero-padded input image, resident across row tiles.
        # w_ref:   (Cout, 4*C)  conv weights, tap-major / in-channel-minor columns.
        # b_ref:   (Cout, 1)    bias (f32).
        # a_ref:   (Cout, 1)    PReLU alpha per conv-output channel (f32).
        # o_ref:   (Cout, rows, Wo)  conv output tile (pre-PixelShuffle layout).
        # col_ref: (4*C, rows*Wo)    VMEM im2col scratch for this tile.
        r0 = pl.program_id(1) * rows
        if rows % 8 == 0:
            r0 = pl.multiple_of(r0, 8)

        # Build the (4C, rows*Wo) im2col block once per tile from four shifted views
        # of the resident padded image.
        for tp, (ka, kb) in enumerate(taps):
            chunk = x_ref[:, pl.ds(r0 + ka, rows), kb:kb + Wo]          # (C, rows, Wo)
            base = tp * C
            for j in range(rows):
                col_ref[base:base + C, j * Wo:(j + 1) * Wo] = chunk[:, j, :]

        # Single MXU matmul with f32 accumulation: (Cout, 4C) x (4C, rows*Wo).
        acc = jnp.dot(w_ref[...], col_ref[...],
                      preferred_element_type=jnp.float32)               # (Cout, rows*Wo)
        acc = acc + b_ref[...]                                           # bias broadcast
        y = jnp.where(acc >= 0.0, acc, acc * a_ref[...]).astype(o_ref.dtype)

        # Store row by row so the output block keeps (rows, Wo) as its minor dims
        # (Wo equals the full array dim, keeping the BlockSpec legal for any width).
        for j in range(rows):
            o_ref[:, j, :] = y[:, j * Wo:(j + 1) * Wo]

    return kernel


def upsample_block(x_nchw, conv_w, conv_b, prelu_alpha, scale_factor, *, rows=None,
                   compute_dtype=jnp.float32):
    """Pallas implementation of UpsampleBlock.forward (NCHW in, NCHW out)."""
    N, C, H, W = x_nchw.shape
    s = int(scale_factor)
    Cout = C * s * s
    assert conv_w.shape == (Cout, C, 2, 2), conv_w.shape
    Ho, Wo = H + 1, W + 1            # conv output: H + 2*pad - k + 1 (k=2, pad=1)
    P = W + 2                        # padded width

    # ---- row-tile selection ----------------------------------------------------
    if rows is None:
        target_lanes = 2048                       # per-tile matmul free dim / store width
        r = max(1, target_lanes // Wo)
        if r >= Ho:
            rows = Ho                             # single tile covers the whole image
        else:
            rows = min(max(8, (r // 8) * 8), Ho)  # multiple of 8 keeps BlockSpec legal
    rows = int(rows)
    if rows < Ho and rows % 8 != 0:
        raise ValueError("rows must be a multiple of 8 or cover all conv rows")
    T = pl.cdiv(Ho, rows)
    Ho_pad = T * rows                 # extra (garbage) rows are sliced off afterwards
    Hp = Ho_pad + 1                   # padded rows the kernel may touch

    # ---- XLA-side prep (one cheap pass over the *small* input) ------------------
    xp = jnp.pad(x_nchw, ((0, 0), (0, 0), (1, 1 + Ho_pad - Ho), (1, 1)))
    xp = xp.astype(compute_dtype)                                   # (N, C, Hp, P)
    # (Cout, Cin, kh, kw) -> (Cout, kh, kw, Cin) -> (Cout, 4*Cin), tap-major columns.
    w2 = jnp.transpose(conv_w, (0, 2, 3, 1)).reshape(Cout, 4 * C).astype(compute_dtype)
    b_col = conv_b.reshape(Cout, 1).astype(jnp.float32)
    # PReLU parameter per conv-output channel; conv channel oc maps to oc // s^2.
    a_col = jnp.repeat(prelu_alpha, s * s).reshape(Cout, 1).astype(jnp.float32)

    out_dtype = x_nchw.dtype
    kernel = _make_kernel(C, rows, Wo)

    # ---- VMEM budget derived from the actual tile footprints --------------------
    op_sz = jnp.dtype(compute_dtype).itemsize
    out_sz = jnp.dtype(out_dtype).itemsize
    need = (2 * C * Hp * P * op_sz                        # resident padded image (2 bufs)
            + 2 * Cout * rows * Wo * out_sz               # output tile (double-buffered)
            + 4 * C * rows * Wo * op_sz                   # im2col scratch
            + 2 * (Cout * 4 * C * op_sz + 2 * Cout * 4))  # weights + bias + alpha
    try:
        vmem_cap = int(pltpu.get_tpu_info().vmem_capacity_bytes)
    except Exception:
        vmem_cap = 64 << 20
    vmem_limit = int(min(int(0.9 * vmem_cap), max(32 << 20, need + (8 << 20))))

    cost = pl.CostEstimate(
        flops=2 * N * Cout * 4 * C * Ho_pad * Wo,
        transcendentals=0,
        bytes_accessed=int(xp.size * op_sz + w2.size * op_sz
                           + (b_col.size + a_col.size) * 4
                           + N * Cout * Ho_pad * Wo * out_sz),
    )

    y = pl.pallas_call(
        kernel,
        out_shape=jax.ShapeDtypeStruct((N, Cout, Ho_pad, Wo), out_dtype),
        grid_spec=pltpu.PrefetchScalarGridSpec(
            num_scalar_prefetch=0,
            grid=(N, T),
            in_specs=[
                # Padded image: index_map ignores the tile axis -> resident, fetched
                # once per image.
                pl.BlockSpec((None, C, Hp, P), lambda n, t: (n, 0, 0, 0)),
                pl.BlockSpec((Cout, 4 * C), lambda n, t: (0, 0)),       # weights
                pl.BlockSpec((Cout, 1), lambda n, t: (0, 0)),           # bias
                pl.BlockSpec((Cout, 1), lambda n, t: (0, 0)),           # prelu alpha
            ],
            out_specs=pl.BlockSpec((None, Cout, rows, Wo), lambda n, t: (n, 0, t, 0)),
            scratch_shapes=[pltpu.VMEM((4 * C, rows * Wo), compute_dtype)],
        ),
        compiler_params=pltpu.CompilerParams(
            dimension_semantics=("parallel", "parallel"),
            vmem_limit_bytes=vmem_limit,
        ),
        cost_estimate=cost,
    )(xp, w2, b_col, a_col)

    # ---- glue: drop padded remainder rows (if any), then PixelShuffle -----------
    if Ho_pad != Ho:
        y = y[:, :, :Ho, :]
    y = y.reshape(N, C, s, s, Ho, Wo)
    y = jnp.transpose(y, (0, 1, 4, 2, 5, 3)).reshape(N, C, Ho * s, Wo * s)
    return y


def _reference(x_nchw, conv_w, conv_b, alpha, s):
    """Plain-JAX reference matching the PyTorch module exactly."""
    y = jax.lax.conv_general_dilated(
        x_nchw, conv_w, window_strides=(1, 1), padding=((1, 1), (1, 1)),
        dimension_numbers=("NCHW", "OIHW", "NCHW"),
        precision=jax.lax.Precision.HIGHEST)
    y = y + conv_b[None, :, None, None]
    N, Cout, Hc, Wc = y.shape
    C = Cout // (s * s)
    y = y.reshape(N, C, s, s, Hc, Wc).transpose(0, 1, 4, 2, 5, 3).reshape(N, C, Hc * s, Wc * s)
    return jnp.where(y >= 0, y, y * alpha[None, :, None, None])


if __name__ == "__main__":
    def check(N, C, H, W, s, rows, key):
        Cout = C * s * s
        kx, kw, kb, ka = jax.random.split(key, 4)
        x = jax.random.normal(kx, (N, C, H, W), dtype=jnp.float32)
        conv_w = 0.1 * jax.random.normal(kw, (Cout, C, 2, 2), dtype=jnp.float32)
        conv_b = 0.1 * jax.random.normal(kb, (Cout,), dtype=jnp.float32)
        alpha = jnp.full((C,), 0.25, dtype=jnp.float32) + \
            0.05 * jax.random.normal(ka, (C,), dtype=jnp.float32)

        out = upsample_block(x, conv_w, conv_b, alpha, s, rows=rows)
        out = jax.block_until_ready(out)
        ref = _reference(x, conv_w, conv_b, alpha, s)

        assert out.shape == (N, C, (H + 1) * s, (W + 1) * s), out.shape
        err = float(jnp.max(jnp.abs(out - ref)))
        assert err < 5e-5, err

    key = jax.random.PRNGKey(0)
    k1, k2, k3 = jax.random.split(key, 3)
    check(2, 4, 16, 16, 2, None, k1)   # auto tiling: single row-tile per image
    check(1, 8, 15, 15, 3, 8, k2)      # two row-tiles per image, scale factor 3
    check(2, 4, 16, 16, 2, 8, k3)      # three row-tiles with padded remainder rows

    print("KERNEL_OK")
</pallas_src>

<mosaic_0001>
module attributes {stable_mosaic.version = 11 : i64} {
  func.func @kernel(%arg0: i32, %arg1: i32, %arg2: memref<1x4x18x18xf32, #tpu.memory_space<vmem>>, %arg3: memref<16x16xf32, #tpu.memory_space<vmem>>, %arg4: memref<16x1xf32, #tpu.memory_space<vmem>>, %arg5: memref<16x1xf32, #tpu.memory_space<vmem>>, %arg6: memref<1x16x17x17xf32, #tpu.memory_space<vmem>>, %arg7: memref<16x289xf32, #tpu.memory_space<vmem>>) attributes {dimension_semantics = [#tpu.dimension_semantics<parallel>, #tpu.dimension_semantics<parallel>], iteration_bounds = array<i64: 2, 1>, scalar_prefetch = 0 : i64, scratch_operands = 1 : i64, tpu.core_type = #tpu.core_type<tc>, window_params = [{transform_indices = @transform_0, window_bounds = array<i64: 1, 4, 18, 18>}, {pipeline_mode = #tpu.pipeline_mode<synchronous>, transform_indices = @transform_1, window_bounds = array<i64: 16, 16>}, {pipeline_mode = #tpu.pipeline_mode<synchronous>, transform_indices = @transform_2, window_bounds = array<i64: 16, 1>}, {pipeline_mode = #tpu.pipeline_mode<synchronous>, transform_indices = @transform_3, window_bounds = array<i64: 16, 1>}, {transform_indices = @transform_4, window_bounds = array<i64: 1, 16, 17, 17>}]} {
    %c17_i32 = arith.constant 17 : i32
    %0 = arith.muli %arg1, %c17_i32 : i32
    %c0_i32 = arith.constant 0 : i32
    %1 = arith.addi %0, %c0_i32 : i32
    %c0 = arith.constant 0 : index
    %c0_0 = arith.constant 0 : index
    %2 = arith.index_cast %1 : i32 to index
    %c0_1 = arith.constant 0 : index
    %3 = vector.load %arg2[%c0, %c0_0, %2, %c0_1] : memref<1x4x18x18xf32, #tpu.memory_space<vmem>>, vector<1x4x17x17xf32>
    %4 = vector.shape_cast %3 : vector<1x4x17x17xf32> to vector<4x17x17xf32>
    %5 = vector.extract_strided_slice %4 {offsets = [0, 0, 0], sizes = [4, 1, 17], strides = [1, 1, 1]} : vector<4x17x17xf32> to vector<4x1x17xf32>
    %6 = vector.shape_cast %5 : vector<4x1x17xf32> to vector<4x17xf32>
    %c0_2 = arith.constant 0 : index
    %c0_3 = arith.constant 0 : index
    %7 = vector.load %arg7[%c0_2, %c0_3] : memref<16x289xf32, #tpu.memory_space<vmem>>, vector<4x17xf32>
    tpu.vector_store %arg7[%c0_2, %c0_3], %6 {strides = array<i32>} : memref<16x289xf32, #tpu.memory_space<vmem>>, vector<4x17xf32>,
    %8 = vector.extract_strided_slice %4 {offsets = [0, 1, 0], sizes = [4, 1, 17], strides = [1, 1, 1]} : vector<4x17x17xf32> to vector<4x1x17xf32>
    %9 = vector.shape_cast %8 : vector<4x1x17xf32> to vector<4x17xf32>
    %c0_4 = arith.constant 0 : index
    %c17 = arith.constant 17 : index
    %10 = vector.load %arg7[%c0_4, %c17] : memref<16x289xf32, #tpu.memory_space<vmem>>, vector<4x17xf32>
    tpu.vector_store %arg7[%c0_4, %c17], %9 {strides = array<i32>} : memref<16x289xf32, #tpu.memory_space<vmem>>, vector<4x17xf32>,
    %11 = vector.extract_strided_slice %4 {offsets = [0, 2, 0], sizes = [4, 1, 17], strides = [1, 1, 1]} : vector<4x17x17xf32> to vector<4x1x17xf32>
    %12 = vector.shape_cast %11 : vector<4x1x17xf32> to vector<4x17xf32>
    %c0_5 = arith.constant 0 : index
    %c34 = arith.constant 34 : index
    %13 = vector.load %arg7[%c0_5, %c34] : memref<16x289xf32, #tpu.memory_space<vmem>>, vector<4x17xf32>
    tpu.vector_store %arg7[%c0_5, %c34], %12 {strides = array<i32>} : memref<16x289xf32, #tpu.memory_space<vmem>>, vector<4x17xf32>,
    %14 = vector.extract_strided_slice %4 {offsets = [0, 3, 0], sizes = [4, 1, 17], strides = [1, 1, 1]} : vector<4x17x17xf32> to vector<4x1x17xf32>
    %15 = vector.shape_cast %14 : vector<4x1x17xf32> to vector<4x17xf32>
    %c0_6 = arith.constant 0 : index
    %c51 = arith.constant 51 : index
    %16 = vector.load %arg7[%c0_6, %c51] : memref<16x289xf32, #tpu.memory_space<vmem>>, vector<4x17xf32>
    tpu.vector_store %arg7[%c0_6, %c51], %15 {strides = array<i32>} : memref<16x289xf32, #tpu.memory_space<vmem>>, vector<4x17xf32>,
    %17 = vector.extract_strided_slice %4 {offsets = [0, 4, 0], sizes = [4, 1, 17], strides = [1, 1, 1]} : vector<4x17x17xf32> to vector<4x1x17xf32>
    %18 = vector.shape_cast %17 : vector<4x1x17xf32> to vector<4x17xf32>
    %c0_7 = arith.constant 0 : index
    %c68 = arith.constant 68 : index
    %19 = vector.load %arg7[%c0_7, %c68] : memref<16x289xf32, #tpu.memory_space<vmem>>, vector<4x17xf32>
    tpu.vector_store %arg7[%c0_7, %c68], %18 {strides = array<i32>} : memref<16x289xf32, #tpu.memory_space<vmem>>, vector<4x17xf32>,
    %20 = vector.extract_strided_slice %4 {offsets = [0, 5, 0], sizes = [4, 1, 17], strides = [1, 1, 1]} : vector<4x17x17xf32> to vector<4x1x17xf32>
    %21 = vector.shape_cast %20 : vector<4x1x17xf32> to vector<4x17xf32>
    %c0_8 = arith.constant 0 : index
    %c85 = arith.constant 85 : index
    %22 = vector.load %arg7[%c0_8, %c85] : memref<16x289xf32, #tpu.memory_space<vmem>>, vector<4x17xf32>
    tpu.vector_store %arg7[%c0_8, %c85], %21 {strides = array<i32>} : memref<16x289xf32, #tpu.memory_space<vmem>>, vector<4x17xf32>,
    %23 = vector.extract_strided_slice %4 {offsets = [0, 6, 0], sizes = [4, 1, 17], strides = [1, 1, 1]} : vector<4x17x17xf32> to vector<4x1x17xf32>
    %24 = vector.shape_cast %23 : vector<4x1x17xf32> to vector<4x17xf32>
    %c0_9 = arith.constant 0 : index
    %c102 = arith.constant 102 : index
    %25 = vector.load %arg7[%c0_9, %c102] : memref<16x289xf32, #tpu.memory_space<vmem>>, vector<4x17xf32>
    tpu.vector_store %arg7[%c0_9, %c102], %24 {strides = array<i32>} : memref<16x289xf32, #tpu.memory_space<vmem>>, vector<4x17xf32>,
    %26 = vector.extract_strided_slice %4 {offsets = [0, 7, 0], sizes = [4, 1, 17], strides = [1, 1, 1]} : vector<4x17x17xf32> to vector<4x1x17xf32>
    %27 = vector.shape_cast %26 : vector<4x1x17xf32> to vector<4x17xf32>
    %c0_10 = arith.constant 0 : index
    %c119 = arith.constant 119 : index
    %28 = vector.load %arg7[%c0_10, %c119] : memref<16x289xf32, #tpu.memory_space<vmem>>, vector<4x17xf32>
    tpu.vector_store %arg7[%c0_10, %c119], %27 {strides = array<i32>} : memref<16x289xf32, #tpu.memory_space<vmem>>, vector<4x17xf32>,
    %29 = vector.extract_strided_slice %4 {offsets = [0, 8, 0], sizes = [4, 1, 17], strides = [1, 1, 1]} : vector<4x17x17xf32> to vector<4x1x17xf32>
    %30 = vector.shape_cast %29 : vector<4x1x17xf32> to vector<4x17xf32>
    %c0_11 = arith.constant 0 : index
    %c136 = arith.constant 136 : index
    %31 = vector.load %arg7[%c0_11, %c136] : memref<16x289xf32, #tpu.memory_space<vmem>>, vector<4x17xf32>
    tpu.vector_store %arg7[%c0_11, %c136], %30 {strides = array<i32>} : memref<16x289xf32, #tpu.memory_space<vmem>>, vector<4x17xf32>,
    %32 = vector.extract_strided_slice %4 {offsets = [0, 9, 0], sizes = [4, 1, 17], strides = [1, 1, 1]} : vector<4x17x17xf32> to vector<4x1x17xf32>
    %33 = vector.shape_cast %32 : vector<4x1x17xf32> to vector<4x17xf32>
    %c0_12 = arith.constant 0 : index
    %c153 = arith.constant 153 : index
    %34 = vector.load %arg7[%c0_12, %c153] : memref<16x289xf32, #tpu.memory_space<vmem>>, vector<4x17xf32>
    tpu.vector_store %arg7[%c0_12, %c153], %33 {strides = array<i32>} : memref<16x289xf32, #tpu.memory_space<vmem>>, vector<4x17xf32>,
    %35 = vector.extract_strided_slice %4 {offsets = [0, 10, 0], sizes = [4, 1, 17], strides = [1, 1, 1]} : vector<4x17x17xf32> to vector<4x1x17xf32>
    %36 = vector.shape_cast %35 : vector<4x1x17xf32> to vector<4x17xf32>
    %c0_13 = arith.constant 0 : index
    %c170 = arith.constant 170 : index
    %37 = vector.load %arg7[%c0_13, %c170] : memref<16x289xf32, #tpu.memory_space<vmem>>, vector<4x17xf32>
    tpu.vector_store %arg7[%c0_13, %c170], %36 {strides = array<i32>} : memref<16x289xf32, #tpu.memory_space<vmem>>, vector<4x17xf32>,
    %38 = vector.extract_strided_slice %4 {offsets = [0, 11, 0], sizes = [4, 1, 17], strides = [1, 1, 1]} : vector<4x17x17xf32> to vector<4x1x17xf32>
    %39 = vector.shape_cast %38 : vector<4x1x17xf32> to vector<4x17xf32>
    %c0_14 = arith.constant 0 : index
    %c187 = arith.constant 187 : index
    %40 = vector.load %arg7[%c0_14, %c187] : memref<16x289xf32, #tpu.memory_space<vmem>>, vector<4x17xf32>
    tpu.vector_store %arg7[%c0_14, %c187], %39 {strides = array<i32>} : memref<16x289xf32, #tpu.memory_space<vmem>>, vector<4x17xf32>,
    %41 = vector.extract_strided_slice %4 {offsets = [0, 12, 0], sizes = [4, 1, 17], strides = [1, 1, 1]} : vector<4x17x17xf32> to vector<4x1x17xf32>
    %42 = vector.shape_cast %41 : vector<4x1x17xf32> to vector<4x17xf32>
    %c0_15 = arith.constant 0 : index
    %c204 = arith.constant 204 : index
    %43 = vector.load %arg7[%c0_15, %c204] : memref<16x289xf32, #tpu.memory_space<vmem>>, vector<4x17xf32>
    tpu.vector_store %arg7[%c0_15, %c204], %42 {strides = array<i32>} : memref<16x289xf32, #tpu.memory_space<vmem>>, vector<4x17xf32>,
    %44 = vector.extract_strided_slice %4 {offsets = [0, 13, 0], sizes = [4, 1, 17], strides = [1, 1, 1]} : vector<4x17x17xf32> to vector<4x1x17xf32>
    %45 = vector.shape_cast %44 : vector<4x1x17xf32> to vector<4x17xf32>
    %c0_16 = arith.constant 0 : index
    %c221 = arith.constant 221 : index
    %46 = vector.load %arg7[%c0_16, %c221] : memref<16x289xf32, #tpu.memory_space<vmem>>, vector<4x17xf32>
    tpu.vector_store %arg7[%c0_16, %c221], %45 {strides = array<i32>} : memref<16x289xf32, #tpu.memory_space<vmem>>, vector<4x17xf32>,
    %47 = vector.extract_strided_slice %4 {offsets = [0, 14, 0], sizes = [4, 1, 17], strides = [1, 1, 1]} : vector<4x17x17xf32> to vector<4x1x17xf32>
    %48 = vector.shape_cast %47 : vector<4x1x17xf32> to vector<4x17xf32>
    %c0_17 = arith.constant 0 : index
    %c238 = arith.constant 238 : index
    %49 = vector.load %arg7[%c0_17, %c238] : memref<16x289xf32, #tpu.memory_space<vmem>>, vector<4x17xf32>
    tpu.vector_store %arg7[%c0_17, %c238], %48 {strides = array<i32>} : memref<16x289xf32, #tpu.memory_space<vmem>>, vector<4x17xf32>,
    %50 = vector.extract_strided_slice %4 {offsets = [0, 15, 0], sizes = [4, 1, 17], strides = [1, 1, 1]} : vector<4x17x17xf32> to vector<4x1x17xf32>
    %51 = vector.shape_cast %50 : vector<4x1x17xf32> to vector<4x17xf32>
    %c0_18 = arith.constant 0 : index
    %c255 = arith.constant 255 : index
    %52 = vector.load %arg7[%c0_18, %c255] : memref<16x289xf32, #tpu.memory_space<vmem>>, vector<4x17xf32>
    tpu.vector_store %arg7[%c0_18, %c255], %51 {strides = array<i32>} : memref<16x289xf32, #tpu.memory_space<vmem>>, vector<4x17xf32>,
    %53 = vector.extract_strided_slice %4 {offsets = [0, 16, 0], sizes = [4, 1, 17], strides = [1, 1, 1]} : vector<4x17x17xf32> to vector<4x1x17xf32>
    %54 = vector.shape_cast %53 : vector<4x1x17xf32> to vector<4x17xf32>
    %c0_19 = arith.constant 0 : index
    %c272 = arith.constant 272 : index
    %55 = vector.load %arg7[%c0_19, %c272] : memref<16x289xf32, #tpu.memory_space<vmem>>, vector<4x17xf32>
    tpu.vector_store %arg7[%c0_19, %c272], %54 {strides = array<i32>} : memref<16x289xf32, #tpu.memory_space<vmem>>, vector<4x17xf32>,
    %c0_i32_20 = arith.constant 0 : i32
    %56 = arith.addi %0, %c0_i32_20 : i32
    %c0_21 = arith.constant 0 : index
    %c0_22 = arith.constant 0 : index
    %57 = arith.index_cast %56 : i32 to index
    %c1 = arith.constant 1 : index
    %58 = vector.load %arg2[%c0_21, %c0_22, %57, %c1] : memref<1x4x18x18xf32, #tpu.memory_space<vmem>>, vector<1x4x17x17xf32>
    %59 = vector.shape_cast %58 : vector<1x4x17x17xf32> to vector<4x17x17xf32>
    %60 = vector.extract_strided_slice %59 {offsets = [0, 0, 0], sizes = [4, 1, 17], strides = [1, 1, 1]} : vector<4x17x17xf32> to vector<4x1x17xf32>
    %61 = vector.shape_cast %60 : vector<4x1x17xf32> to vector<4x17xf32>
    %c4 = arith.constant 4 : index
    %c0_23 = arith.constant 0 : index
    %62 = vector.load %arg7[%c4, %c0_23] : memref<16x289xf32, #tpu.memory_space<vmem>>, vector<4x17xf32>
    tpu.vector_store %arg7[%c4, %c0_23], %61 {strides = array<i32>} : memref<16x289xf32, #tpu.memory_space<vmem>>, vector<4x17xf32>,
    %63 = vector.extract_strided_slice %59 {offsets = [0, 1, 0], sizes = [4, 1, 17], strides = [1, 1, 1]} : vector<4x17x17xf32> to vector<4x1x17xf32>
    %64 = vector.shape_cast %63 : vector<4x1x17xf32> to vector<4x17xf32>
    %c4_24 = arith.constant 4 : index
    %c17_25 = arith.constant 17 : index
    %65 = vector.load %arg7[%c4_24, %c17_25] : memref<16x289xf32, #tpu.memory_space<vmem>>, vector<4x17xf32>
    tpu.vector_store %arg7[%c4_24, %c17_25], %64 {strides = array<i32>} : memref<16x289xf32, #tpu.memory_space<vmem>>, vector<4x17xf32>,
    %66 = vector.extract_strided_slice %59 {offsets = [0, 2, 0], sizes = [4, 1, 17], strides = [1, 1, 1]} : vector<4x17x17xf32> to vector<4x1x17xf32>
    %67 = vector.shape_cast %66 : vector<4x1x17xf32> to vector<4x17xf32>
    %c4_26 = arith.constant 4 : index
    %c34_27 = arith.constant 34 : index
    %68 = vector.load %arg7[%c4_26, %c34_27] : memref<16x289xf32, #tpu.memory_space<vmem>>, vector<4x17xf32>
    tpu.vector_store %arg7[%c4_26, %c34_27], %67 {strides = array<i32>} : memref<16x289xf32, #tpu.memory_space<vmem>>, vector<4x17xf32>,
    %69 = vector.extract_strided_slice %59 {offsets = [0, 3, 0], sizes = [4, 1, 17], strides = [1, 1, 1]} : vector<4x17x17xf32> to vector<4x1x17xf32>
    %70 = vector.shape_cast %69 : vector<4x1x17xf32> to vector<4x17xf32>
    %c4_28 = arith.constant 4 : index
    %c51_29 = arith.constant 51 : index
    %71 = vector.load %arg7[%c4_28, %c51_29] : memref<16x289xf32, #tpu.memory_space<vmem>>, vector<4x17xf32>
    tpu.vector_store %arg7[%c4_28, %c51_29], %70 {strides = array<i32>} : memref<16x289xf32, #tpu.memory_space<vmem>>, vector<4x17xf32>,
    %72 = vector.extract_strided_slice %59 {offsets = [0, 4, 0], sizes = [4, 1, 17], strides = [1, 1, 1]} : vector<4x17x17xf32> to vector<4x1x17xf32>
    %73 = vector.shape_cast %72 : vector<4x1x17xf32> to vector<4x17xf32>
    %c4_30 = arith.constant 4 : index
    %c68_31 = arith.constant 68 : index
    %74 = vector.load %arg7[%c4_30, %c68_31] : memref<16x289xf32, #tpu.memory_space<vmem>>, vector<4x17xf32>
    tpu.vector_store %arg7[%c4_30, %c68_31], %73 {strides = array<i32>} : memref<16x289xf32, #tpu.memory_space<vmem>>, vector<4x17xf32>,
    %75 = vector.extract_strided_slice %59 {offsets = [0, 5, 0], sizes = [4, 1, 17], strides = [1, 1, 1]} : vector<4x17x17xf32> to vector<4x1x17xf32>
    %76 = vector.shape_cast %75 : vector<4x1x17xf32> to vector<4x17xf32>
    %c4_32 = arith.constant 4 : index
    %c85_33 = arith.constant 85 : index
    %77 = vector.load %arg7[%c4_32, %c85_33] : memref<16x289xf32, #tpu.memory_space<vmem>>, vector<4x17xf32>
    tpu.vector_store %arg7[%c4_32, %c85_33], %76 {strides = array<i32>} : memref<16x289xf32, #tpu.memory_space<vmem>>, vector<4x17xf32>,
    %78 = vector.extract_strided_slice %59 {offsets = [0, 6, 0], sizes = [4, 1, 17], strides = [1, 1, 1]} : vector<4x17x17xf32> to vector<4x1x17xf32>
    %79 = vector.shape_cast %78 : vector<4x1x17xf32> to vector<4x17xf32>
    %c4_34 = arith.constant 4 : index
    %c102_35 = arith.constant 102 : index
    %80 = vector.load %arg7[%c4_34, %c102_35] : memref<16x289xf32, #tpu.memory_space<vmem>>, vector<4x17xf32>
    tpu.vector_store %arg7[%c4_34, %c102_35], %79 {strides = array<i32>} : memref<16x289xf32, #tpu.memory_space<vmem>>, vector<4x17xf32>,
    %81 = vector.extract_strided_slice %59 {offsets = [0, 7, 0], sizes = [4, 1, 17], strides = [1, 1, 1]} : vector<4x17x17xf32> to vector<4x1x17xf32>
    %82 = vector.shape_cast %81 : vector<4x1x17xf32> to vector<4x17xf32>
    %c4_36 = arith.constant 4 : index
    %c119_37 = arith.constant 119 : index
    %83 = vector.load %arg7[%c4_36, %c119_37] : memref<16x289xf32, #tpu.memory_space<vmem>>, vector<4x17xf32>
    tpu.vector_store %arg7[%c4_36, %c119_37], %82 {strides = array<i32>} : memref<16x289xf32, #tpu.memory_space<vmem>>, vector<4x17xf32>,
    %84 = vector.extract_strided_slice %59 {offsets = [0, 8, 0], sizes = [4, 1, 17], strides = [1, 1, 1]} : vector<4x17x17xf32> to vector<4x1x17xf32>
    %85 = vector.shape_cast %84 : vector<4x1x17xf32> to vector<4x17xf32>
    %c4_38 = arith.constant 4 : index
    %c136_39 = arith.constant 136 : index
    %86 = vector.load %arg7[%c4_38, %c136_39] : memref<16x289xf32, #tpu.memory_space<vmem>>, vector<4x17xf32>
    tpu.vector_store %arg7[%c4_38, %c136_39], %85 {strides = array<i32>} : memref<16x289xf32, #tpu.memory_space<vmem>>, vector<4x17xf32>,
    %87 = vector.extract_strided_slice %59 {offsets = [0, 9, 0], sizes = [4, 1, 17], strides = [1, 1, 1]} : vector<4x17x17xf32> to vector<4x1x17xf32>
    %88 = vector.shape_cast %87 : vector<4x1x17xf32> to vector<4x17xf32>
    %c4_40 = arith.constant 4 : index
    %c153_41 = arith.constant 153 : index
    %89 = vector.load %arg7[%c4_40, %c153_41] : memref<16x289xf32, #tpu.memory_space<vmem>>, vector<4x17xf32>
    tpu.vector_store %arg7[%c4_40, %c153_41], %88 {strides = array<i32>} : memref<16x289xf32, #tpu.memory_space<vmem>>, vector<4x17xf32>,
    %90 = vector.extract_strided_slice %59 {offsets = [0, 10, 0], sizes = [4, 1, 17], strides = [1, 1, 1]} : vector<4x17x17xf32> to vector<4x1x17xf32>
    %91 = vector.shape_cast %90 : vector<4x1x17xf32> to vector<4x17xf32>
    %c4_42 = arith.constant 4 : index
    %c170_43 = arith.constant 170 : index
    %92 = vector.load %arg7[%c4_42, %c170_43] : memref<16x289xf32, #tpu.memory_space<vmem>>, vector<4x17xf32>
    tpu.vector_store %arg7[%c4_42, %c170_43], %91 {strides = array<i32>} : memref<16x289xf32, #tpu.memory_space<vmem>>, vector<4x17xf32>,
    %93 = vector.extract_strided_slice %59 {offsets = [0, 11, 0], sizes = [4, 1, 17], strides = [1, 1, 1]} : vector<4x17x17xf32> to vector<4x1x17xf32>
    %94 = vector.shape_cast %93 : vector<4x1x17xf32> to vector<4x17xf32>
    %c4_44 = arith.constant 4 : index
    %c187_45 = arith.constant 187 : index
    %95 = vector.load %arg7[%c4_44, %c187_45] : memref<16x289xf32, #tpu.memory_space<vmem>>, vector<4x17xf32>
    tpu.vector_store %arg7[%c4_44, %c187_45], %94 {strides = array<i32>} : memref<16x289xf32, #tpu.memory_space<vmem>>, vector<4x17xf32>,
    %96 = vector.extract_strided_slice %59 {offsets = [0, 12, 0], sizes = [4, 1, 17], strides = [1, 1, 1]} : vector<4x17x17xf32> to vector<4x1x17xf32>
    %97 = vector.shape_cast %96 : vector<4x1x17xf32> to vector<4x17xf32>
    %c4_46 = arith.constant 4 : index
    %c204_47 = arith.constant 204 : index
    %98 = vector.load %arg7[%c4_46, %c204_47] : memref<16x289xf32, #tpu.memory_space<vmem>>, vector<4x17xf32>
    tpu.vector_store %arg7[%c4_46, %c204_47], %97 {strides = array<i32>} : memref<16x289xf32, #tpu.memory_space<vmem>>, vector<4x17xf32>,
    %99 = vector.extract_strided_slice %59 {offsets = [0, 13, 0], sizes = [4, 1, 17], strides = [1, 1, 1]} : vector<4x17x17xf32> to vector<4x1x17xf32>
    %100 = vector.shape_cast %99 : vector<4x1x17xf32> to vector<4x17xf32>
    %c4_48 = arith.constant 4 : index
    %c221_49 = arith.constant 221 : index
    %101 = vector.load %arg7[%c4_48, %c221_49] : memref<16x289xf32, #tpu.memory_space<vmem>>, vector<4x17xf32>
    tpu.vector_store %arg7[%c4_48, %c221_49], %100 {strides = array<i32>} : memref<16x289xf32, #tpu.memory_space<vmem>>, vector<4x17xf32>,
    %102 = vector.extract_strided_slice %59 {offsets = [0, 14, 0], sizes = [4, 1, 17], strides = [1, 1, 1]} : vector<4x17x17xf32> to vector<4x1x17xf32>
    %103 = vector.shape_cast %102 : vector<4x1x17xf32> to vector<4x17xf32>
    %c4_50 = arith.constant 4 : index
    %c238_51 = arith.constant 238 : index
    %104 = vector.load %arg7[%c4_50, %c238_51] : memref<16x289xf32, #tpu.memory_space<vmem>>, vector<4x17xf32>
    tpu.vector_store %arg7[%c4_50, %c238_51], %103 {strides = array<i32>} : memref<16x289xf32, #tpu.memory_space<vmem>>, vector<4x17xf32>,
    %105 = vector.extract_strided_slice %59 {offsets = [0, 15, 0], sizes = [4, 1, 17], strides = [1, 1, 1]} : vector<4x17x17xf32> to vector<4x1x17xf32>
    %106 = vector.shape_cast %105 : vector<4x1x17xf32> to vector<4x17xf32>
    %c4_52 = arith.constant 4 : index
    %c255_53 = arith.constant 255 : index
    %107 = vector.load %arg7[%c4_52, %c255_53] : memref<16x289xf32, #tpu.memory_space<vmem>>, vector<4x17xf32>
    tpu.vector_store %arg7[%c4_52, %c255_53], %106 {strides = array<i32>} : memref<16x289xf32, #tpu.memory_space<vmem>>, vector<4x17xf32>,
    %108 = vector.extract_strided_slice %59 {offsets = [0, 16, 0], sizes = [4, 1, 17], strides = [1, 1, 1]} : vector<4x17x17xf32> to vector<4x1x17xf32>
    %109 = vector.shape_cast %108 : vector<4x1x17xf32> to vector<4x17xf32>
    %c4_54 = arith.constant 4 : index
    %c272_55 = arith.constant 272 : index
    %110 = vector.load %arg7[%c4_54, %c272_55] : memref<16x289xf32, #tpu.memory_space<vmem>>, vector<4x17xf32>
    tpu.vector_store %arg7[%c4_54, %c272_55], %109 {strides = array<i32>} : memref<16x289xf32, #tpu.memory_space<vmem>>, vector<4x17xf32>,
    %c1_i32 = arith.constant 1 : i32
    %111 = arith.addi %0, %c1_i32 : i32
    %c0_56 = arith.constant 0 : index
    %c0_57 = arith.constant 0 : index
    %112 = arith.index_cast %111 : i32 to index
    %c0_58 = arith.constant 0 : index
    %113 = vector.load %arg2[%c0_56, %c0_57, %112, %c0_58] : memref<1x4x18x18xf32, #tpu.memory_space<vmem>>, vector<1x4x17x17xf32>
    %114 = vector.shape_cast %113 : vector<1x4x17x17xf32> to vector<4x17x17xf32>
    %115 = vector.extract_strided_slice %114 {offsets = [0, 0, 0], sizes = [4, 1, 17], strides = [1, 1, 1]} : vector<4x17x17xf32> to vector<4x1x17xf32>
    %116 = vector.shape_cast %115 : vector<4x1x17xf32> to vector<4x17xf32>
    %c8 = arith.constant 8 : index
    %c0_59 = arith.constant 0 : index
    %117 = vector.load %arg7[%c8, %c0_59] : memref<16x289xf32, #tpu.memory_space<vmem>>, vector<4x17xf32>
    tpu.vector_store %arg7[%c8, %c0_59], %116 {strides = array<i32>} : memref<16x289xf32, #tpu.memory_space<vmem>>, vector<4x17xf32>,
    %118 = vector.extract_strided_slice %114 {offsets = [0, 1, 0], sizes = [4, 1, 17], strides = [1, 1, 1]} : vector<4x17x17xf32> to vector<4x1x17xf32>
    %119 = vector.shape_cast %118 : vector<4x1x17xf32> to vector<4x17xf32>
    %c8_60 = arith.constant 8 : index
    %c17_61 = arith.constant 17 : index
    %120 = vector.load %arg7[%c8_60, %c17_61] : memref<16x289xf32, #tpu.memory_space<vmem>>, vector<4x17xf32>
    tpu.vector_store %arg7[%c8_60, %c17_61], %119 {strides = array<i32>} : memref<16x289xf32, #tpu.memory_space<vmem>>, vector<4x17xf32>,
    %121 = vector.extract_strided_slice %114 {offsets = [0, 2, 0], sizes = [4, 1, 17], strides = [1, 1, 1]} : vector<4x17x17xf32> to vector<4x1x17xf32>
    %122 = vector.shape_cast %121 : vector<4x1x17xf32> to vector<4x17xf32>
    %c8_62 = arith.constant 8 : index
    %c34_63 = arith.constant 34 : index
    %123 = vector.load %arg7[%c8_62, %c34_63] : memref<16x289xf32, #tpu.memory_space<vmem>>, vector<4x17xf32>
    tpu.vector_store %arg7[%c8_62, %c34_63], %122 {strides = array<i32>} : memref<16x289xf32, #tpu.memory_space<vmem>>, vector<4x17xf32>,
    %124 = vector.extract_strided_slice %114 {offsets = [0, 3, 0], sizes = [4, 1, 17], strides = [1, 1, 1]} : vector<4x17x17xf32> to vector<4x1x17xf32>
    %125 = vector.shape_cast %124 : vector<4x1x17xf32> to vector<4x17xf32>
    %c8_64 = arith.constant 8 : index
    %c51_65 = arith.constant 51 : index
    %126 = vector.load %arg7[%c8_64, %c51_65] : memref<16x289xf32, #tpu.memory_space<vmem>>, vector<4x17xf32>
    tpu.vector_store %arg7[%c8_64, %c51_65], %125 {strides = array<i32>} : memref<16x289xf32, #tpu.memory_space<vmem>>, vector<4x17xf32>,
    %127 = vector.extract_strided_slice %114 {offsets = [0, 4, 0], sizes = [4, 1, 17], strides = [1, 1, 1]} : vector<4x17x17xf32> to vector<4x1x17xf32>
    %128 = vector.shape_cast %127 : vector<4x1x17xf32> to vector<4x17xf32>
    %c8_66 = arith.constant 8 : index
    %c68_67 = arith.constant 68 : index
    %129 = vector.load %arg7[%c8_66, %c68_67] : memref<16x289xf32, #tpu.memory_space<vmem>>, vector<4x17xf32>
    tpu.vector_store %arg7[%c8_66, %c68_67], %128 {strides = array<i32>} : memref<16x289xf32, #tpu.memory_space<vmem>>, vector<4x17xf32>,
    %130 = vector.extract_strided_slice %114 {offsets = [0, 5, 0], sizes = [4, 1, 17], strides = [1, 1, 1]} : vector<4x17x17xf32> to vector<4x1x17xf32>
    %131 = vector.shape_cast %130 : vector<4x1x17xf32> to vector<4x17xf32>
    %c8_68 = arith.constant 8 : index
    %c85_69 = arith.constant 85 : index
    %132 = vector.load %arg7[%c8_68, %c85_69] : memref<16x289xf32, #tpu.memory_space<vmem>>, vector<4x17xf32>
    tpu.vector_store %arg7[%c8_68, %c85_69], %131 {strides = array<i32>} : memref<16x289xf32, #tpu.memory_space<vmem>>, vector<4x17xf32>,
    %133 = vector.extract_strided_slice %114 {offsets = [0, 6, 0], sizes = [4, 1, 17], strides = [1, 1, 1]} : vector<4x17x17xf32> to vector<4x1x17xf32>
    %134 = vector.shape_cast %133 : vector<4x1x17xf32> to vector<4x17xf32>
    %c8_70 = arith.constant 8 : index
    %c102_71 = arith.constant 102 : index
    %135 = vector.load %arg7[%c8_70, %c102_71] : memref<16x289xf32, #tpu.memory_space<vmem>>, vector<4x17xf32>
    tpu.vector_store %arg7[%c8_70, %c102_71], %134 {strides = array<i32>} : memref<16x289xf32, #tpu.memory_space<vmem>>, vector<4x17xf32>,
    %136 = vector.extract_strided_slice %114 {offsets = [0, 7, 0], sizes = [4, 1, 17], strides = [1, 1, 1]} : vector<4x17x17xf32> to vector<4x1x17xf32>
    %137 = vector.shape_cast %136 : vector<4x1x17xf32> to vector<4x17xf32>
    %c8_72 = arith.constant 8 : index
    %c119_73 = arith.constant 119 : index
    %138 = vector.load %arg7[%c8_72, %c119_73] : memref<16x289xf32, #tpu.memory_space<vmem>>, vector<4x17xf32>
    tpu.vector_store %arg7[%c8_72, %c119_73], %137 {strides = array<i32>} : memref<16x289xf32, #tpu.memory_space<vmem>>, vector<4x17xf32>,
    %139 = vector.extract_strided_slice %114 {offsets = [0, 8, 0], sizes = [4, 1, 17], strides = [1, 1, 1]} : vector<4x17x17xf32> to vector<4x1x17xf32>
    %140 = vector.shape_cast %139 : vector<4x1x17xf32> to vector<4x17xf32>
    %c8_74 = arith.constant 8 : index
    %c136_75 = arith.constant 136 : index
    %141 = vector.load %arg7[%c8_74, %c136_75] : memref<16x289xf32, #tpu.memory_space<vmem>>, vector<4x17xf32>
    tpu.vector_store %arg7[%c8_74, %c136_75], %140 {strides = array<i32>} : memref<16x289xf32, #tpu.memory_space<vmem>>, vector<4x17xf32>,
    %142 = vector.extract_strided_slice %114 {offsets = [0, 9, 0], sizes = [4, 1, 17], strides = [1, 1, 1]} : vector<4x17x17xf32> to vector<4x1x17xf32>
    %143 = vector.shape_cast %142 : vector<4x1x17xf32> to vector<4x17xf32>
    %c8_76 = arith.constant 8 : index
    %c153_77 = arith.constant 153 : index
    %144 = vector.load %arg7[%c8_76, %c153_77] : memref<16x289xf32, #tpu.memory_space<vmem>>, vector<4x17xf32>
    tpu.vector_store %arg7[%c8_76, %c153_77], %143 {strides = array<i32>} : memref<16x289xf32, #tpu.memory_space<vmem>>, vector<4x17xf32>,
    %145 = vector.extract_strided_slice %114 {offsets = [0, 10, 0], sizes = [4, 1, 17], strides = [1, 1, 1]} : vector<4x17x17xf32> to vector<4x1x17xf32>
    %146 = vector.shape_cast %145 : vector<4x1x17xf32> to vector<4x17xf32>
    %c8_78 = arith.constant 8 : index
    %c170_79 = arith.constant 170 : index
    %147 = vector.load %arg7[%c8_78, %c170_79] : memref<16x289xf32, #tpu.memory_space<vmem>>, vector<4x17xf32>
    tpu.vector_store %arg7[%c8_78, %c170_79], %146 {strides = array<i32>} : memref<16x289xf32, #tpu.memory_space<vmem>>, vector<4x17xf32>,
    %148 = vector.extract_strided_slice %114 {offsets = [0, 11, 0], sizes = [4, 1, 17], strides = [1, 1, 1]} : vector<4x17x17xf32> to vector<4x1x17xf32>
    %149 = vector.shape_cast %148 : vector<4x1x17xf32> to vector<4x17xf32>
    %c8_80 = arith.constant 8 : index
    %c187_81 = arith.constant 187 : index
    %150 = vector.load %arg7[%c8_80, %c187_81] : memref<16x289xf32, #tpu.memory_space<vmem>>, vector<4x17xf32>
    tpu.vector_store %arg7[%c8_80, %c187_81], %149 {strides = array<i32>} : memref<16x289xf32, #tpu.memory_space<vmem>>, vector<4x17xf32>,
    %151 = vector.extract_strided_slice %114 {offsets = [0, 12, 0], sizes = [4, 1, 17], strides = [1, 1, 1]} : vector<4x17x17xf32> to vector<4x1x17xf32>
    %152 = vector.shape_cast %151 : vector<4x1x17xf32> to vector<4x17xf32>
    %c8_82 = arith.constant 8 : index
    %c204_83 = arith.constant 204 : index
    %153 = vector.load %arg7[%c8_82, %c204_83] : memref<16x289xf32, #tpu.memory_space<vmem>>, vector<4x17xf32>
    tpu.vector_store %arg7[%c8_82, %c204_83], %152 {strides = array<i32>} : memref<16x289xf32, #tpu.memory_space<vmem>>, vector<4x17xf32>,
    %154 = vector.extract_strided_slice %114 {offsets = [0, 13, 0], sizes = [4, 1, 17], strides = [1, 1, 1]} : vector<4x17x17xf32> to vector<4x1x17xf32>
    %155 = vector.shape_cast %154 : vector<4x1x17xf32> to vector<4x17xf32>
    %c8_84 = arith.constant 8 : index
    %c221_85 = arith.constant 221 : index
    %156 = vector.load %arg7[%c8_84, %c221_85] : memref<16x289xf32, #tpu.memory_space<vmem>>, vector<4x17xf32>
    tpu.vector_store %arg7[%c8_84, %c221_85], %155 {strides = array<i32>} : memref<16x289xf32, #tpu.memory_space<vmem>>, vector<4x17xf32>,
    %157 = vector.extract_strided_slice %114 {offsets = [0, 14, 0], sizes = [4, 1, 17], strides = [1, 1, 1]} : vector<4x17x17xf32> to vector<4x1x17xf32>
    %158 = vector.shape_cast %157 : vector<4x1x17xf32> to vector<4x17xf32>
    %c8_86 = arith.constant 8 : index
    %c238_87 = arith.constant 238 : index
    %159 = vector.load %arg7[%c8_86, %c238_87] : memref<16x289xf32, #tpu.memory_space<vmem>>, vector<4x17xf32>
    tpu.vector_store %arg7[%c8_86, %c238_87], %158 {strides = array<i32>} : memref<16x289xf32, #tpu.memory_space<vmem>>, vector<4x17xf32>,
    %160 = vector.extract_strided_slice %114 {offsets = [0, 15, 0], sizes = [4, 1, 17], strides = [1, 1, 1]} : vector<4x17x17xf32> to vector<4x1x17xf32>
    %161 = vector.shape_cast %160 : vector<4x1x17xf32> to vector<4x17xf32>
    %c8_88 = arith.constant 8 : index
    %c255_89 = arith.constant 255 : index
    %162 = vector.load %arg7[%c8_88, %c255_89] : memref<16x289xf32, #tpu.memory_space<vmem>>, vector<4x17xf32>
    tpu.vector_store %arg7[%c8_88, %c255_89], %161 {strides = array<i32>} : memref<16x289xf32, #tpu.memory_space<vmem>>, vector<4x17xf32>,
    %163 = vector.extract_strided_slice %114 {offsets = [0, 16, 0], sizes = [4, 1, 17], strides = [1, 1, 1]} : vector<4x17x17xf32> to vector<4x1x17xf32>
    %164 = vector.shape_cast %163 : vector<4x1x17xf32> to vector<4x17xf32>
    %c8_90 = arith.constant 8 : index
    %c272_91 = arith.constant 272 : index
    %165 = vector.load %arg7[%c8_90, %c272_91] : memref<16x289xf32, #tpu.memory_space<vmem>>, vector<4x17xf32>
    tpu.vector_store %arg7[%c8_90, %c272_91], %164 {strides = array<i32>} : memref<16x289xf32, #tpu.memory_space<vmem>>, vector<4x17xf32>,
    %c1_i32_92 = arith.constant 1 : i32
    %166 = arith.addi %0, %c1_i32_92 : i32
    %c0_93 = arith.constant 0 : index
    %c0_94 = arith.constant 0 : index
    %167 = arith.index_cast %166 : i32 to index
    %c1_95 = arith.constant 1 : index
    %168 = vector.load %arg2[%c0_93, %c0_94, %167, %c1_95] : memref<1x4x18x18xf32, #tpu.memory_space<vmem>>, vector<1x4x17x17xf32>
    %169 = vector.shape_cast %168 : vector<1x4x17x17xf32> to vector<4x17x17xf32>
    %170 = vector.extract_strided_slice %169 {offsets = [0, 0, 0], sizes = [4, 1, 17], strides = [1, 1, 1]} : vector<4x17x17xf32> to vector<4x1x17xf32>
    %171 = vector.shape_cast %170 : vector<4x1x17xf32> to vector<4x17xf32>
    %c12 = arith.constant 12 : index
    %c0_96 = arith.constant 0 : index
    %172 = vector.load %arg7[%c12, %c0_96] : memref<16x289xf32, #tpu.memory_space<vmem>>, vector<4x17xf32>
    tpu.vector_store %arg7[%c12, %c0_96], %171 {strides = array<i32>} : memref<16x289xf32, #tpu.memory_space<vmem>>, vector<4x17xf32>,
    %173 = vector.extract_strided_slice %169 {offsets = [0, 1, 0], sizes = [4, 1, 17], strides = [1, 1, 1]} : vector<4x17x17xf32> to vector<4x1x17xf32>
    %174 = vector.shape_cast %173 : vector<4x1x17xf32> to vector<4x17xf32>
    %c12_97 = arith.constant 12 : index
    %c17_98 = arith.constant 17 : index
    %175 = vector.load %arg7[%c12_97, %c17_98] : memref<16x289xf32, #tpu.memory_space<vmem>>, vector<4x17xf32>
    tpu.vector_store %arg7[%c12_97, %c17_98], %174 {strides = array<i32>} : memref<16x289xf32, #tpu.memory_space<vmem>>, vector<4x17xf32>,
    %176 = vector.extract_strided_slice %169 {offsets = [0, 2, 0], sizes = [4, 1, 17], strides = [1, 1, 1]} : vector<4x17x17xf32> to vector<4x1x17xf32>
    %177 = vector.shape_cast %176 : vector<4x1x17xf32> to vector<4x17xf32>
    %c12_99 = arith.constant 12 : index
    %c34_100 = arith.constant 34 : index
    %178 = vector.load %arg7[%c12_99, %c34_100] : memref<16x289xf32, #tpu.memory_space<vmem>>, vector<4x17xf32>
    tpu.vector_store %arg7[%c12_99, %c34_100], %177 {strides = array<i32>} : memref<16x289xf32, #tpu.memory_space<vmem>>, vector<4x17xf32>,
    %179 = vector.extract_strided_slice %169 {offsets = [0, 3, 0], sizes = [4, 1, 17], strides = [1, 1, 1]} : vector<4x17x17xf32> to vector<4x1x17xf32>
    %180 = vector.shape_cast %179 : vector<4x1x17xf32> to vector<4x17xf32>
    %c12_101 = arith.constant 12 : index
    %c51_102 = arith.constant 51 : index
    %181 = vector.load %arg7[%c12_101, %c51_102] : memref<16x289xf32, #tpu.memory_space<vmem>>, vector<4x17xf32>
    tpu.vector_store %arg7[%c12_101, %c51_102], %180 {strides = array<i32>} : memref<16x289xf32, #tpu.memory_space<vmem>>, vector<4x17xf32>,
    %182 = vector.extract_strided_slice %169 {offsets = [0, 4, 0], sizes = [4, 1, 17], strides = [1, 1, 1]} : vector<4x17x17xf32> to vector<4x1x17xf32>
    %183 = vector.shape_cast %182 : vector<4x1x17xf32> to vector<4x17xf32>
    %c12_103 = arith.constant 12 : index
    %c68_104 = arith.constant 68 : index
    %184 = vector.load %arg7[%c12_103, %c68_104] : memref<16x289xf32, #tpu.memory_space<vmem>>, vector<4x17xf32>
    tpu.vector_store %arg7[%c12_103, %c68_104], %183 {strides = array<i32>} : memref<16x289xf32, #tpu.memory_space<vmem>>, vector<4x17xf32>,
    %185 = vector.extract_strided_slice %169 {offsets = [0, 5, 0], sizes = [4, 1, 17], strides = [1, 1, 1]} : vector<4x17x17xf32> to vector<4x1x17xf32>
    %186 = vector.shape_cast %185 : vector<4x1x17xf32> to vector<4x17xf32>
    %c12_105 = arith.constant 12 : index
    %c85_106 = arith.constant 85 : index
    %187 = vector.load %arg7[%c12_105, %c85_106] : memref<16x289xf32, #tpu.memory_space<vmem>>, vector<4x17xf32>
    tpu.vector_store %arg7[%c12_105, %c85_106], %186 {strides = array<i32>} : memref<16x289xf32, #tpu.memory_space<vmem>>, vector<4x17xf32>,
    %188 = vector.extract_strided_slice %169 {offsets = [0, 6, 0], sizes = [4, 1, 17], strides = [1, 1, 1]} : vector<4x17x17xf32> to vector<4x1x17xf32>
    %189 = vector.shape_cast %188 : vector<4x1x17xf32> to vector<4x17xf32>
    %c12_107 = arith.constant 12 : index
    %c102_108 = arith.constant 102 : index
    %190 = vector.load %arg7[%c12_107, %c102_108] : memref<16x289xf32, #tpu.memory_space<vmem>>, vector<4x17xf32>
    tpu.vector_store %arg7[%c12_107, %c102_108], %189 {strides = array<i32>} : memref<16x289xf32, #tpu.memory_space<vmem>>, vector<4x17xf32>,
    %191 = vector.extract_strided_slice %169 {offsets = [0, 7, 0], sizes = [4, 1, 17], strides = [1, 1, 1]} : vector<4x17x17xf32> to vector<4x1x17xf32>
    %192 = vector.shape_cast %191 : vector<4x1x17xf32> to vector<4x17xf32>
    %c12_109 = arith.constant 12 : index
    %c119_110 = arith.constant 119 : index
    %193 = vector.load %arg7[%c12_109, %c119_110] : memref<16x289xf32, #tpu.memory_space<vmem>>, vector<4x17xf32>
    tpu.vector_store %arg7[%c12_109, %c119_110], %192 {strides = array<i32>} : memref<16x289xf32, #tpu.memory_space<vmem>>, vector<4x17xf32>,
    %194 = vector.extract_strided_slice %169 {offsets = [0, 8, 0], sizes = [4, 1, 17], strides = [1, 1, 1]} : vector<4x17x17xf32> to vector<4x1x17xf32>
    %195 = vector.shape_cast %194 : vector<4x1x17xf32> to vector<4x17xf32>
    %c12_111 = arith.constant 12 : index
    %c136_112 = arith.constant 136 : index
    %196 = vector.load %arg7[%c12_111, %c136_112] : memref<16x289xf32, #tpu.memory_space<vmem>>, vector<4x17xf32>
    tpu.vector_store %arg7[%c12_111, %c136_112], %195 {strides = array<i32>} : memref<16x289xf32, #tpu.memory_space<vmem>>, vector<4x17xf32>,
    %197 = vector.extract_strided_slice %169 {offsets = [0, 9, 0], sizes = [4, 1, 17], strides = [1, 1, 1]} : vector<4x17x17xf32> to vector<4x1x17xf32>
    %198 = vector.shape_cast %197 : vector<4x1x17xf32> to vector<4x17xf32>
    %c12_113 = arith.constant 12 : index
    %c153_114 = arith.constant 153 : index
    %199 = vector.load %arg7[%c12_113, %c153_114] : memref<16x289xf32, #tpu.memory_space<vmem>>, vector<4x17xf32>
    tpu.vector_store %arg7[%c12_113, %c153_114], %198 {strides = array<i32>} : memref<16x289xf32, #tpu.memory_space<vmem>>, vector<4x17xf32>,
    %200 = vector.extract_strided_slice %169 {offsets = [0, 10, 0], sizes = [4, 1, 17], strides = [1, 1, 1]} : vector<4x17x17xf32> to vector<4x1x17xf32>
    %201 = vector.shape_cast %200 : vector<4x1x17xf32> to vector<4x17xf32>
    %c12_115 = arith.constant 12 : index
    %c170_116 = arith.constant 170 : index
    %202 = vector.load %arg7[%c12_115, %c170_116] : memref<16x289xf32, #tpu.memory_space<vmem>>, vector<4x17xf32>
    tpu.vector_store %arg7[%c12_115, %c170_116], %201 {strides = array<i32>} : memref<16x289xf32, #tpu.memory_space<vmem>>, vector<4x17xf32>,
    %203 = vector.extract_strided_slice %169 {offsets = [0, 11, 0], sizes = [4, 1, 17], strides = [1, 1, 1]} : vector<4x17x17xf32> to vector<4x1x17xf32>
    %204 = vector.shape_cast %203 : vector<4x1x17xf32> to vector<4x17xf32>
    %c12_117 = arith.constant 12 : index
    %c187_118 = arith.constant 187 : index
    %205 = vector.load %arg7[%c12_117, %c187_118] : memref<16x289xf32, #tpu.memory_space<vmem>>, vector<4x17xf32>
    tpu.vector_store %arg7[%c12_117, %c187_118], %204 {strides = array<i32>} : memref<16x289xf32, #tpu.memory_space<vmem>>, vector<4x17xf32>,
    %206 = vector.extract_strided_slice %169 {offsets = [0, 12, 0], sizes = [4, 1, 17], strides = [1, 1, 1]} : vector<4x17x17xf32> to vector<4x1x17xf32>
    %207 = vector.shape_cast %206 : vector<4x1x17xf32> to vector<4x17xf32>
    %c12_119 = arith.constant 12 : index
    %c204_120 = arith.constant 204 : index
    %208 = vector.load %arg7[%c12_119, %c204_120] : memref<16x289xf32, #tpu.memory_space<vmem>>, vector<4x17xf32>
    tpu.vector_store %arg7[%c12_119, %c204_120], %207 {strides = array<i32>} : memref<16x289xf32, #tpu.memory_space<vmem>>, vector<4x17xf32>,
    %209 = vector.extract_strided_slice %169 {offsets = [0, 13, 0], sizes = [4, 1, 17], strides = [1, 1, 1]} : vector<4x17x17xf32> to vector<4x1x17xf32>
    %210 = vector.shape_cast %209 : vector<4x1x17xf32> to vector<4x17xf32>
    %c12_121 = arith.constant 12 : index
    %c221_122 = arith.constant 221 : index
    %211 = vector.load %arg7[%c12_121, %c221_122] : memref<16x289xf32, #tpu.memory_space<vmem>>, vector<4x17xf32>
    tpu.vector_store %arg7[%c12_121, %c221_122], %210 {strides = array<i32>} : memref<16x289xf32, #tpu.memory_space<vmem>>, vector<4x17xf32>,
    %212 = vector.extract_strided_slice %169 {offsets = [0, 14, 0], sizes = [4, 1, 17], strides = [1, 1, 1]} : vector<4x17x17xf32> to vector<4x1x17xf32>
    %213 = vector.shape_cast %212 : vector<4x1x17xf32> to vector<4x17xf32>
    %c12_123 = arith.constant 12 : index
    %c238_124 = arith.constant 238 : index
    %214 = vector.load %arg7[%c12_123, %c238_124] : memref<16x289xf32, #tpu.memory_space<vmem>>, vector<4x17xf32>
    tpu.vector_store %arg7[%c12_123, %c238_124], %213 {strides = array<i32>} : memref<16x289xf32, #tpu.memory_space<vmem>>, vector<4x17xf32>,
    %215 = vector.extract_strided_slice %169 {offsets = [0, 15, 0], sizes = [4, 1, 17], strides = [1, 1, 1]} : vector<4x17x17xf32> to vector<4x1x17xf32>
    %216 = vector.shape_cast %215 : vector<4x1x17xf32> to vector<4x17xf32>
    %c12_125 = arith.constant 12 : index
    %c255_126 = arith.constant 255 : index
    %217 = vector.load %arg7[%c12_125, %c255_126] : memref<16x289xf32, #tpu.memory_space<vmem>>, vector<4x17xf32>
    tpu.vector_store %arg7[%c12_125, %c255_126], %216 {strides = array<i32>} : memref<16x289xf32, #tpu.memory_space<vmem>>, vector<4x17xf32>,
    %218 = vector.extract_strided_slice %169 {offsets = [0, 16, 0], sizes = [4, 1, 17], strides = [1, 1, 1]} : vector<4x17x17xf32> to vector<4x1x17xf32>
    %219 = vector.shape_cast %218 : vector<4x1x17xf32> to vector<4x17xf32>
    %c12_127 = arith.constant 12 : index
    %c272_128 = arith.constant 272 : index
    %220 = vector.load %arg7[%c12_127, %c272_128] : memref<16x289xf32, #tpu.memory_space<vmem>>, vector<4x17xf32>
    tpu.vector_store %arg7[%c12_127, %c272_128], %219 {strides = array<i32>} : memref<16x289xf32, #tpu.memory_space<vmem>>, vector<4x17xf32>,
    %c0_129 = arith.constant 0 : index
    %c0_130 = arith.constant 0 : index
    %221 = vector.load %arg3[%c0_129, %c0_130] : memref<16x16xf32, #tpu.memory_space<vmem>>, vector<16x16xf32>
    %c0_131 = arith.constant 0 : index
    %c0_132 = arith.constant 0 : index
    %222 = vector.load %arg7[%c0_131, %c0_132] : memref<16x289xf32, #tpu.memory_space<vmem>>, vector<16x289xf32>
    %cst = arith.constant dense<0.000000e+00> : vector<16x289xf32>
    %223 = tpu.matmul %221, %222, %cst {dimension_numbers = #tpu.dot_dimension_numbers<[1], [0], [0], [1], [0, 0, 1, 1], [], []>} : vector<16x16xf32>, vector<16x289xf32>, vector<16x289xf32> -> vector<16x289xf32>
    %c0_133 = arith.constant 0 : index
    %c0_134 = arith.constant 0 : index
    %224 = vector.load %arg4[%c0_133, %c0_134] : memref<16x1xf32, #tpu.memory_space<vmem>>, vector<16x1xf32>
    %225 = vector.broadcast %224 : vector<16x1xf32> to vector<16x289xf32>
    %226 = arith.addf %223, %225 : vector<16x289xf32>
    %cst_135 = arith.constant 0.000000e+00 : f32
    %227 = vector.broadcast %cst_135 : f32 to vector<16x289xf32>
    %228 = arith.cmpf oge, %226, %227 : vector<16x289xf32>
    %c0_136 = arith.constant 0 : index
    %c0_137 = arith.constant 0 : index
    %229 = vector.load %arg5[%c0_136, %c0_137] : memref<16x1xf32, #tpu.memory_space<vmem>>, vector<16x1xf32>
    %230 = vector.broadcast %229 : vector<16x1xf32> to vector<16x289xf32>
    %231 = arith.mulf %226, %230 : vector<16x289xf32>
    %232 = arith.select %228, %226, %231 : vector<16x289xi1>, vector<16x289xf32>
    %233 = vector.extract_strided_slice %232 {offsets = [0, 0], sizes = [16, 17], strides = [1, 1]} : vector<16x289xf32> to vector<16x17xf32>
    %c0_138 = arith.constant 0 : index
    %c0_139 = arith.constant 0 : index
    %c0_140 = arith.constant 0 : index
    %c0_141 = arith.constant 0 : index
    %234 = vector.load %arg6[%c0_138, %c0_139, %c0_140, %c0_141] : memref<1x16x17x17xf32, #tpu.memory_space<vmem>>, vector<1x16x1x17xf32>
    %235 = vector.shape_cast %234 : vector<1x16x1x17xf32> to vector<16x17xf32>
    %236 = vector.shape_cast %233 : vector<16x17xf32> to vector<1x16x1x17xf32>
    tpu.vector_store %arg6[%c0_138, %c0_139, %c0_140, %c0_141], %236 {strides = array<i32>} : memref<1x16x17x17xf32, #tpu.memory_space<vmem>>, vector<1x16x1x17xf32>,
    %237 = vector.extract_strided_slice %232 {offsets = [0, 17], sizes = [16, 17], strides = [1, 1]} : vector<16x289xf32> to vector<16x17xf32>
    %c0_142 = arith.constant 0 : index
    %c0_143 = arith.constant 0 : index
    %c1_144 = arith.constant 1 : index
    %c0_145 = arith.constant 0 : index
    %238 = vector.load %arg6[%c0_142, %c0_143, %c1_144, %c0_145] : memref<1x16x17x17xf32, #tpu.memory_space<vmem>>, vector<1x16x1x17xf32>
    %239 = vector.shape_cast %238 : vector<1x16x1x17xf32> to vector<16x17xf32>
    %240 = vector.shape_cast %237 : vector<16x17xf32> to vector<1x16x1x17xf32>
    tpu.vector_store %arg6[%c0_142, %c0_143, %c1_144, %c0_145], %240 {strides = array<i32>} : memref<1x16x17x17xf32, #tpu.memory_space<vmem>>, vector<1x16x1x17xf32>,
    %241 = vector.extract_strided_slice %232 {offsets = [0, 34], sizes = [16, 17], strides = [1, 1]} : vector<16x289xf32> to vector<16x17xf32>
    %c0_146 = arith.constant 0 : index
    %c0_147 = arith.constant 0 : index
    %c2 = arith.constant 2 : index
    %c0_148 = arith.constant 0 : index
    %242 = vector.load %arg6[%c0_146, %c0_147, %c2, %c0_148] : memref<1x16x17x17xf32, #tpu.memory_space<vmem>>, vector<1x16x1x17xf32>
    %243 = vector.shape_cast %242 : vector<1x16x1x17xf32> to vector<16x17xf32>
    %244 = vector.shape_cast %241 : vector<16x17xf32> to vector<1x16x1x17xf32>
    tpu.vector_store %arg6[%c0_146, %c0_147, %c2, %c0_148], %244 {strides = array<i32>} : memref<1x16x17x17xf32, #tpu.memory_space<vmem>>, vector<1x16x1x17xf32>,
    %245 = vector.extract_strided_slice %232 {offsets = [0, 51], sizes = [16, 17], strides = [1, 1]} : vector<16x289xf32> to vector<16x17xf32>
    %c0_149 = arith.constant 0 : index
    %c0_150 = arith.constant 0 : index
    %c3 = arith.constant 3 : index
    %c0_151 = arith.constant 0 : index
    %246 = vector.load %arg6[%c0_149, %c0_150, %c3, %c0_151] : memref<1x16x17x17xf32, #tpu.memory_space<vmem>>, vector<1x16x1x17xf32>
    %247 = vector.shape_cast %246 : vector<1x16x1x17xf32> to vector<16x17xf32>
    %248 = vector.shape_cast %245 : vector<16x17xf32> to vector<1x16x1x17xf32>
    tpu.vector_store %arg6[%c0_149, %c0_150, %c3, %c0_151], %248 {strides = array<i32>} : memref<1x16x17x17xf32, #tpu.memory_space<vmem>>, vector<1x16x1x17xf32>,
    %249 = vector.extract_strided_slice %232 {offsets = [0, 68], sizes = [16, 17], strides = [1, 1]} : vector<16x289xf32> to vector<16x17xf32>
    %c0_152 = arith.constant 0 : index
    %c0_153 = arith.constant 0 : index
    %c4_154 = arith.constant 4 : index
    %c0_155 = arith.constant 0 : index
    %250 = vector.load %arg6[%c0_152, %c0_153, %c4_154, %c0_155] : memref<1x16x17x17xf32, #tpu.memory_space<vmem>>, vector<1x16x1x17xf32>
    %251 = vector.shape_cast %250 : vector<1x16x1x17xf32> to vector<16x17xf32>
    %252 = vector.shape_cast %249 : vector<16x17xf32> to vector<1x16x1x17xf32>
    tpu.vector_store %arg6[%c0_152, %c0_153, %c4_154, %c0_155], %252 {strides = array<i32>} : memref<1x16x17x17xf32, #tpu.memory_space<vmem>>, vector<1x16x1x17xf32>,
    %253 = vector.extract_strided_slice %232 {offsets = [0, 85], sizes = [16, 17], strides = [1, 1]} : vector<16x289xf32> to vector<16x17xf32>
    %c0_156 = arith.constant 0 : index
    %c0_157 = arith.constant 0 : index
    %c5 = arith.constant 5 : index
    %c0_158 = arith.constant 0 : index
    %254 = vector.load %arg6[%c0_156, %c0_157, %c5, %c0_158] : memref<1x16x17x17xf32, #tpu.memory_space<vmem>>, vector<1x16x1x17xf32>
    %255 = vector.shape_cast %254 : vector<1x16x1x17xf32> to vector<16x17xf32>
    %256 = vector.shape_cast %253 : vector<16x17xf32> to vector<1x16x1x17xf32>
    tpu.vector_store %arg6[%c0_156, %c0_157, %c5, %c0_158], %256 {strides = array<i32>} : memref<1x16x17x17xf32, #tpu.memory_space<vmem>>, vector<1x16x1x17xf32>,
    %257 = vector.extract_strided_slice %232 {offsets = [0, 102], sizes = [16, 17], strides = [1, 1]} : vector<16x289xf32> to vector<16x17xf32>
    %c0_159 = arith.constant 0 : index
    %c0_160 = arith.constant 0 : index
    %c6 = arith.constant 6 : index
    %c0_161 = arith.constant 0 : index
    %258 = vector.load %arg6[%c0_159, %c0_160, %c6, %c0_161] : memref<1x16x17x17xf32, #tpu.memory_space<vmem>>, vector<1x16x1x17xf32>
    %259 = vector.shape_cast %258 : vector<1x16x1x17xf32> to vector<16x17xf32>
    %260 = vector.shape_cast %257 : vector<16x17xf32> to vector<1x16x1x17xf32>
    tpu.vector_store %arg6[%c0_159, %c0_160, %c6, %c0_161], %260 {strides = array<i32>} : memref<1x16x17x17xf32, #tpu.memory_space<vmem>>, vector<1x16x1x17xf32>,
    %261 = vector.extract_strided_slice %232 {offsets = [0, 119], sizes = [16, 17], strides = [1, 1]} : vector<16x289xf32> to vector<16x17xf32>
    %c0_162 = arith.constant 0 : index
    %c0_163 = arith.constant 0 : index
    %c7 = arith.constant 7 : index
    %c0_164 = arith.constant 0 : index
    %262 = vector.load %arg6[%c0_162, %c0_163, %c7, %c0_164] : memref<1x16x17x17xf32, #tpu.memory_space<vmem>>, vector<1x16x1x17xf32>
    %263 = vector.shape_cast %262 : vector<1x16x1x17xf32> to vector<16x17xf32>
    %264 = vector.shape_cast %261 : vector<16x17xf32> to vector<1x16x1x17xf32>
    tpu.vector_store %arg6[%c0_162, %c0_163, %c7, %c0_164], %264 {strides = array<i32>} : memref<1x16x17x17xf32, #tpu.memory_space<vmem>>, vector<1x16x1x17xf32>,
    %265 = vector.extract_strided_slice %232 {offsets = [0, 136], sizes = [16, 17], strides = [1, 1]} : vector<16x289xf32> to vector<16x17xf32>
    %c0_165 = arith.constant 0 : index
    %c0_166 = arith.constant 0 : index
    %c8_167 = arith.constant 8 : index
    %c0_168 = arith.constant 0 : index
    %266 = vector.load %arg6[%c0_165, %c0_166, %c8_167, %c0_168] : memref<1x16x17x17xf32, #tpu.memory_space<vmem>>, vector<1x16x1x17xf32>
    %267 = vector.shape_cast %266 : vector<1x16x1x17xf32> to vector<16x17xf32>
    %268 = vector.shape_cast %265 : vector<16x17xf32> to vector<1x16x1x17xf32>
    tpu.vector_store %arg6[%c0_165, %c0_166, %c8_167, %c0_168], %268 {strides = array<i32>} : memref<1x16x17x17xf32, #tpu.memory_space<vmem>>, vector<1x16x1x17xf32>,
    %269 = vector.extract_strided_slice %232 {offsets = [0, 153], sizes = [16, 17], strides = [1, 1]} : vector<16x289xf32> to vector<16x17xf32>
    %c0_169 = arith.constant 0 : index
    %c0_170 = arith.constant 0 : index
    %c9 = arith.constant 9 : index
    %c0_171 = arith.constant 0 : index
    %270 = vector.load %arg6[%c0_169, %c0_170, %c9, %c0_171] : memref<1x16x17x17xf32, #tpu.memory_space<vmem>>, vector<1x16x1x17xf32>
    %271 = vector.shape_cast %270 : vector<1x16x1x17xf32> to vector<16x17xf32>
    %272 = vector.shape_cast %269 : vector<16x17xf32> to vector<1x16x1x17xf32>
    tpu.vector_store %arg6[%c0_169, %c0_170, %c9, %c0_171], %272 {strides = array<i32>} : memref<1x16x17x17xf32, #tpu.memory_space<vmem>>, vector<1x16x1x17xf32>,
    %273 = vector.extract_strided_slice %232 {offsets = [0, 170], sizes = [16, 17], strides = [1, 1]} : vector<16x289xf32> to vector<16x17xf32>
    %c0_172 = arith.constant 0 : index
    %c0_173 = arith.constant 0 : index
    %c10 = arith.constant 10 : index
    %c0_174 = arith.constant 0 : index
    %274 = vector.load %arg6[%c0_172, %c0_173, %c10, %c0_174] : memref<1x16x17x17xf32, #tpu.memory_space<vmem>>, vector<1x16x1x17xf32>
    %275 = vector.shape_cast %274 : vector<1x16x1x17xf32> to vector<16x17xf32>
    %276 = vector.shape_cast %273 : vector<16x17xf32> to vector<1x16x1x17xf32>
    tpu.vector_store %arg6[%c0_172, %c0_173, %c10, %c0_174], %276 {strides = array<i32>} : memref<1x16x17x17xf32, #tpu.memory_space<vmem>>, vector<1x16x1x17xf32>,
    %277 = vector.extract_strided_slice %232 {offsets = [0, 187], sizes = [16, 17], strides = [1, 1]} : vector<16x289xf32> to vector<16x17xf32>
    %c0_175 = arith.constant 0 : index
    %c0_176 = arith.constant 0 : index
    %c11 = arith.constant 11 : index
    %c0_177 = arith.constant 0 : index
    %278 = vector.load %arg6[%c0_175, %c0_176, %c11, %c0_177] : memref<1x16x17x17xf32, #tpu.memory_space<vmem>>, vector<1x16x1x17xf32>
    %279 = vector.shape_cast %278 : vector<1x16x1x17xf32> to vector<16x17xf32>
    %280 = vector.shape_cast %277 : vector<16x17xf32> to vector<1x16x1x17xf32>
    tpu.vector_store %arg6[%c0_175, %c0_176, %c11, %c0_177], %280 {strides = array<i32>} : memref<1x16x17x17xf32, #tpu.memory_space<vmem>>, vector<1x16x1x17xf32>,
    %281 = vector.extract_strided_slice %232 {offsets = [0, 204], sizes = [16, 17], strides = [1, 1]} : vector<16x289xf32> to vector<16x17xf32>
    %c0_178 = arith.constant 0 : index
    %c0_179 = arith.constant 0 : index
    %c12_180 = arith.constant 12 : index
    %c0_181 = arith.constant 0 : index
    %282 = vector.load %arg6[%c0_178, %c0_179, %c12_180, %c0_181] : memref<1x16x17x17xf32, #tpu.memory_space<vmem>>, vector<1x16x1x17xf32>
    %283 = vector.shape_cast %282 : vector<1x16x1x17xf32> to vector<16x17xf32>
    %284 = vector.shape_cast %281 : vector<16x17xf32> to vector<1x16x1x17xf32>
    tpu.vector_store %arg6[%c0_178, %c0_179, %c12_180, %c0_181], %284 {strides = array<i32>} : memref<1x16x17x17xf32, #tpu.memory_space<vmem>>, vector<1x16x1x17xf32>,
    %285 = vector.extract_strided_slice %232 {offsets = [0, 221], sizes = [16, 17], strides = [1, 1]} : vector<16x289xf32> to vector<16x17xf32>
    %c0_182 = arith.constant 0 : index
    %c0_183 = arith.constant 0 : index
    %c13 = arith.constant 13 : index
    %c0_184 = arith.constant 0 : index
    %286 = vector.load %arg6[%c0_182, %c0_183, %c13, %c0_184] : memref<1x16x17x17xf32, #tpu.memory_space<vmem>>, vector<1x16x1x17xf32>
    %287 = vector.shape_cast %286 : vector<1x16x1x17xf32> to vector<16x17xf32>
    %288 = vector.shape_cast %285 : vector<16x17xf32> to vector<1x16x1x17xf32>
    tpu.vector_store %arg6[%c0_182, %c0_183, %c13, %c0_184], %288 {strides = array<i32>} : memref<1x16x17x17xf32, #tpu.memory_space<vmem>>, vector<1x16x1x17xf32>,
    %289 = vector.extract_strided_slice %232 {offsets = [0, 238], sizes = [16, 17], strides = [1, 1]} : vector<16x289xf32> to vector<16x17xf32>
    %c0_185 = arith.constant 0 : index
    %c0_186 = arith.constant 0 : index
    %c14 = arith.constant 14 : index
    %c0_187 = arith.constant 0 : index
    %290 = vector.load %arg6[%c0_185, %c0_186, %c14, %c0_187] : memref<1x16x17x17xf32, #tpu.memory_space<vmem>>, vector<1x16x1x17xf32>
    %291 = vector.shape_cast %290 : vector<1x16x1x17xf32> to vector<16x17xf32>
    %292 = vector.shape_cast %289 : vector<16x17xf32> to vector<1x16x1x17xf32>
    tpu.vector_store %arg6[%c0_185, %c0_186, %c14, %c0_187], %292 {strides = array<i32>} : memref<1x16x17x17xf32, #tpu.memory_space<vmem>>, vector<1x16x1x17xf32>,
    %293 = vector.extract_strided_slice %232 {offsets = [0, 255], sizes = [16, 17], strides = [1, 1]} : vector<16x289xf32> to vector<16x17xf32>
    %c0_188 = arith.constant 0 : index
    %c0_189 = arith.constant 0 : index
    %c15 = arith.constant 15 : index
    %c0_190 = arith.constant 0 : index
    %294 = vector.load %arg6[%c0_188, %c0_189, %c15, %c0_190] : memref<1x16x17x17xf32, #tpu.memory_space<vmem>>, vector<1x16x1x17xf32>
    %295 = vector.shape_cast %294 : vector<1x16x1x17xf32> to vector<16x17xf32>
    %296 = vector.shape_cast %293 : vector<16x17xf32> to vector<1x16x1x17xf32>
    tpu.vector_store %arg6[%c0_188, %c0_189, %c15, %c0_190], %296 {strides = array<i32>} : memref<1x16x17x17xf32, #tpu.memory_space<vmem>>, vector<1x16x1x17xf32>,
    %297 = vector.extract_strided_slice %232 {offsets = [0, 272], sizes = [16, 17], strides = [1, 1]} : vector<16x289xf32> to vector<16x17xf32>
    %c0_191 = arith.constant 0 : index
    %c0_192 = arith.constant 0 : index
    %c16 = arith.constant 16 : index
    %c0_193 = arith.constant 0 : index
    %298 = vector.load %arg6[%c0_191, %c0_192, %c16, %c0_193] : memref<1x16x17x17xf32, #tpu.memory_space<vmem>>, vector<1x16x1x17xf32>
    %299 = vector.shape_cast %298 : vector<1x16x1x17xf32> to vector<16x17xf32>
    %300 = vector.shape_cast %297 : vector<16x17xf32> to vector<1x16x1x17xf32>
    tpu.vector_store %arg6[%c0_191, %c0_192, %c16, %c0_193], %300 {strides = array<i32>} : memref<1x16x17x17xf32, #tpu.memory_space<vmem>>, vector<1x16x1x17xf32>,
    return
  }
  func.func @transform_0(%arg0: i32, %arg1: i32) -> (i32, i32, i32, i32) {
    %c0_i32 = arith.constant 0 : i32
    %c0_i32_0 = arith.constant 0 : i32
    %c0_i32_1 = arith.constant 0 : i32
    %c0_i32_2 = arith.constant 0 : i32
    return %arg0, %c0_i32, %c0_i32_0, %c0_i32_1 : i32, i32, i32, i32
  }
  func.func @transform_1(%arg0: i32, %arg1: i32) -> (i32, i32) {
    %c0_i32 = arith.constant 0 : i32
    %c0_i32_0 = arith.constant 0 : i32
    %c0_i32_1 = arith.constant 0 : i32
    return %c0_i32, %c0_i32_0 : i32, i32
  }
  func.func @transform_2(%arg0: i32, %arg1: i32) -> (i32, i32) {
    %c0_i32 = arith.constant 0 : i32
    %c0_i32_0 = arith.constant 0 : i32
    %c0_i32_1 = arith.constant 0 : i32
    return %c0_i32, %c0_i32_0 : i32, i32
  }
  func.func @transform_3(%arg0: i32, %arg1: i32) -> (i32, i32) {
    %c0_i32 = arith.constant 0 : i32
    %c0_i32_0 = arith.constant 0 : i32
    %c0_i32_1 = arith.constant 0 : i32
    return %c0_i32, %c0_i32_0 : i32, i32
  }
  func.func @transform_4(%arg0: i32, %arg1: i32) -> (i32, i32, i32, i32) {
    %c0_i32 = arith.constant 0 : i32
    %c0_i32_0 = arith.constant 0 : i32
    %c0_i32_1 = arith.constant 0 : i32
    return %arg0, %c0_i32, %arg1, %c0_i32_0 : i32, i32, i32, i32
  }
}

</mosaic_0001>

<llo_original>
// kernel: tpu_custom_call.1
$region0: #{tpu_custom_call.1}
  #allocation0 [shape = 'u32[]', space=smem, size = 0x4, offset = 0x4, fixed_abs, tag = 'smem constant byte address 0x4 - core index']
  #allocation1 [shape = 'u32[72,128]{1,0:T(1,128)}', space=vmem, size = 0x9000, scoped, tag = 'internal scratch']
  #allocation2 [shape = 'f32[16,289]{1,0:T(8,128)}', space=vmem, size = 0x6000, scoped, tag = 'scratch operand']
  %s0 = inlined_call_operand.vmem [shape: f32[2,4,18,18], index: 0, kind: input, shape index: {}]
  %s1 = inlined_call_operand.vmem [shape: f32[16,16], index: 1, kind: input, shape index: {}]
  %s2 = inlined_call_operand.vmem [shape: f32[16,1], index: 2, kind: input, shape index: {}]
  %s3 = inlined_call_operand.vmem [shape: f32[16,1], index: 3, kind: input, shape index: {}]
  %s4 = inlined_call_operand.vmem [shape: f32[2,16,17,17], index: 4, kind: output, shape index: {}]
  %s5 = sld [smem:[#allocation0]]
  $region49: #{tpu_custom_call.1} parent=0
    _
  %s7 = ssub.s32 1, %s5
  %s8 = scalar_select 0, %s7, %s5
  loop: start=0, step=1, limit=4
  $region2: #{tpu_custom_call.1} parent=0 // loop_pre_header
    _
  $region3: #{tpu_custom_call.1} parent=0 // loop_header
    %s10 = sphi 0, %s14
    %p11 = scmp.ge.s32.totalorder %s10, 4
    %s17 = sphi 0, %s29
    %s18 = sphi 0, %s25
    %s19 = sphi 0, %s17
    %s20 = sphi 0, %s18
    %s21 = sphi 0, %s19
    %s22 = sphi 0, %s20
    %s32 = sphi 0, %s34
    %s35 = sphi 0, %s32
    %s36 = sphi 0, %s35
    %s52 = sphi 0, %s36
    %s56 = sphi 0, %s56
    %s58 = sphi 0, %s56
    %s59 = sphi 0, %s58
    %s73 = sphi 0, %s59
    %s77 = sphi 0, %s77
    %s79 = sphi 0, %s77
    %s80 = sphi 0, %s79
    %s94 = sphi 0, %s80
    %s98 = sphi 0, %s98
    %s100 = sphi 0, %s98
    %s101 = sphi 0, %s100
    %s115 = sphi 0, %s101
    %s123 = sphi 0, %s125
    %s126 = sphi 0, %s123
    %s127 = sphi 0, %s126
    %s143 = sphi 0, %s127
  $region4: #{tpu_custom_call.1} parent=0 // loop_header_branch
    %13 = sbr.rel (%p11) target = $region8
  $region5: #{tpu_custom_call.1} parent=0 // loop_body
    %s15 = ssub.s32 %s10, 1
    %s16 = ssub.s32 %s10, 2
    %s23 = sadd.s32 1, %s18
    %p24 = scmp.ge.s32.totalorder %s23, 1
    %s25 = scalar_select %p24, 0, %s23
    %s26 = sadd.s32 1, %s17
    %s27 = scalar_select %p24, %s26, %s17
    %p28 = scmp.ge.s32.totalorder %s27, 2
    %s29 = scalar_select %p28, 0, %s27
    %s30 = ssub.s32 %s17, %s29
    %p31 = scmp.eq.s32.totalorder %s30, 0
    %s33 = sadd.s32 %s32, 1
    %s34 = scalar_select %p31, %s32, %s33
    %p37 = pneg %p31
    %p38 = scmp.eq.s32.totalorder %s10, 1
    %p39 = por %p37, %p38
    %p40 = scmp.ne.s32.totalorder %s32, %s35
    %p41 = scmp.eq.s32.totalorder %s10, 0
    %p42 = por %p40, %p41
    %p43 = scmp.ne.s32.totalorder %s32, %s35
    %p44 = scmp.eq.s32.totalorder %s15, 1
    %p45 = por %p43, %p44
    %p46 = scmp.ne.s32.totalorder %s35, %s36
    %p47 = scmp.eq.s32.totalorder %s15, 0
    %p48 = por %p46, %p47
    %p49 = scmp.ne.s32.totalorder %s35, %s36
    %p50 = scmp.eq.s32.totalorder %s16, 1
    %p51 = por %p49, %p50
    %p53 = scmp.ne.s32.totalorder %s36, %s52
    %p54 = scmp.eq.s32.totalorder %s16, 0
    %p55 = por %p53, %p54
    %s57 = sadd.s32 %s56, 1
    %p60 = scmp.eq.s32.totalorder %s10, 1
    %p61 = scmp.ne.s32.totalorder %s56, %s58
    %p62 = scmp.eq.s32.totalorder %s10, 0
    %p63 = por %p61, %p62
    %p64 = scmp.ne.s32.totalorder %s56, %s58
    %p65 = scmp.eq.s32.totalorder %s15, 1
    %p66 = por %p64, %p65
    %p67 = scmp.ne.s32.totalorder %s58, %s59
    %p68 = scmp.eq.s32.totalorder %s15, 0
    %p69 = por %p67, %p68
    %p70 = scmp.ne.s32.totalorder %s58, %s59
    %p71 = scmp.eq.s32.totalorder %s16, 1
    %p72 = por %p70, %p71
    %p74 = scmp.ne.s32.totalorder %s59, %s73
    %p75 = scmp.eq.s32.totalorder %s16, 0
    %p76 = por %p74, %p75
    %s78 = sadd.s32 %s77, 1
    %p81 = scmp.eq.s32.totalorder %s10, 1
    %p82 = scmp.ne.s32.totalorder %s77, %s79
    %p83 = scmp.eq.s32.totalorder %s10, 0
    %p84 = por %p82, %p83
    %p85 = scmp.ne.s32.totalorder %s77, %s79
    %p86 = scmp.eq.s32.totalorder %s15, 1
    %p87 = por %p85, %p86
    %p88 = scmp.ne.s32.totalorder %s79, %s80
    %p89 = scmp.eq.s32.totalorder %s15, 0
    %p90 = por %p88, %p89
    %p91 = scmp.ne.s32.totalorder %s79, %s80
    %p92 = scmp.eq.s32.totalorder %s16, 1
    %p93 = por %p91, %p92
    %p95 = scmp.ne.s32.totalorder %s80, %s94
    %p96 = scmp.eq.s32.totalorder %s16, 0
    %p97 = por %p95, %p96
    %s99 = sadd.s32 %s98, 1
    %p102 = scmp.eq.s32.totalorder %s10, 1
    %p103 = scmp.ne.s32.totalorder %s98, %s100
    %p104 = scmp.eq.s32.totalorder %s10, 0
    %p105 = por %p103, %p104
    %p106 = scmp.ne.s32.totalorder %s98, %s100
    %p107 = scmp.eq.s32.totalorder %s15, 1
    %p108 = por %p106, %p107
    %p109 = scmp.ne.s32.totalorder %s100, %s101
    %p110 = scmp.eq.s32.totalorder %s15, 0
    %p111 = por %p109, %p110
    %p112 = scmp.ne.s32.totalorder %s100, %s101
    %p113 = scmp.eq.s32.totalorder %s16, 1
    %p114 = por %p112, %p113
    %p116 = scmp.ne.s32.totalorder %s101, %s115
    %p117 = scmp.eq.s32.totalorder %s16, 0
    %p118 = por %p116, %p117
    %s119 = ssub.s32 %s17, %s29
    %s120 = ssub.s32 %s18, %s25
    %s121 = sor.u32 %s119, %s120
    %p122 = scmp.eq.s32.totalorder %s121, 0
    %s124 = sadd.s32 %s123, 1
    %s125 = scalar_select %p122, %s123, %s124
    %p128 = pneg %p122
    %p129 = scmp.eq.s32.totalorder %s10, 1
    %p130 = por %p128, %p129
    %p131 = scmp.ne.s32.totalorder %s123, %s126
    %p132 = scmp.eq.s32.totalorder %s10, 0
    %p133 = por %p131, %p132
    %p134 = scmp.ne.s32.totalorder %s123, %s126
    %p135 = scmp.eq.s32.totalorder %s15, 1
    %p136 = por %p134, %p135
    %p137 = scmp.ne.s32.totalorder %s126, %s127
    %p138 = scmp.eq.s32.totalorder %s15, 0
    %p139 = por %p137, %p138
    %p140 = scmp.ne.s32.totalorder %s126, %s127
    %p141 = scmp.eq.s32.totalorder %s16, 1
    %p142 = por %p140, %p141
    %p144 = scmp.ne.s32.totalorder %s127, %s143
    %p145 = scmp.eq.s32.totalorder %s16, 0
    %p146 = por %p144, %p145
    %p147 = scmp.le.s32.totalorder 1, %s10
    %p148 = scmp.lt.s32.totalorder %s10, 3
    %p149 = pnand %p147, %p148
    %p150 = pneg %p149
    // Predicated region
    $region9: #{tpu_custom_call.1} parent=5 // pred_check
      _
    $region10: #{tpu_custom_call.1} parent=5 // pred_check_branch
      %152 = sbr.rel (%p149) target = $region12
    $region11: #{tpu_custom_call.1} parent=5 // pred_region
      %s153 = ssub.s32 %s10, 1
      // Predicated region
      $region13: #{tpu_custom_call.1} parent=11 // pred_check
        %p154 = pneg %p69
      $region14: #{tpu_custom_call.1} parent=11 // pred_check_branch
        %156 = sbr.rel (%p154) target = $region16
      $region15: #{tpu_custom_call.1} parent=11 // pred_region
        _
      $region16: #{tpu_custom_call.1} parent=11 // pred_fallthru
        _
      // Predicated region
      $region17: #{tpu_custom_call.1} parent=11 // pred_check
        %p157 = pneg %p90
      $region18: #{tpu_custom_call.1} parent=11 // pred_check_branch
        %159 = sbr.rel (%p157) target = $region20
      $region19: #{tpu_custom_call.1} parent=11 // pred_region
        _
      $region20: #{tpu_custom_call.1} parent=11 // pred_fallthru
        _
      // Predicated region
      $region21: #{tpu_custom_call.1} parent=11 // pred_check
        %p160 = pneg %p111
      $region22: #{tpu_custom_call.1} parent=11 // pred_check_branch
        %162 = sbr.rel (%p160) target = $region24
      $region23: #{tpu_custom_call.1} parent=11 // pred_region
        _
      $region24: #{tpu_custom_call.1} parent=11 // pred_fallthru
        _
    $region12: #{tpu_custom_call.1} parent=5 // pred_fallthru
      _
    %p163 = scmp.lt.s32.totalorder %s10, 2
    // Predicated region
    $region25: #{tpu_custom_call.1} parent=5 // pred_check
      %p164 = pneg %p163
    $region26: #{tpu_custom_call.1} parent=5 // pred_check_branch
      %166 = sbr.rel (%p164) target = $region28
    $region27: #{tpu_custom_call.1} parent=5 // pred_region
      // Predicated region
      $region29: #{tpu_custom_call.1} parent=27 // pred_check
        %p167 = pneg %p42
      $region30: #{tpu_custom_call.1} parent=27 // pred_check_branch
        %169 = sbr.rel (%p167) target = $region32
      $region31: #{tpu_custom_call.1} parent=27 // pred_region
        %p170 = scmp.lt.s32.totalorder %s17, 1
        %s171 = scalar_select %p170, %s17, 1
        %s172 = smul.addr %s171, 12
        %s173 = smul.addr %s172, 8
        %s174 = scalar_lea.vmem %s0, %s173
      $region32: #{tpu_custom_call.1} parent=27 // pred_fallthru
        _
    $region28: #{tpu_custom_call.1} parent=5 // pred_fallthru
      _
    %p175 = scmp.le.s32.totalorder 1, %s10
    %p176 = scmp.lt.s32.totalorder %s10, 3
    %p177 = pnand %p175, %p176
    %p178 = pneg %p177
    // Predicated region
    $region33: #{tpu_custom_call.1} parent=5 // pred_check
      _
    $region34: #{tpu_custom_call.1} parent=5 // pred_check_branch
      %180 = sbr.rel (%p177) target = $region36
    $region35: #{tpu_custom_call.1} parent=5 // pred_region
      %s181 = ssub.s32 %s10, 1
      %p182 = scmp.lt.s32.totalorder %s19, 1
      %s183 = scalar_select %p182, %s19, 1
      %s184 = smul.addr %s183, 12
      %s185 = smul.addr %s184, 8
      %s186 = scalar_lea.vmem %s0, %s185
      %p187 = pneg %p48
      %p188 = pneg %p45
      %p189 = pneg %p69
      %p190 = pneg %p66
      %p191 = pneg %p90
      %p192 = pneg %p87
      %p193 = pneg %p111
      %p194 = pneg %p108
      %p195 = pneg %p139
      %p196 = pneg %p136
      %s197 = smul.u32 3, %s20
      %p198 = scmp.lt.s32.totalorder %s19, 1
      %s199 = scalar_select %p198, %s19, 1
      %p200 = scmp.lt.s32.totalorder %s197, 2
      %s201 = scalar_select %p200, %s197, 2
      %s202 = smul.addr %s199, 48
      %s203 = sadd.s32 %s201, %s202
      %s204 = smul.addr %s203, 8
      %s205 = scalar_lea.vmem %s4, %s204
      %p206 = scmp.lt.s32.totalorder %s19, 1
      %s207 = scalar_select %p206, %s19, 1
      %s208 = smul.addr %s207, 12
      %s209 = smul.addr %s208, 8
      %s210 = scalar_lea.vmem %s0, %s209
      %s211 = smul.u32 3, %s20
      %p212 = scmp.lt.s32.totalorder %s19, 1
      %s213 = scalar_select %p212, %s19, 1
      %p214 = scmp.lt.s32.totalorder %s211, 2
      %s215 = scalar_select %p214, %s211, 2
      %s216 = smul.addr %s213, 48
      %s217 = sadd.s32 %s215, %s216
      %s218 = smul.addr %s217, 8
      %s219 = scalar_lea.vmem %s4, %s218
      %s220 = smul.u32 3, %s20
      %s221 = smul.u32 %s20, 17
      %s222 = scalar_lea.vmem %s210, %s221
      %v223 = vld [vmem:[%s222] sm:$0xff]
      %v224 = vld [vmem:[%s222 + $0x8] sm:$0xff]
      %v225 = vld [vmem:[%s222 + $0x10] sm:$0x1]
      %v226 = vld [vmem:[%s222 + $0x18] sm:$0xff]
      %v227 = vld [vmem:[%s222 + $0x20] sm:$0xff]
      %v228 = vld [vmem:[%s222 + $0x28] sm:$0x1]
      %v229 = vld [vmem:[%s222 + $0x30] sm:$0xff]
      %v230 = vld [vmem:[%s222 + $0x38] sm:$0xff]
      %v231 = vld [vmem:[%s222 + $0x40] sm:$0x1]
      %v232 = vld [vmem:[%s222 + $0x48] sm:$0xff]
      %v233 = vld [vmem:[%s222 + $0x50] sm:$0xff]
      %v234 = vld [vmem:[%s222 + $0x58] sm:$0x1]
      %v239 = vrot.slane %v226, 7
      %vm240 = vcmask 1041409
      %v241 = vsel %vm240, %v239, %v223
      %v242 = vrot.slane %v229, 6
      %vm243 = vcmask 1042434
      %v244 = vsel %vm243, %v242, %v241
      %v245 = vrot.slane %v232, 5
      %vm246 = vcmask 1043459
      %v247 = vsel %vm246, %v245, %v244
      %vm249 = vcmask 134144
      %250 = vst.msk [vmem:[#allocation2] sm:$0xf] %vm249, %v247
      %v251 = vrot.slane %v223, 1
      %v252 = vsel %vm240, %v226, %v251
      %v253 = vrot.slane %v229, 7
      %v254 = vsel %vm243, %v253, %v252
      %v255 = vrot.slane %v232, 6
      %v256 = vsel %vm246, %v255, %v254
      %257 = vrot.lane.b32.xlu0 %v256, 17
      %v258 = vpop.permute.xlu0 %257
      %vm260 = vcmask 273544
      %261 = vst.msk [vmem:[#allocation2] sm:$0xf] %vm260, %v258
      %v262 = vrot.slane %v223, 2
      %v263 = vrot.slane %v226, 1
      %v264 = vsel %vm240, %v263, %v262
      %v265 = vsel %vm243, %v229, %v264
      %v266 = vrot.slane %v232, 7
      %v267 = vsel %vm246, %v266, %v265
      %268 = vrot.lane.b32.xlu0 %v267, 34
      %v269 = vpop.permute.xlu0 %268
      %vm271 = vcmask 412944
      %272 = vst.msk [vmem:[#allocation2] sm:$0xf] %vm271, %v269
      %v273 = vrot.slane %v223, 3
      %v274 = vrot.slane %v226, 2
      %v275 = vsel %vm240, %v274, %v273
      %v276 = vrot.slane %v229, 1
      %v277 = vsel %vm243, %v276, %v275
      %v278 = vsel %vm246, %v232, %v277
      %279 = vrot.lane.b32.xlu0 %v278, 51
      %v280 = vpop.permute.xlu0 %279
      %vm282 = vcmask 552344
      %283 = vst.msk [vmem:[#allocation2] sm:$0xf] %vm282, %v280
      %v284 = vrot.slane %v223, 4
      %v285 = vrot.slane %v226, 3
      %v286 = vsel %vm240, %v285, %v284
      %v287 = vrot.slane %v229, 2
      %v288 = vsel %vm243, %v287, %v286
      %v289 = vrot.slane %v232, 1
      %v290 = vsel %vm246, %v289, %v288
      %291 = vrot.lane.b32.xlu0 %v290, 68
      %v292 = vpop.permute.xlu0 %291
      %vm294 = vcmask 691744
      %295 = vst.msk [vmem:[#allocation2] sm:$0xf] %vm294, %v292
      %v296 = vrot.slane %v223, 5
      %v297 = vrot.slane %v226, 4
      %v298 = vsel %vm240, %v297, %v296
      %v299 = vrot.slane %v229, 3
      %v300 = vsel %vm243, %v299, %v298
      %v301 = vrot.slane %v232, 2
      %v302 = vsel %vm246, %v301, %v300
      %303 = vrot.lane.b32.xlu0 %v302, 85
      %v304 = vpop.permute.xlu0 %303
      %vm306 = vcmask 831144
      %307 = vst.msk [vmem:[#allocation2] sm:$0xf] %vm306, %v304
      %v308 = vrot.slane %v223, 6
      %v309 = vrot.slane %v226, 5
      %v310 = vsel %vm240, %v309, %v308
      %v311 = vrot.slane %v229, 4
      %v312 = vsel %vm243, %v311, %v310
      %v313 = vrot.slane %v232, 3
      %v314 = vsel %vm246, %v313, %v312
      %315 = vrot.lane.b32.xlu0 %v314, 102
      %v316 = vpop.permute.xlu0 %315
      %vm318 = vcmask 970544
      %319 = vst.msk [vmem:[#allocation2] sm:$0xf] %vm318, %v316
      %v320 = vrot.slane %v223, 7
      %v321 = vrot.slane %v226, 6
      %v322 = vsel %vm240, %v321, %v320
      %v323 = vrot.slane %v229, 5
      %v324 = vsel %vm243, %v323, %v322
      %v325 = vrot.slane %v232, 4
      %v326 = vsel %vm246, %v325, %v324
      %327 = vrot.lane.b32.xlu0 %v326, 119
      %v328 = vpop.permute.xlu0 %327
      %vm330 = vcmask 1044408
      %331 = vst.msk [vmem:[#allocation2] sm:$0xf] %vm330, %v328
      %vm332 = vcmask 60416
      %333 = vst.msk [vmem:[#allocation2 + $0x8] sm:$0xf] %vm332, %v328
      %v338 = vrot.slane %v227, 7
      %v339 = vsel %vm240, %v338, %v224
      %v340 = vrot.slane %v230, 6
      %v341 = vsel %vm243, %v340, %v339
      %v342 = vrot.slane %v233, 5
      %v343 = vsel %vm246, %v342, %v341
      %344 = vrot.lane.b32.xlu0 %v343, 8
      %v345 = vpop.permute.xlu0 %344
      %vm347 = vcmask 199744
      %348 = vst.msk [vmem:[#allocation2 + $0x8] sm:$0xf] %vm347, %v345
      %v349 = vrot.slane %v224, 1
      %v350 = vsel %vm240, %v227, %v349
      %v351 = vrot.slane %v230, 7
      %v352 = vsel %vm243, %v351, %v350
      %v353 = vrot.slane %v233, 6
      %v354 = vsel %vm246, %v353, %v352
      %355 = vrot.lane.b32.xlu0 %v354, 25
      %v356 = vpop.permute.xlu0 %355
      %vm358 = vcmask 339144
      %359 = vst.msk [vmem:[#allocation2 + $0x8] sm:$0xf] %vm358, %v356
      %v360 = vrot.slane %v224, 2
      %v361 = vrot.slane %v227, 1
      %v362 = vsel %vm240, %v361, %v360
      %v363 = vsel %vm243, %v230, %v362
      %v364 = vrot.slane %v233, 7
      %v365 = vsel %vm246, %v364, %v363
      %366 = vrot.lane.b32.xlu0 %v365, 42
      %v367 = vpop.permute.xlu0 %366
      %vm369 = vcmask 478544
      %370 = vst.msk [vmem:[#allocation2 + $0x8] sm:$0xf] %vm369, %v367
      %v371 = vrot.slane %v224, 3
      %v372 = vrot.slane %v227, 2
      %v373 = vsel %vm240, %v372, %v371
      %v374 = vrot.slane %v230, 1
      %v375 = vsel %vm243, %v374, %v373
      %v376 = vsel %vm246, %v233, %v375
      %377 = vrot.lane.b32.xlu0 %v376, 59
      %v378 = vpop.permute.xlu0 %377
      %vm380 = vcmask 617944
      %381 = vst.msk [vmem:[#allocation2 + $0x8] sm:$0xf] %vm380, %v378
      %v382 = vrot.slane %v224, 4
      %v383 = vrot.slane %v227, 3
      %v384 = vsel %vm240, %v383, %v382
      %v385 = vrot.slane %v230, 2
      %v386 = vsel %vm243, %v385, %v384
      %v387 = vrot.slane %v233, 1
      %v388 = vsel %vm246, %v387, %v386
      %389 = vrot.lane.b32.xlu0 %v388, 76
      %v390 = vpop.permute.xlu0 %389
      %vm392 = vcmask 757344
      %393 = vst.msk [vmem:[#allocation2 + $0x8] sm:$0xf] %vm392, %v390
      %v394 = vrot.slane %v224, 5
      %v395 = vrot.slane %v227, 4
      %v396 = vsel %vm240, %v395, %v394
      %v397 = vrot.slane %v230, 3
      %v398 = vsel %vm243, %v397, %v396
      %v399 = vrot.slane %v233, 2
      %v400 = vsel %vm246, %v399, %v398
      %401 = vrot.lane.b32.xlu0 %v400, 93
      %v402 = vpop.permute.xlu0 %401
      %vm404 = vcmask 896744
      %405 = vst.msk [vmem:[#allocation2 + $0x8] sm:$0xf] %vm404, %v402
      %v406 = vrot.slane %v224, 6
      %v407 = vrot.slane %v227, 5
      %v408 = vsel %vm240, %v407, %v406
      %v409 = vrot.slane %v230, 4
      %v410 = vsel %vm243, %v409, %v408
      %v411 = vrot.slane %v233, 3
      %v412 = vsel %vm246, %v411, %v410
      %413 = vrot.lane.b32.xlu0 %v412, 110
      %v414 = vpop.permute.xlu0 %413
      %vm416 = vcmask 1036144
      %417 = vst.msk [vmem:[#allocation2 + $0x8] sm:$0xf] %vm416, %v414
      %v418 = vrot.slane %v224, 7
      %v419 = vrot.slane %v227, 6
      %v420 = vsel %vm240, %v419, %v418
      %v421 = vrot.slane %v230, 5
      %v422 = vsel %vm243, %v421, %v420
      %v423 = vrot.slane %v233, 4
      %v424 = vsel %vm246, %v423, %v422
      %425 = vrot.lane.b32.xlu0 %v424, 127
      %v426 = vpop.permute.xlu0 %425
      %vm428 = vcmask 1044472
      %429 = vst.msk [vmem:[#allocation2 + $0x8] sm:$0xf] %vm428, %v426
      %vm430 = vcmask 125952
      %431 = vst.msk [vmem:[#allocation2 + $0x10] sm:$0xf] %vm430, %v426
      %v436 = vrot.slane %v228, 7
      %v437 = vsel %vm240, %v436, %v225
      %v438 = vrot.slane %v231, 6
      %v439 = vsel %vm243, %v438, %v437
      %v440 = vrot.slane %v234, 5
      %v441 = vsel %vm246, %v440, %v439
      %442 = vrot.lane.b32.xlu0 %v441, 16
      %v443 = vpop.permute.xlu0 %442
      %vm445 = vcmask 265344
      %446 = vst.msk [vmem:[#allocation2 + $0x10] sm:$0xf] %vm445, %v443
      %v447 = vld [vmem:[%s222] sm:$0xff]
      %v448 = vld [vmem:[%s222 + $0x8] sm:$0xff]
      %v449 = vld [vmem:[%s222 + $0x10] sm:$0x1]
      %v450 = vld [vmem:[%s222 + $0x18] sm:$0xff]
      %v451 = vld [vmem:[%s222 + $0x20] sm:$0xff]
      %v452 = vld [vmem:[%s222 + $0x28] sm:$0x1]
      %v453 = vld [vmem:[%s222 + $0x30] sm:$0xff]
      %v454 = vld [vmem:[%s222 + $0x38] sm:$0xff]
      %v455 = vld [vmem:[%s222 + $0x40] sm:$0x1]
      %v456 = vld [vmem:[%s222 + $0x48] sm:$0xff]
      %v457 = vld [vmem:[%s222 + $0x50] sm:$0xff]
      %v458 = vld [vmem:[%s222 + $0x58] sm:$0x1]
      %v463 = vrot.slane %v447, 4
      %v464 = vrot.slane %v450, 3
      %vm465 = vcmask 1045509
      %v466 = vsel %vm465, %v464, %v463
      %v467 = vrot.slane %v453, 2
      %vm468 = vcmask 1046534
      %v469 = vsel %vm468, %v467, %v466
      %v470 = vrot.slane %v456, 1
      %vm471 = vcmask 1047559
      %v472 = vsel %vm471, %v470, %v469
      %473 = vrot.lane.b32.xlu0 %v472, 127
      %v474 = vpop.permute.xlu0 %473
      %vm476 = vcmask 138244
      %477 = vst.msk [vmem:[#allocation2] sm:$0xf0] %vm476, %v474
      %v478 = vrot.slane %v447, 5
      %v479 = vrot.slane %v450, 4
      %v480 = vsel %vm465, %v479, %v478
      %v481 = vrot.slane %v453, 3
      %v482 = vsel %vm468, %v481, %v480
      %v483 = vrot.slane %v456, 2
      %v484 = vsel %vm471, %v483, %v482
      %485 = vrot.lane.b32.xlu0 %v484, 16
      %v486 = vpop.permute.xlu0 %485
      %vm488 = vcmask 277644
      %489 = vst.msk [vmem:[#allocation2] sm:$0xf0] %vm488, %v486
      %v490 = vrot.slane %v447, 6
      %v491 = vrot.slane %v450, 5
      %v492 = vsel %vm465, %v491, %v490
      %v493 = vrot.slane %v453, 4
      %v494 = vsel %vm468, %v493, %v492
      %v495 = vrot.slane %v456, 3
      %v496 = vsel %vm471, %v495, %v494
      %497 = vrot.lane.b32.xlu0 %v496, 33
      %v498 = vpop.permute.xlu0 %497
      %vm500 = vcmask 417044
      %501 = vst.msk [vmem:[#allocation2] sm:$0xf0] %vm500, %v498
      %v502 = vrot.slane %v447, 7
      %v503 = vrot.slane %v450, 6
      %v504 = vsel %vm465, %v503, %v502
      %v505 = vrot.slane %v453, 5
      %v506 = vsel %vm468, %v505, %v504
      %v507 = vrot.slane %v456, 4
      %v508 = vsel %vm471, %v507, %v506
      %509 = vrot.lane.b32.xlu0 %v508, 50
      %v510 = vpop.permute.xlu0 %509
      %vm512 = vcmask 556444
      %513 = vst.msk [vmem:[#allocation2] sm:$0xf0] %vm512, %v510
      %v514 = vrot.slane %v450, 7
      %v515 = vsel %vm465, %v514, %v447
      %v516 = vrot.slane %v453, 6
      %v517 = vsel %vm468, %v516, %v515
      %v518 = vrot.slane %v456, 5
      %v519 = vsel %vm471, %v518, %v517
      %520 = vrot.lane.b32.xlu0 %v519, 67
      %v521 = vpop.permute.xlu0 %520
      %vm523 = vcmask 695844
      %524 = vst.msk [vmem:[#allocation2] sm:$0xf0] %vm523, %v521
      %v525 = vrot.slane %v447, 1
      %v526 = vsel %vm465, %v450, %v525
      %v527 = vrot.slane %v453, 7
      %v528 = vsel %vm468, %v527, %v526
      %v529 = vrot.slane %v456, 6
      %v530 = vsel %vm471, %v529, %v528
      %531 = vrot.lane.b32.xlu0 %v530, 84
      %v532 = vpop.permute.xlu0 %531
      %vm534 = vcmask 835244
      %535 = vst.msk [vmem:[#allocation2] sm:$0xf0] %vm534, %v532
      %v536 = vrot.slane %v447, 2
      %v537 = vrot.slane %v450, 1
      %v538 = vsel %vm465, %v537, %v536
      %v539 = vsel %vm468, %v453, %v538
      %v540 = vrot.slane %v456, 7
      %v541 = vsel %vm471, %v540, %v539
      %542 = vrot.lane.b32.xlu0 %v541, 101
      %v543 = vpop.permute.xlu0 %542
      %vm545 = vcmask 974644
      %546 = vst.msk [vmem:[#allocation2] sm:$0xf0] %vm545, %v543
      %v547 = vrot.slane %v447, 3
      %v548 = vrot.slane %v450, 2
      %v549 = vsel %vm465, %v548, %v547
      %v550 = vrot.slane %v453, 1
      %v551 = vsel %vm468, %v550, %v549
      %v552 = vsel %vm471, %v456, %v551
      %553 = vrot.lane.b32.xlu0 %v552, 118
      %v554 = vpop.permute.xlu0 %553
      %vm556 = vcmask 1048508
      %557 = vst.msk [vmem:[#allocation2] sm:$0xf0] %vm556, %v554
      %vm558 = vcmask 64516
      %559 = vst.msk [vmem:[#allocation2 + $0x8] sm:$0xf0] %vm558, %v554
      %v564 = vrot.slane %v448, 4
      %v565 = vrot.slane %v451, 3
      %v566 = vsel %vm465, %v565, %v564
      %v567 = vrot.slane %v454, 2
      %v568 = vsel %vm468, %v567, %v566
      %v569 = vrot.slane %v457, 1
      %v570 = vsel %vm471, %v569, %v568
      %571 = vrot.lane.b32.xlu0 %v570, 7
      %v572 = vpop.permute.xlu0 %571
      %vm574 = vcmask 203844
      %575 = vst.msk [vmem:[#allocation2 + $0x8] sm:$0xf0] %vm574, %v572
      %v576 = vrot.slane %v448, 5
      %v577 = vrot.slane %v451, 4
      %v578 = vsel %vm465, %v577, %v576
      %v579 = vrot.slane %v454, 3
      %v580 = vsel %vm468, %v579, %v578
      %v581 = vrot.slane %v457, 2
      %v582 = vsel %vm471, %v581, %v580
      %583 = vrot.lane.b32.xlu0 %v582, 24
      %v584 = vpop.permute.xlu0 %583
      %vm586 = vcmask 343244
      %587 = vst.msk [vmem:[#allocation2 + $0x8] sm:$0xf0] %vm586, %v584
      %v588 = vrot.slane %v448, 6
      %v589 = vrot.slane %v451, 5
      %v590 = vsel %vm465, %v589, %v588
      %v591 = vrot.slane %v454, 4
      %v592 = vsel %vm468, %v591, %v590
      %v593 = vrot.slane %v457, 3
      %v594 = vsel %vm471, %v593, %v592
      %595 = vrot.lane.b32.xlu0 %v594, 41
      %v596 = vpop.permute.xlu0 %595
      %vm598 = vcmask 482644
      %599 = vst.msk [vmem:[#allocation2 + $0x8] sm:$0xf0] %vm598, %v596
      %v600 = vrot.slane %v448, 7
      %v601 = vrot.slane %v451, 6
      %v602 = vsel %vm465, %v601, %v600
      %v603 = vrot.slane %v454, 5
      %v604 = vsel %vm468, %v603, %v602
      %v605 = vrot.slane %v457, 4
      %v606 = vsel %vm471, %v605, %v604
      %607 = vrot.lane.b32.xlu0 %v606, 58
      %v608 = vpop.permute.xlu0 %607
      %vm610 = vcmask 622044
      %611 = vst.msk [vmem:[#allocation2 + $0x8] sm:$0xf0] %vm610, %v608
      %v612 = vrot.slane %v451, 7
      %v613 = vsel %vm465, %v612, %v448
      %v614 = vrot.slane %v454, 6
      %v615 = vsel %vm468, %v614, %v613
      %v616 = vrot.slane %v457, 5
      %v617 = vsel %vm471, %v616, %v615
      %618 = vrot.lane.b32.xlu0 %v617, 75
      %v619 = vpop.permute.xlu0 %618
      %vm621 = vcmask 761444
      %622 = vst.msk [vmem:[#allocation2 + $0x8] sm:$0xf0] %vm621, %v619
      %v623 = vrot.slane %v448, 1
      %v624 = vsel %vm465, %v451, %v623
      %v625 = vrot.slane %v454, 7
      %v626 = vsel %vm468, %v625, %v624
      %v627 = vrot.slane %v457, 6
      %v628 = vsel %vm471, %v627, %v626
      %629 = vrot.lane.b32.xlu0 %v628, 92
      %v630 = vpop.permute.xlu0 %629
      %vm632 = vcmask 900844
      %633 = vst.msk [vmem:[#allocation2 + $0x8] sm:$0xf0] %vm632, %v630
      %v634 = vrot.slane %v448, 2
      %v635 = vrot.slane %v451, 1
      %v636 = vsel %vm465, %v635, %v634
      %v637 = vsel %vm468, %v454, %v636
      %v638 = vrot.slane %v457, 7
      %v639 = vsel %vm471, %v638, %v637
      %640 = vrot.lane.b32.xlu0 %v639, 109
      %v641 = vpop.permute.xlu0 %640
      %vm643 = vcmask 1040244
      %644 = vst.msk [vmem:[#allocation2 + $0x8] sm:$0xf0] %vm643, %v641
      %v645 = vrot.slane %v448, 3
      %v646 = vrot.slane %v451, 2
      %v647 = vsel %vm465, %v646, %v645
      %v648 = vrot.slane %v454, 1
      %v649 = vsel %vm468, %v648, %v647
      %v650 = vsel %vm471, %v457, %v649
      %651 = vrot.lane.b32.xlu0 %v650, 126
      %v652 = vpop.permute.xlu0 %651
      %vm654 = vcmask 1048572
      %655 = vst.msk [vmem:[#allocation2 + $0x8] sm:$0xf0] %vm654, %v652
      %vm656 = vcmask 130052
      %657 = vst.msk [vmem:[#allocation2 + $0x10] sm:$0xf0] %vm656, %v652
      %v662 = vrot.slane %v449, 4
      %v663 = vrot.slane %v452, 3
      %v664 = vsel %vm465, %v663, %v662
      %v665 = vrot.slane %v455, 2
      %v666 = vsel %vm468, %v665, %v664
      %v667 = vrot.slane %v458, 1
      %v668 = vsel %vm471, %v667, %v666
      %669 = vrot.lane.b32.xlu0 %v668, 15
      %v670 = vpop.permute.xlu0 %669
      %vm672 = vcmask 269444
      %673 = vst.msk [vmem:[#allocation2 + $0x10] sm:$0xf0] %vm672, %v670
      %s674 = sadd.s32 %s221, 1
      %s675 = scalar_lea.vmem %s210, %s674
      %v676 = vld [vmem:[%s675] sm:$0xff]
      %v677 = vld [vmem:[%s675 + $0x8] sm:$0xff]
      %v678 = vld [vmem:[%s675 + $0x10] sm:$0x1]
      %v679 = vld [vmem:[%s675 + $0x18] sm:$0xff]
      %v680 = vld [vmem:[%s675 + $0x20] sm:$0xff]
      %v681 = vld [vmem:[%s675 + $0x28] sm:$0x1]
      %v682 = vld [vmem:[%s675 + $0x30] sm:$0xff]
      %v683 = vld [vmem:[%s675 + $0x38] sm:$0xff]
      %v684 = vld [vmem:[%s675 + $0x40] sm:$0x1]
      %v685 = vld [vmem:[%s675 + $0x48] sm:$0xff]
      %v686 = vld [vmem:[%s675 + $0x50] sm:$0xff]
      %v687 = vld [vmem:[%s675 + $0x58] sm:$0x1]
      %v692 = vrot.slane %v679, 7
      %v693 = vsel %vm240, %v692, %v676
      %v694 = vrot.slane %v682, 6
      %v695 = vsel %vm243, %v694, %v693
      %v696 = vrot.slane %v685, 5
      %v697 = vsel %vm246, %v696, %v695
      %699 = vst.msk [vmem:[#allocation2 + $0x18] sm:$0xf] %vm249, %v697
      %v700 = vrot.slane %v676, 1
      %v701 = vsel %vm240, %v679, %v700
      %v702 = vrot.slane %v682, 7
      %v703 = vsel %vm243, %v702, %v701
      %v704 = vrot.slane %v685, 6
      %v705 = vsel %vm246, %v704, %v703
      %706 = vrot.lane.b32.xlu0 %v705, 17
      %v707 = vpop.permute.xlu0 %706
      %709 = vst.msk [vmem:[#allocation2 + $0x18] sm:$0xf] %vm260, %v707
      %v710 = vrot.slane %v676, 2
      %v711 = vrot.slane %v679, 1
      %v712 = vsel %vm240, %v711, %v710
      %v713 = vsel %vm243, %v682, %v712
      %v714 = vrot.slane %v685, 7
      %v715 = vsel %vm246, %v714, %v713
      %716 = vrot.lane.b32.xlu0 %v715, 34
      %v717 = vpop.permute.xlu0 %716
      %719 = vst.msk [vmem:[#allocation2 + $0x18] sm:$0xf] %vm271, %v717
      %v720 = vrot.slane %v676, 3
      %v721 = vrot.slane %v679, 2
      %v722 = vsel %vm240, %v721, %v720
      %v723 = vrot.slane %v682, 1
      %v724 = vsel %vm243, %v723, %v722
      %v725 = vsel %vm246, %v685, %v724
      %726 = vrot.lane.b32.xlu0 %v725, 51
      %v727 = vpop.permute.xlu0 %726
      %729 = vst.msk [vmem:[#allocation2 + $0x18] sm:$0xf] %vm282, %v727
      %v730 = vrot.slane %v676, 4
      %v731 = vrot.slane %v679, 3
      %v732 = vsel %vm240, %v731, %v730
      %v733 = vrot.slane %v682, 2
      %v734 = vsel %vm243, %v733, %v732
      %v735 = vrot.slane %v685, 1
      %v736 = vsel %vm246, %v735, %v734
      %737 = vrot.lane.b32.xlu0 %v736, 68
      %v738 = vpop.permute.xlu0 %737
      %740 = vst.msk [vmem:[#allocation2 + $0x18] sm:$0xf] %vm294, %v738
      %v741 = vrot.slane %v676, 5
      %v742 = vrot.slane %v679, 4
      %v743 = vsel %vm240, %v742, %v741
      %v744 = vrot.slane %v682, 3
      %v745 = vsel %vm243, %v744, %v743
      %v746 = vrot.slane %v685, 2
      %v747 = vsel %vm246, %v746, %v745
      %748 = vrot.lane.b32.xlu0 %v747, 85
      %v749 = vpop.permute.xlu0 %748
      %751 = vst.msk [vmem:[#allocation2 + $0x18] sm:$0xf] %vm306, %v749
      %v752 = vrot.slane %v676, 6
      %v753 = vrot.slane %v679, 5
      %v754 = vsel %vm240, %v753, %v752
      %v755 = vrot.slane %v682, 4
      %v756 = vsel %vm243, %v755, %v754
      %v757 = vrot.slane %v685, 3
      %v758 = vsel %vm246, %v757, %v756
      %759 = vrot.lane.b32.xlu0 %v758, 102
      %v760 = vpop.permute.xlu0 %759
      %762 = vst.msk [vmem:[#allocation2 + $0x18] sm:$0xf] %vm318, %v760
      %v763 = vrot.slane %v676, 7
      %v764 = vrot.slane %v679, 6
      %v765 = vsel %vm240, %v764, %v763
      %v766 = vrot.slane %v682, 5
      %v767 = vsel %vm243, %v766, %v765
      %v768 = vrot.slane %v685, 4
      %v769 = vsel %vm246, %v768, %v767
      %770 = vrot.lane.b32.xlu0 %v769, 119
      %v771 = vpop.permute.xlu0 %770
      %773 = vst.msk [vmem:[#allocation2 + $0x18] sm:$0xf] %vm330, %v771
      %774 = vst.msk [vmem:[#allocation2 + $0x20] sm:$0xf] %vm332, %v771
      %v779 = vrot.slane %v680, 7
      %v780 = vsel %vm240, %v779, %v677
      %v781 = vrot.slane %v683, 6
      %v782 = vsel %vm243, %v781, %v780
      %v783 = vrot.slane %v686, 5
      %v784 = vsel %vm246, %v783, %v782
      %785 = vrot.lane.b32.xlu0 %v784, 8
      %v786 = vpop.permute.xlu0 %785
      %788 = vst.msk [vmem:[#allocation2 + $0x20] sm:$0xf] %vm347, %v786
      %v789 = vrot.slane %v677, 1
      %v790 = vsel %vm240, %v680, %v789
      %v791 = vrot.slane %v683, 7
      %v792 = vsel %vm243, %v791, %v790
      %v793 = vrot.slane %v686, 6
      %v794 = vsel %vm246, %v793, %v792
      %795 = vrot.lane.b32.xlu0 %v794, 25
      %v796 = vpop.permute.xlu0 %795
      %798 = vst.msk [vmem:[#allocation2 + $0x20] sm:$0xf] %vm358, %v796
      %v799 = vrot.slane %v677, 2
      %v800 = vrot.slane %v680, 1
      %v801 = vsel %vm240, %v800, %v799
      %v802 = vsel %vm243, %v683, %v801
      %v803 = vrot.slane %v686, 7
      %v804 = vsel %vm246, %v803, %v802
      %805 = vrot.lane.b32.xlu0 %v804, 42
      %v806 = vpop.permute.xlu0 %805
      %808 = vst.msk [vmem:[#allocation2 + $0x20] sm:$0xf] %vm369, %v806
      %v809 = vrot.slane %v677, 3
      %v810 = vrot.slane %v680, 2
      %v811 = vsel %vm240, %v810, %v809
      %v812 = vrot.slane %v683, 1
      %v813 = vsel %vm243, %v812, %v811
      %v814 = vsel %vm246, %v686, %v813
      %815 = vrot.lane.b32.xlu0 %v814, 59
      %v816 = vpop.permute.xlu0 %815
      %818 = vst.msk [vmem:[#allocation2 + $0x20] sm:$0xf] %vm380, %v816
      %v819 = vrot.slane %v677, 4
      %v820 = vrot.slane %v680, 3
      %v821 = vsel %vm240, %v820, %v819
      %v822 = vrot.slane %v683, 2
      %v823 = vsel %vm243, %v822, %v821
      %v824 = vrot.slane %v686, 1
      %v825 = vsel %vm246, %v824, %v823
      %826 = vrot.lane.b32.xlu0 %v825, 76
      %v827 = vpop.permute.xlu0 %826
      %829 = vst.msk [vmem:[#allocation2 + $0x20] sm:$0xf] %vm392, %v827
      %v830 = vrot.slane %v677, 5
      %v831 = vrot.slane %v680, 4
      %v832 = vsel %vm240, %v831, %v830
      %v833 = vrot.slane %v683, 3
      %v834 = vsel %vm243, %v833, %v832
      %v835 = vrot.slane %v686, 2
      %v836 = vsel %vm246, %v835, %v834
      %837 = vrot.lane.b32.xlu0 %v836, 93
      %v838 = vpop.permute.xlu0 %837
      %840 = vst.msk [vmem:[#allocation2 + $0x20] sm:$0xf] %vm404, %v838
      %v841 = vrot.slane %v677, 6
      %v842 = vrot.slane %v680, 5
      %v843 = vsel %vm240, %v842, %v841
      %v844 = vrot.slane %v683, 4
      %v845 = vsel %vm243, %v844, %v843
      %v846 = vrot.slane %v686, 3
      %v847 = vsel %vm246, %v846, %v845
      %848 = vrot.lane.b32.xlu0 %v847, 110
      %v849 = vpop.permute.xlu0 %848
      %851 = vst.msk [vmem:[#allocation2 + $0x20] sm:$0xf] %vm416, %v849
      %v852 = vrot.slane %v677, 7
      %v853 = vrot.slane %v680, 6
      %v854 = vsel %vm240, %v853, %v852
      %v855 = vrot.slane %v683, 5
      %v856 = vsel %vm243, %v855, %v854
      %v857 = vrot.slane %v686, 4
      %v858 = vsel %vm246, %v857, %v856
      %859 = vrot.lane.b32.xlu0 %v858, 127
      %v860 = vpop.permute.xlu0 %859
      %862 = vst.msk [vmem:[#allocation2 + $0x20] sm:$0xf] %vm428, %v860
      %863 = vst.msk [vmem:[#allocation2 + $0x28] sm:$0xf] %vm430, %v860
      %v868 = vrot.slane %v681, 7
      %v869 = vsel %vm240, %v868, %v678
      %v870 = vrot.slane %v684, 6
      %v871 = vsel %vm243, %v870, %v869
      %v872 = vrot.slane %v687, 5
      %v873 = vsel %vm246, %v872, %v871
      %874 = vrot.lane.b32.xlu0 %v873, 16
      %v875 = vpop.permute.xlu0 %874
      %877 = vst.msk [vmem:[#allocation2 + $0x28] sm:$0xf] %vm445, %v875
      %v878 = vld [vmem:[%s675] sm:$0xff]
      %v879 = vld [vmem:[%s675 + $0x8] sm:$0xff]
      %v880 = vld [vmem:[%s675 + $0x10] sm:$0x1]
      %v881 = vld [vmem:[%s675 + $0x18] sm:$0xff]
      %v882 = vld [vmem:[%s675 + $0x20] sm:$0xff]
      %v883 = vld [vmem:[%s675 + $0x28] sm:$0x1]
      %v884 = vld [vmem:[%s675 + $0x30] sm:$0xff]
      %v885 = vld [vmem:[%s675 + $0x38] sm:$0xff]
      %v886 = vld [vmem:[%s675 + $0x40] sm:$0x1]
      %v887 = vld [vmem:[%s675 + $0x48] sm:$0xff]
      %v888 = vld [vmem:[%s675 + $0x50] sm:$0xff]
      %v889 = vld [vmem:[%s675 + $0x58] sm:$0x1]
      %v894 = vrot.slane %v878, 4
      %v895 = vrot.slane %v881, 3
      %v896 = vsel %vm465, %v895, %v894
      %v897 = vrot.slane %v884, 2
      %v898 = vsel %vm468, %v897, %v896
      %v899 = vrot.slane %v887, 1
      %v900 = vsel %vm471, %v899, %v898
      %901 = vrot.lane.b32.xlu0 %v900, 127
      %v902 = vpop.permute.xlu0 %901
      %904 = vst.msk [vmem:[#allocation2 + $0x18] sm:$0xf0] %vm476, %v902
      %v905 = vrot.slane %v878, 5
      %v906 = vrot.slane %v881, 4
      %v907 = vsel %vm465, %v906, %v905
      %v908 = vrot.slane %v884, 3
      %v909 = vsel %vm468, %v908, %v907
      %v910 = vrot.slane %v887, 2
      %v911 = vsel %vm471, %v910, %v909
      %912 = vrot.lane.b32.xlu0 %v911, 16
      %v913 = vpop.permute.xlu0 %912
      %915 = vst.msk [vmem:[#allocation2 + $0x18] sm:$0xf0] %vm488, %v913
      %v916 = vrot.slane %v878, 6
      %v917 = vrot.slane %v881, 5
      %v918 = vsel %vm465, %v917, %v916
      %v919 = vrot.slane %v884, 4
      %v920 = vsel %vm468, %v919, %v918
      %v921 = vrot.slane %v887, 3
      %v922 = vsel %vm471, %v921, %v920
      %923 = vrot.lane.b32.xlu0 %v922, 33
      %v924 = vpop.permute.xlu0 %923
      %926 = vst.msk [vmem:[#allocation2 + $0x18] sm:$0xf0] %vm500, %v924
      %v927 = vrot.slane %v878, 7
      %v928 = vrot.slane %v881, 6
      %v929 = vsel %vm465, %v928, %v927
      %v930 = vrot.slane %v884, 5
      %v931 = vsel %vm468, %v930, %v929
      %v932 = vrot.slane %v887, 4
      %v933 = vsel %vm471, %v932, %v931
      %934 = vrot.lane.b32.xlu0 %v933, 50
      %v935 = vpop.permute.xlu0 %934
      %937 = vst.msk [vmem:[#allocation2 + $0x18] sm:$0xf0] %vm512, %v935
      %v938 = vrot.slane %v881, 7
      %v939 = vsel %vm465, %v938, %v878
      %v940 = vrot.slane %v884, 6
      %v941 = vsel %vm468, %v940, %v939
      %v942 = vrot.slane %v887, 5
      %v943 = vsel %vm471, %v942, %v941
      %944 = vrot.lane.b32.xlu0 %v943, 67
      %v945 = vpop.permute.xlu0 %944
      %947 = vst.msk [vmem:[#allocation2 + $0x18] sm:$0xf0] %vm523, %v945
      %v948 = vrot.slane %v878, 1
      %v949 = vsel %vm465, %v881, %v948
      %v950 = vrot.slane %v884, 7
      %v951 = vsel %vm468, %v950, %v949
      %v952 = vrot.slane %v887, 6
      %v953 = vsel %vm471, %v952, %v951
      %954 = vrot.lane.b32.xlu0 %v953, 84
      %v955 = vpop.permute.xlu0 %954
      %957 = vst.msk [vmem:[#allocation2 + $0x18] sm:$0xf0] %vm534, %v955
      %v958 = vrot.slane %v878, 2
      %v959 = vrot.slane %v881, 1
      %v960 = vsel %vm465, %v959, %v958
      %v961 = vsel %vm468, %v884, %v960
      %v962 = vrot.slane %v887, 7
      %v963 = vsel %vm471, %v962, %v961
      %964 = vrot.lane.b32.xlu0 %v963, 101
      %v965 = vpop.permute.xlu0 %964
      %967 = vst.msk [vmem:[#allocation2 + $0x18] sm:$0xf0] %vm545, %v965
      %v968 = vrot.slane %v878, 3
      %v969 = vrot.slane %v881, 2
      %v970 = vsel %vm465, %v969, %v968
      %v971 = vrot.slane %v884, 1
      %v972 = vsel %vm468, %v971, %v970
      %v973 = vsel %vm471, %v887, %v972
      %974 = vrot.lane.b32.xlu0 %v973, 118
      %v975 = vpop.permute.xlu0 %974
      %977 = vst.msk [vmem:[#allocation2 + $0x18] sm:$0xf0] %vm556, %v975
      %978 = vst.msk [vmem:[#allocation2 + $0x20] sm:$0xf0] %vm558, %v975
      %v983 = vrot.slane %v879, 4
      %v984 = vrot.slane %v882, 3
      %v985 = vsel %vm465, %v984, %v983
      %v986 = vrot.slane %v885, 2
      %v987 = vsel %vm468, %v986, %v985
      %v988 = vrot.slane %v888, 1
      %v989 = vsel %vm471, %v988, %v987
      %990 = vrot.lane.b32.xlu0 %v989, 7
      %v991 = vpop.permute.xlu0 %990
      %993 = vst.msk [vmem:[#allocation2 + $0x20] sm:$0xf0] %vm574, %v991
      %v994 = vrot.slane %v879, 5
      %v995 = vrot.slane %v882, 4
      %v996 = vsel %vm465, %v995, %v994
      %v997 = vrot.slane %v885, 3
      %v998 = vsel %vm468, %v997, %v996
      %v999 = vrot.slane %v888, 2
      %v1000 = vsel %vm471, %v999, %v998
      %1001 = vrot.lane.b32.xlu0 %v1000, 24
      %v1002 = vpop.permute.xlu0 %1001
      %1004 = vst.msk [vmem:[#allocation2 + $0x20] sm:$0xf0] %vm586, %v1002
      %v1005 = vrot.slane %v879, 6
      %v1006 = vrot.slane %v882, 5
      %v1007 = vsel %vm465, %v1006, %v1005
      %v1008 = vrot.slane %v885, 4
      %v1009 = vsel %vm468, %v1008, %v1007
      %v1010 = vrot.slane %v888, 3
      %v1011 = vsel %vm471, %v1010, %v1009
      %1012 = vrot.lane.b32.xlu0 %v1011, 41
      %v1013 = vpop.permute.xlu0 %1012
      %1015 = vst.msk [vmem:[#allocation2 + $0x20] sm:$0xf0] %vm598, %v1013
      %v1016 = vrot.slane %v879, 7
      %v1017 = vrot.slane %v882, 6
      %v1018 = vsel %vm465, %v1017, %v1016
      %v1019 = vrot.slane %v885, 5
      %v1020 = vsel %vm468, %v1019, %v1018
      %v1021 = vrot.slane %v888, 4
      %v1022 = vsel %vm471, %v1021, %v1020
      %1023 = vrot.lane.b32.xlu0 %v1022, 58
      %v1024 = vpop.permute.xlu0 %1023
      %1026 = vst.msk [vmem:[#allocation2 + $0x20] sm:$0xf0] %vm610, %v1024
      %v1027 = vrot.slane %v882, 7
      %v1028 = vsel %vm465, %v1027, %v879
      %v1029 = vrot.slane %v885, 6
      %v1030 = vsel %vm468, %v1029, %v1028
      %v1031 = vrot.slane %v888, 5
      %v1032 = vsel %vm471, %v1031, %v1030
      %1033 = vrot.lane.b32.xlu0 %v1032, 75
      %v1034 = vpop.permute.xlu0 %1033
      %1036 = vst.msk [vmem:[#allocation2 + $0x20] sm:$0xf0] %vm621, %v1034
      %v1037 = vrot.slane %v879, 1
      %v1038 = vsel %vm465, %v882, %v1037
      %v1039 = vrot.slane %v885, 7
      %v1040 = vsel %vm468, %v1039, %v1038
      %v1041 = vrot.slane %v888, 6
      %v1042 = vsel %vm471, %v1041, %v1040
      %1043 = vrot.lane.b32.xlu0 %v1042, 92
      %v1044 = vpop.permute.xlu0 %1043
      %1046 = vst.msk [vmem:[#allocation2 + $0x20] sm:$0xf0] %vm632, %v1044
      %v1047 = vrot.slane %v879, 2
      %v1048 = vrot.slane %v882, 1
      %v1049 = vsel %vm465, %v1048, %v1047
      %v1050 = vsel %vm468, %v885, %v1049
      %v1051 = vrot.slane %v888, 7
      %v1052 = vsel %vm471, %v1051, %v1050
      %1053 = vrot.lane.b32.xlu0 %v1052, 109
      %v1054 = vpop.permute.xlu0 %1053
      %1056 = vst.msk [vmem:[#allocation2 + $0x20] sm:$0xf0] %vm643, %v1054
      %v1057 = vrot.slane %v879, 3
      %v1058 = vrot.slane %v882, 2
      %v1059 = vsel %vm465, %v1058, %v1057
      %v1060 = vrot.slane %v885, 1
      %v1061 = vsel %vm468, %v1060, %v1059
      %v1062 = vsel %vm471, %v888, %v1061
      %1063 = vrot.lane.b32.xlu0 %v1062, 126
      %v1064 = vpop.permute.xlu0 %1063
      %1066 = vst.msk [vmem:[#allocation2 + $0x20] sm:$0xf0] %vm654, %v1064
      %1067 = vst.msk [vmem:[#allocation2 + $0x28] sm:$0xf0] %vm656, %v1064
      %v1072 = vrot.slane %v880, 4
      %v1073 = vrot.slane %v883, 3
      %v1074 = vsel %vm465, %v1073, %v1072
      %v1075 = vrot.slane %v886, 2
      %v1076 = vsel %vm468, %v1075, %v1074
      %v1077 = vrot.slane %v889, 1
      %v1078 = vsel %vm471, %v1077, %v1076
      %1079 = vrot.lane.b32.xlu0 %v1078, 15
      %v1080 = vpop.permute.xlu0 %1079
      %1082 = vst.msk [vmem:[#allocation2 + $0x28] sm:$0xf0] %vm672, %v1080
      %v1083 = vld [vmem:[%s1] sm:$0xff]
      %v1084 = vld [vmem:[%s1 + $0x8] sm:$0xff]
      %v1085 = vld [vmem:[#allocation2] sm:$0xff]
      %v1086 = vld [vmem:[#allocation2 + $0x8] sm:$0xff]
      %v1087 = vld [vmem:[#allocation2 + $0x10] sm:$0xff]
      %v1088 = vld [vmem:[#allocation2 + $0x18] sm:$0xff]
      %v1089 = vld [vmem:[#allocation2 + $0x20] sm:$0xff]
      %v1090 = vld [vmem:[#allocation2 + $0x28] sm:$0xff]
      %v1091 = vld [vmem:[%s2] sm:$0xff]
      %v1092 = vld [vmem:[%s2 + $0x8] sm:$0xff]
      %1094 = vset.pattern.permute.xlu0 0
      %1095 = vperm.xlu0 %1094, %v1091
      %v1096 = vpop.permute.xlu0 %1095
      %1099 = vset.pattern.permute.xlu0 0
      %1100 = vperm.xlu0 %1099, %v1092
      %v1101 = vpop.permute.xlu0 %1100
      %vm1103 = vcmask 130048
      %v1105 = vsel %vm1103, %v1083, 0
      %v1108 = vsel %vm1103, %v1084, 0
      %1110 = vmatpush.msra.mxu0 0.0
      %1111 = vmatpush.msra.mxu0 0.0
      %1112 = vmatpush.msra.mxu0 0.0
      %1113 = vmatpush.msra.mxu0 0.0
      %1114 = vmatpush.msra.mxu0 0.0
      %1115 = vmatpush.msra.mxu0 0.0
      %1116 = vmatpush.msra.mxu0 0.0
      %1117 = vmatpush.msra.mxu0 0.0
      %1118 = vmatpush.msra.mxu0 0.0
      %1119 = vmatpush.msra.mxu0 0.0
      %1120 = vmatpush.msra.mxu0 0.0
      %1121 = vmatpush.msra.mxu0 0.0
      %1122 = vmatpush.msra.mxu0 0.0
      %1123 = vmatpush.msra.mxu0 0.0
      %1124 = vmatpush.msra.mxu0 %v1088
      %1125 = vmatpush.msra.mxu0 %v1085
      %1126 = vmatmul.f32.gmra.mxu0 %v1105
      %v1127 = vpop.f32.mrf.mxu0
      %v1128 = vadd.f32 %v1096, %v1127
      %1129 = vmatmul.f32.gmra.mxu0 %v1108
      %v1130 = vpop.f32.mrf.mxu0
      %v1131 = vadd.f32 %v1101, %v1130
      %1132 = vdwg.mxu0
      %1133 = vmatpush.msra.mxu0 0.0
      %1134 = vmatpush.msra.mxu0 0.0
      %1135 = vmatpush.msra.mxu0 0.0
      %1136 = vmatpush.msra.mxu0 0.0
      %1137 = vmatpush.msra.mxu0 0.0
      %1138 = vmatpush.msra.mxu0 0.0
      %1139 = vmatpush.msra.mxu0 0.0
      %1140 = vmatpush.msra.mxu0 0.0
      %1141 = vmatpush.msra.mxu0 0.0
      %1142 = vmatpush.msra.mxu0 0.0
      %1143 = vmatpush.msra.mxu0 0.0
      %1144 = vmatpush.msra.mxu0 0.0
      %1145 = vmatpush.msra.mxu0 0.0
      %1146 = vmatpush.msra.mxu0 0.0
      %1147 = vmatpush.msra.mxu0 %v1089
      %1148 = vmatpush.msra.mxu0 %v1086
      %1149 = vmatmul.f32.gmra.mxu0 %v1105
      %v1150 = vpop.f32.mrf.mxu0
      %v1151 = vadd.f32 %v1096, %v1150
      %1152 = vmatmul.f32.gmra.mxu0 %v1108
      %v1153 = vpop.f32.mrf.mxu0
      %v1154 = vadd.f32 %v1101, %v1153
      %1155 = vdwg.mxu0
      %1156 = vmatpush.msra.mxu0 0.0
      %1157 = vmatpush.msra.mxu0 0.0
      %1158 = vmatpush.msra.mxu0 0.0
      %1159 = vmatpush.msra.mxu0 0.0
      %1160 = vmatpush.msra.mxu0 0.0
      %1161 = vmatpush.msra.mxu0 0.0
      %1162 = vmatpush.msra.mxu0 0.0
      %1163 = vmatpush.msra.mxu0 0.0
      %1164 = vmatpush.msra.mxu0 0.0
      %1165 = vmatpush.msra.mxu0 0.0
      %1166 = vmatpush.msra.mxu0 0.0
      %1167 = vmatpush.msra.mxu0 0.0
      %1168 = vmatpush.msra.mxu0 0.0
      %1169 = vmatpush.msra.mxu0 0.0
      %1170 = vmatpush.msra.mxu0 %v1090
      %1171 = vmatpush.msra.mxu0 %v1087
      %1172 = vmatmul.f32.gmra.mxu0 %v1105
      %v1173 = vpop.f32.mrf.mxu0
      %v1174 = vadd.f32 %v1096, %v1173
      %1175 = vmatmul.f32.gmra.mxu0 %v1108
      %v1176 = vpop.f32.mrf.mxu0
      %v1177 = vadd.f32 %v1101, %v1176
      %1178 = vdwg.mxu0
      %vm1179 = vcmp.ge.f32.partialorder %v1128, 0.0
      %vm1180 = vcmp.ge.f32.partialorder %v1151, 0.0
      %vm1181 = vcmp.ge.f32.partialorder %v1174, 0.0
      %vm1182 = vcmp.ge.f32.partialorder %v1131, 0.0
      %vm1183 = vcmp.ge.f32.partialorder %v1154, 0.0
      %vm1184 = vcmp.ge.f32.partialorder %v1177, 0.0
      %v1185 = vld [vmem:[%s3] sm:$0xff]
      %v1186 = vld [vmem:[%s3 + $0x8] sm:$0xff]
      %1188 = vset.pattern.permute.xlu0 0
      %1189 = vperm.xlu0 %1188, %v1185
      %v1190 = vpop.permute.xlu0 %1189
      %1193 = vset.pattern.permute.xlu0 0
      %1194 = vperm.xlu0 %1193, %v1186
      %v1195 = vpop.permute.xlu0 %1194
      %v1197 = vmul.f32 %v1128, %v1190
      %v1198 = vmul.f32 %v1151, %v1190
      %v1199 = vmul.f32 %v1174, %v1190
      %v1200 = vmul.f32 %v1131, %v1195
      %v1201 = vmul.f32 %v1154, %v1195
      %v1202 = vmul.f32 %v1177, %v1195
      %v1203 = vsel %vm1179, %v1128, %v1197
      %v1204 = vsel %vm1180, %v1151, %v1198
      %v1205 = vsel %vm1181, %v1174, %v1199
      %v1206 = vsel %vm1182, %v1131, %v1200
      %v1207 = vsel %vm1183, %v1154, %v1201
      %v1208 = vsel %vm1184, %v1177, %v1202
      %v1211 = vrot.slane %v1203, 1
      %v1212 = vrot.slane %v1203, 2
      %v1213 = vrot.slane %v1203, 3
      %v1214 = vrot.slane %v1203, 4
      %v1215 = vrot.slane %v1203, 5
      %v1216 = vrot.slane %v1203, 6
      %v1217 = vrot.slane %v1203, 7
      %v1218 = vrot.slane %v1206, 1
      %v1219 = vrot.slane %v1206, 2
      %v1220 = vrot.slane %v1206, 3
      %v1221 = vrot.slane %v1206, 4
      %v1222 = vrot.slane %v1206, 5
      %v1223 = vrot.slane %v1206, 6
      %v1224 = vrot.slane %v1206, 7
      %vm1239 = vcmask 131072
      %1240 = vst.msk [vmem:[%s219] sm:$0x1] %vm1239, %v1203
      %1241 = vst.msk [vmem:[%s219 + $0x18] sm:$0x1] %vm1239, %v1211
      %1242 = vst.msk [vmem:[%s219 + $0x30] sm:$0x1] %vm1239, %v1212
      %1243 = vst.msk [vmem:[%s219 + $0x48] sm:$0x1] %vm1239, %v1213
      %1244 = vst.msk [vmem:[%s219 + $0x60] sm:$0x1] %vm1239, %v1214
      %1245 = vst.msk [vmem:[%s219 + $0x78] sm:$0x1] %vm1239, %v1215
      %1246 = vst.msk [vmem:[%s219 + $0x90] sm:$0x1] %vm1239, %v1216
      %1247 = vst.msk [vmem:[%s219 + $0xa8] sm:$0x1] %vm1239, %v1217
      %1248 = vst.msk [vmem:[%s219 + $0xc0] sm:$0x1] %vm1239, %v1206
      %1249 = vst.msk [vmem:[%s219 + $0xd8] sm:$0x1] %vm1239, %v1218
      %1250 = vst.msk [vmem:[%s219 + $0xf0] sm:$0x1] %vm1239, %v1219
      %1251 = vst.msk [vmem:[%s219 + $0x108] sm:$0x1] %vm1239, %v1220
      %1252 = vst.msk [vmem:[%s219 + $0x120] sm:$0x1] %vm1239, %v1221
      %1253 = vst.msk [vmem:[%s219 + $0x138] sm:$0x1] %vm1239, %v1222
      %1254 = vst.msk [vmem:[%s219 + $0x150] sm:$0x1] %vm1239, %v1223
      %1255 = vst.msk [vmem:[%s219 + $0x168] sm:$0x1] %vm1239, %v1224
      %v1256 = vperm.slane %v1203, 0
      %v1257 = vperm.slane %v1211, 0
      %v1258 = vperm.slane %v1212, 0
      %v1259 = vperm.slane %v1213, 0
      %v1260 = vperm.slane %v1214, 0
      %v1261 = vperm.slane %v1215, 0
      %v1262 = vperm.slane %v1216, 0
      %v1263 = vperm.slane %v1217, 0
      %v1264 = vperm.slane %v1206, 0
      %v1265 = vperm.slane %v1218, 0
      %v1266 = vperm.slane %v1219, 0
      %v1267 = vperm.slane %v1220, 0
      %v1268 = vperm.slane %v1221, 0
      %v1269 = vperm.slane %v1222, 0
      %v1270 = vperm.slane %v1223, 0
      %v1271 = vperm.slane %v1224, 0
      %1272 = vrot.lane.b32.xlu0 %v1256, 111
      %v1273 = vpop.permute.xlu0 %1272
      %1274 = vrot.lane.b32.xlu0 %v1257, 111
      %v1275 = vpop.permute.xlu0 %1274
      %1276 = vrot.lane.b32.xlu0 %v1258, 111
      %v1277 = vpop.permute.xlu0 %1276
      %1278 = vrot.lane.b32.xlu0 %v1259, 111
      %v1279 = vpop.permute.xlu0 %1278
      %1280 = vrot.lane.b32.xlu0 %v1260, 111
      %v1281 = vpop.permute.xlu0 %1280
      %1282 = vrot.lane.b32.xlu0 %v1261, 111
      %v1283 = vpop.permute.xlu0 %1282
      %1284 = vrot.lane.b32.xlu0 %v1262, 111
      %v1285 = vpop.permute.xlu0 %1284
      %1286 = vrot.lane.b32.xlu0 %v1263, 111
      %v1287 = vpop.permute.xlu0 %1286
      %1288 = vrot.lane.b32.xlu0 %v1264, 111
      %v1289 = vpop.permute.xlu0 %1288
      %1290 = vrot.lane.b32.xlu0 %v1265, 111
      %v1291 = vpop.permute.xlu0 %1290
      %1292 = vrot.lane.b32.xlu0 %v1266, 111
      %v1293 = vpop.permute.xlu0 %1292
      %1294 = vrot.lane.b32.xlu0 %v1267, 111
      %v1295 = vpop.permute.xlu0 %1294
      %1296 = vrot.lane.b32.xlu0 %v1268, 111
      %v1297 = vpop.permute.xlu0 %1296
      %1298 = vrot.lane.b32.xlu0 %v1269, 111
      %v1299 = vpop.permute.xlu0 %1298
      %1300 = vrot.lane.b32.xlu0 %v1270, 111
      %v1301 = vpop.permute.xlu0 %1300
      %1302 = vrot.lane.b32.xlu0 %v1271, 111
      %v1303 = vpop.permute.xlu0 %1302
      %1320 = vst.msk [vmem:[%s219 + $0x1] sm:$0x1] %vm1239, %v1273
      %1321 = vst.msk [vmem:[%s219 + $0x19] sm:$0x1] %vm1239, %v1275
      %1322 = vst.msk [vmem:[%s219 + $0x31] sm:$0x1] %vm1239, %v1277
      %1323 = vst.msk [vmem:[%s219 + $0x49] sm:$0x1] %vm1239, %v1279
      %1324 = vst.msk [vmem:[%s219 + $0x61] sm:$0x1] %vm1239, %v1281
      %1325 = vst.msk [vmem:[%s219 + $0x79] sm:$0x1] %vm1239, %v1283
      %1326 = vst.msk [vmem:[%s219 + $0x91] sm:$0x1] %vm1239, %v1285
      %1327 = vst.msk [vmem:[%s219 + $0xa9] sm:$0x1] %vm1239, %v1287
      %1328 = vst.msk [vmem:[%s219 + $0xc1] sm:$0x1] %vm1239, %v1289
      %1329 = vst.msk [vmem:[%s219 + $0xd9] sm:$0x1] %vm1239, %v1291
      %1330 = vst.msk [vmem:[%s219 + $0xf1] sm:$0x1] %vm1239, %v1293
      %1331 = vst.msk [vmem:[%s219 + $0x109] sm:$0x1] %vm1239, %v1295
      %1332 = vst.msk [vmem:[%s219 + $0x121] sm:$0x1] %vm1239, %v1297
      %1333 = vst.msk [vmem:[%s219 + $0x139] sm:$0x1] %vm1239, %v1299
      %1334 = vst.msk [vmem:[%s219 + $0x151] sm:$0x1] %vm1239, %v1301
      %1335 = vst.msk [vmem:[%s219 + $0x169] sm:$0x1] %vm1239, %v1303
      %1336 = vrot.lane.b32.xlu0 %v1256, 94
      %v1337 = vpop.permute.xlu0 %1336
      %1338 = vrot.lane.b32.xlu0 %v1257, 94
      %v1339 = vpop.permute.xlu0 %1338
      %1340 = vrot.lane.b32.xlu0 %v1258, 94
      %v1341 = vpop.permute.xlu0 %1340
      %1342 = vrot.lane.b32.xlu0 %v1259, 94
      %v1343 = vpop.permute.xlu0 %1342
      %1344 = vrot.lane.b32.xlu0 %v1260, 94
      %v1345 = vpop.permute.xlu0 %1344
      %1346 = vrot.lane.b32.xlu0 %v1261, 94
      %v1347 = vpop.permute.xlu0 %1346
      %1348 = vrot.lane.b32.xlu0 %v1262, 94
      %v1349 = vpop.permute.xlu0 %1348
      %1350 = vrot.lane.b32.xlu0 %v1263, 94
      %v1351 = vpop.permute.xlu0 %1350
      %1352 = vrot.lane.b32.xlu0 %v1264, 94
      %v1353 = vpop.permute.xlu0 %1352
      %1354 = vrot.lane.b32.xlu0 %v1265, 94
      %v1355 = vpop.permute.xlu0 %1354
      %1356 = vrot.lane.b32.xlu0 %v1266, 94
      %v1357 = vpop.permute.xlu0 %1356
      %1358 = vrot.lane.b32.xlu0 %v1267, 94
      %v1359 = vpop.permute.xlu0 %1358
      %1360 = vrot.lane.b32.xlu0 %v1268, 94
      %v1361 = vpop.permute.xlu0 %1360
      %1362 = vrot.lane.b32.xlu0 %v1269, 94
      %v1363 = vpop.permute.xlu0 %1362
      %1364 = vrot.lane.b32.xlu0 %v1270, 94
      %v1365 = vpop.permute.xlu0 %1364
      %1366 = vrot.lane.b32.xlu0 %v1271, 94
      %v1367 = vpop.permute.xlu0 %1366
      %1384 = vst.msk [vmem:[%s219 + $0x2] sm:$0x1] %vm1239, %v1337
      %1385 = vst.msk [vmem:[%s219 + $0x1a] sm:$0x1] %vm1239, %v1339
      %1386 = vst.msk [vmem:[%s219 + $0x32] sm:$0x1] %vm1239, %v1341
      %1387 = vst.msk [vmem:[%s219 + $0x4a] sm:$0x1] %vm1239, %v1343
      %1388 = vst.msk [vmem:[%s219 + $0x62] sm:$0x1] %vm1239, %v1345
      %1389 = vst.msk [vmem:[%s219 + $0x7a] sm:$0x1] %vm1239, %v1347
      %1390 = vst.msk [vmem:[%s219 + $0x92] sm:$0x1] %vm1239, %v1349
      %1391 = vst.msk [vmem:[%s219 + $0xaa] sm:$0x1] %vm1239, %v1351
      %1392 = vst.msk [vmem:[%s219 + $0xc2] sm:$0x1] %vm1239, %v1353
      %1393 = vst.msk [vmem:[%s219 + $0xda] sm:$0x1] %vm1239, %v1355
      %1394 = vst.msk [vmem:[%s219 + $0xf2] sm:$0x1] %vm1239, %v1357
      %1395 = vst.msk [vmem:[%s219 + $0x10a] sm:$0x1] %vm1239, %v1359
      %1396 = vst.msk [vmem:[%s219 + $0x122] sm:$0x1] %vm1239, %v1361
      %1397 = vst.msk [vmem:[%s219 + $0x13a] sm:$0x1] %vm1239, %v1363
      %1398 = vst.msk [vmem:[%s219 + $0x152] sm:$0x1] %vm1239, %v1365
      %1399 = vst.msk [vmem:[%s219 + $0x16a] sm:$0x1] %vm1239, %v1367
      %1400 = vrot.lane.b32.xlu0 %v1256, 77
      %v1401 = vpop.permute.xlu0 %1400
      %1402 = vrot.lane.b32.xlu0 %v1257, 77
      %v1403 = vpop.permute.xlu0 %1402
      %1404 = vrot.lane.b32.xlu0 %v1258, 77
      %v1405 = vpop.permute.xlu0 %1404
      %1406 = vrot.lane.b32.xlu0 %v1259, 77
      %v1407 = vpop.permute.xlu0 %1406
      %1408 = vrot.lane.b32.xlu0 %v1260, 77
      %v1409 = vpop.permute.xlu0 %1408
      %1410 = vrot.lane.b32.xlu0 %v1261, 77
      %v1411 = vpop.permute.xlu0 %1410
      %1412 = vrot.lane.b32.xlu0 %v1262, 77
      %v1413 = vpop.permute.xlu0 %1412
      %1414 = vrot.lane.b32.xlu0 %v1263, 77
      %v1415 = vpop.permute.xlu0 %1414
      %1416 = vrot.lane.b32.xlu0 %v1264, 77
      %v1417 = vpop.permute.xlu0 %1416
      %1418 = vrot.lane.b32.xlu0 %v1265, 77
      %v1419 = vpop.permute.xlu0 %1418
      %1420 = vrot.lane.b32.xlu0 %v1266, 77
      %v1421 = vpop.permute.xlu0 %1420
      %1422 = vrot.lane.b32.xlu0 %v1267, 77
      %v1423 = vpop.permute.xlu0 %1422
      %1424 = vrot.lane.b32.xlu0 %v1268, 77
      %v1425 = vpop.permute.xlu0 %1424
      %1426 = vrot.lane.b32.xlu0 %v1269, 77
      %v1427 = vpop.permute.xlu0 %1426
      %1428 = vrot.lane.b32.xlu0 %v1270, 77
      %v1429 = vpop.permute.xlu0 %1428
      %1430 = vrot.lane.b32.xlu0 %v1271, 77
      %v1431 = vpop.permute.xlu0 %1430
      %1448 = vst.msk [vmem:[%s219 + $0x3] sm:$0x1] %vm1239, %v1401
      %1449 = vst.msk [vmem:[%s219 + $0x1b] sm:$0x1] %vm1239, %v1403
      %1450 = vst.msk [vmem:[%s219 + $0x33] sm:$0x1] %vm1239, %v1405
      %1451 = vst.msk [vmem:[%s219 + $0x4b] sm:$0x1] %vm1239, %v1407
      %1452 = vst.msk [vmem:[%s219 + $0x63] sm:$0x1] %vm1239, %v1409
      %1453 = vst.msk [vmem:[%s219 + $0x7b] sm:$0x1] %vm1239, %v1411
      %1454 = vst.msk [vmem:[%s219 + $0x93] sm:$0x1] %vm1239, %v1413
      %1455 = vst.msk [vmem:[%s219 + $0xab] sm:$0x1] %vm1239, %v1415
      %1456 = vst.msk [vmem:[%s219 + $0xc3] sm:$0x1] %vm1239, %v1417
      %1457 = vst.msk [vmem:[%s219 + $0xdb] sm:$0x1] %vm1239, %v1419
      %1458 = vst.msk [vmem:[%s219 + $0xf3] sm:$0x1] %vm1239, %v1421
      %1459 = vst.msk [vmem:[%s219 + $0x10b] sm:$0x1] %vm1239, %v1423
      %1460 = vst.msk [vmem:[%s219 + $0x123] sm:$0x1] %vm1239, %v1425
      %1461 = vst.msk [vmem:[%s219 + $0x13b] sm:$0x1] %vm1239, %v1427
      %1462 = vst.msk [vmem:[%s219 + $0x153] sm:$0x1] %vm1239, %v1429
      %1463 = vst.msk [vmem:[%s219 + $0x16b] sm:$0x1] %vm1239, %v1431
      %1464 = vrot.lane.b32.xlu0 %v1256, 60
      %v1465 = vpop.permute.xlu0 %1464
      %1466 = vrot.lane.b32.xlu0 %v1257, 60
      %v1467 = vpop.permute.xlu0 %1466
      %1468 = vrot.lane.b32.xlu0 %v1258, 60
      %v1469 = vpop.permute.xlu0 %1468
      %1470 = vrot.lane.b32.xlu0 %v1259, 60
      %v1471 = vpop.permute.xlu0 %1470
      %1472 = vrot.lane.b32.xlu0 %v1260, 60
      %v1473 = vpop.permute.xlu0 %1472
      %1474 = vrot.lane.b32.xlu0 %v1261, 60
      %v1475 = vpop.permute.xlu0 %1474
      %1476 = vrot.lane.b32.xlu0 %v1262, 60
      %v1477 = vpop.permute.xlu0 %1476
      %1478 = vrot.lane.b32.xlu0 %v1263, 60
      %v1479 = vpop.permute.xlu0 %1478
      %1480 = vrot.lane.b32.xlu0 %v1264, 60
      %v1481 = vpop.permute.xlu0 %1480
      %1482 = vrot.lane.b32.xlu0 %v1265, 60
      %v1483 = vpop.permute.xlu0 %1482
      %1484 = vrot.lane.b32.xlu0 %v1266, 60
      %v1485 = vpop.permute.xlu0 %1484
      %1486 = vrot.lane.b32.xlu0 %v1267, 60
      %v1487 = vpop.permute.xlu0 %1486
      %1488 = vrot.lane.b32.xlu0 %v1268, 60
      %v1489 = vpop.permute.xlu0 %1488
      %1490 = vrot.lane.b32.xlu0 %v1269, 60
      %v1491 = vpop.permute.xlu0 %1490
      %1492 = vrot.lane.b32.xlu0 %v1270, 60
      %v1493 = vpop.permute.xlu0 %1492
      %1494 = vrot.lane.b32.xlu0 %v1271, 60
      %v1495 = vpop.permute.xlu0 %1494
      %1512 = vst.msk [vmem:[%s219 + $0x4] sm:$0x1] %vm1239, %v1465
      %1513 = vst.msk [vmem:[%s219 + $0x1c] sm:$0x1] %vm1239, %v1467
      %1514 = vst.msk [vmem:[%s219 + $0x34] sm:$0x1] %vm1239, %v1469
      %1515 = vst.msk [vmem:[%s219 + $0x4c] sm:$0x1] %vm1239, %v1471
      %1516 = vst.msk [vmem:[%s219 + $0x64] sm:$0x1] %vm1239, %v1473
      %1517 = vst.msk [vmem:[%s219 + $0x7c] sm:$0x1] %vm1239, %v1475
      %1518 = vst.msk [vmem:[%s219 + $0x94] sm:$0x1] %vm1239, %v1477
      %1519 = vst.msk [vmem:[%s219 + $0xac] sm:$0x1] %vm1239, %v1479
      %1520 = vst.msk [vmem:[%s219 + $0xc4] sm:$0x1] %vm1239, %v1481
      %1521 = vst.msk [vmem:[%s219 + $0xdc] sm:$0x1] %vm1239, %v1483
      %1522 = vst.msk [vmem:[%s219 + $0xf4] sm:$0x1] %vm1239, %v1485
      %1523 = vst.msk [vmem:[%s219 + $0x10c] sm:$0x1] %vm1239, %v1487
      %1524 = vst.msk [vmem:[%s219 + $0x124] sm:$0x1] %vm1239, %v1489
      %1525 = vst.msk [vmem:[%s219 + $0x13c] sm:$0x1] %vm1239, %v1491
      %1526 = vst.msk [vmem:[%s219 + $0x154] sm:$0x1] %vm1239, %v1493
      %1527 = vst.msk [vmem:[%s219 + $0x16c] sm:$0x1] %vm1239, %v1495
      %1528 = vrot.lane.b32.xlu0 %v1256, 43
      %v1529 = vpop.permute.xlu0 %1528
      %1530 = vrot.lane.b32.xlu0 %v1257, 43
      %v1531 = vpop.permute.xlu0 %1530
      %1532 = vrot.lane.b32.xlu0 %v1258, 43
      %v1533 = vpop.permute.xlu0 %1532
      %1534 = vrot.lane.b32.xlu0 %v1259, 43
      %v1535 = vpop.permute.xlu0 %1534
      %1536 = vrot.lane.b32.xlu0 %v1260, 43
      %v1537 = vpop.permute.xlu0 %1536
      %1538 = vrot.lane.b32.xlu0 %v1261, 43
      %v1539 = vpop.permute.xlu0 %1538
      %1540 = vrot.lane.b32.xlu0 %v1262, 43
      %v1541 = vpop.permute.xlu0 %1540
      %1542 = vrot.lane.b32.xlu0 %v1263, 43
      %v1543 = vpop.permute.xlu0 %1542
      %1544 = vrot.lane.b32.xlu0 %v1264, 43
      %v1545 = vpop.permute.xlu0 %1544
      %1546 = vrot.lane.b32.xlu0 %v1265, 43
      %v1547 = vpop.permute.xlu0 %1546
      %1548 = vrot.lane.b32.xlu0 %v1266, 43
      %v1549 = vpop.permute.xlu0 %1548
      %1550 = vrot.lane.b32.xlu0 %v1267, 43
      %v1551 = vpop.permute.xlu0 %1550
      %1552 = vrot.lane.b32.xlu0 %v1268, 43
      %v1553 = vpop.permute.xlu0 %1552
      %1554 = vrot.lane.b32.xlu0 %v1269, 43
      %v1555 = vpop.permute.xlu0 %1554
      %1556 = vrot.lane.b32.xlu0 %v1270, 43
      %v1557 = vpop.permute.xlu0 %1556
      %1558 = vrot.lane.b32.xlu0 %v1271, 43
      %v1559 = vpop.permute.xlu0 %1558
      %1576 = vst.msk [vmem:[%s219 + $0x5] sm:$0x1] %vm1239, %v1529
      %1577 = vst.msk [vmem:[%s219 + $0x1d] sm:$0x1] %vm1239, %v1531
      %1578 = vst.msk [vmem:[%s219 + $0x35] sm:$0x1] %vm1239, %v1533
      %1579 = vst.msk [vmem:[%s219 + $0x4d] sm:$0x1] %vm1239, %v1535
      %1580 = vst.msk [vmem:[%s219 + $0x65] sm:$0x1] %vm1239, %v1537
      %1581 = vst.msk [vmem:[%s219 + $0x7d] sm:$0x1] %vm1239, %v1539
      %1582 = vst.msk [vmem:[%s219 + $0x95] sm:$0x1] %vm1239, %v1541
      %1583 = vst.msk [vmem:[%s219 + $0xad] sm:$0x1] %vm1239, %v1543
      %1584 = vst.msk [vmem:[%s219 + $0xc5] sm:$0x1] %vm1239, %v1545
      %1585 = vst.msk [vmem:[%s219 + $0xdd] sm:$0x1] %vm1239, %v1547
      %1586 = vst.msk [vmem:[%s219 + $0xf5] sm:$0x1] %vm1239, %v1549
      %1587 = vst.msk [vmem:[%s219 + $0x10d] sm:$0x1] %vm1239, %v1551
      %1588 = vst.msk [vmem:[%s219 + $0x125] sm:$0x1] %vm1239, %v1553
      %1589 = vst.msk [vmem:[%s219 + $0x13d] sm:$0x1] %vm1239, %v1555
      %1590 = vst.msk [vmem:[%s219 + $0x155] sm:$0x1] %vm1239, %v1557
      %1591 = vst.msk [vmem:[%s219 + $0x16d] sm:$0x1] %vm1239, %v1559
      %1592 = vrot.lane.b32.xlu0 %v1256, 26
      %v1593 = vpop.permute.xlu0 %1592
      %1594 = vrot.lane.b32.xlu0 %v1257, 26
      %v1595 = vpop.permute.xlu0 %1594
      %1596 = vrot.lane.b32.xlu0 %v1258, 26
      %v1597 = vpop.permute.xlu0 %1596
      %1598 = vrot.lane.b32.xlu0 %v1259, 26
      %v1599 = vpop.permute.xlu0 %1598
      %1600 = vrot.lane.b32.xlu0 %v1260, 26
      %v1601 = vpop.permute.xlu0 %1600
      %1602 = vrot.lane.b32.xlu0 %v1261, 26
      %v1603 = vpop.permute.xlu0 %1602
      %1604 = vrot.lane.b32.xlu0 %v1262, 26
      %v1605 = vpop.permute.xlu0 %1604
      %1606 = vrot.lane.b32.xlu0 %v1263, 26
      %v1607 = vpop.permute.xlu0 %1606
      %1608 = vrot.lane.b32.xlu0 %v1264, 26
      %v1609 = vpop.permute.xlu0 %1608
      %1610 = vrot.lane.b32.xlu0 %v1265, 26
      %v1611 = vpop.permute.xlu0 %1610
      %1612 = vrot.lane.b32.xlu0 %v1266, 26
      %v1613 = vpop.permute.xlu0 %1612
      %1614 = vrot.lane.b32.xlu0 %v1267, 26
      %v1615 = vpop.permute.xlu0 %1614
      %1616 = vrot.lane.b32.xlu0 %v1268, 26
      %v1617 = vpop.permute.xlu0 %1616
      %1618 = vrot.lane.b32.xlu0 %v1269, 26
      %v1619 = vpop.permute.xlu0 %1618
      %1620 = vrot.lane.b32.xlu0 %v1270, 26
      %v1621 = vpop.permute.xlu0 %1620
      %1622 = vrot.lane.b32.xlu0 %v1271, 26
      %v1623 = vpop.permute.xlu0 %1622
      %1640 = vst.msk [vmem:[%s219 + $0x6] sm:$0x1] %vm1239, %v1593
      %1641 = vst.msk [vmem:[%s219 + $0x1e] sm:$0x1] %vm1239, %v1595
      %1642 = vst.msk [vmem:[%s219 + $0x36] sm:$0x1] %vm1239, %v1597
      %1643 = vst.msk [vmem:[%s219 + $0x4e] sm:$0x1] %vm1239, %v1599
      %1644 = vst.msk [vmem:[%s219 + $0x66] sm:$0x1] %vm1239, %v1601
      %1645 = vst.msk [vmem:[%s219 + $0x7e] sm:$0x1] %vm1239, %v1603
      %1646 = vst.msk [vmem:[%s219 + $0x96] sm:$0x1] %vm1239, %v1605
      %1647 = vst.msk [vmem:[%s219 + $0xae] sm:$0x1] %vm1239, %v1607
      %1648 = vst.msk [vmem:[%s219 + $0xc6] sm:$0x1] %vm1239, %v1609
      %1649 = vst.msk [vmem:[%s219 + $0xde] sm:$0x1] %vm1239, %v1611
      %1650 = vst.msk [vmem:[%s219 + $0xf6] sm:$0x1] %vm1239, %v1613
      %1651 = vst.msk [vmem:[%s219 + $0x10e] sm:$0x1] %vm1239, %v1615
      %1652 = vst.msk [vmem:[%s219 + $0x126] sm:$0x1] %vm1239, %v1617
      %1653 = vst.msk [vmem:[%s219 + $0x13e] sm:$0x1] %vm1239, %v1619
      %1654 = vst.msk [vmem:[%s219 + $0x156] sm:$0x1] %vm1239, %v1621
      %1655 = vst.msk [vmem:[%s219 + $0x16e] sm:$0x1] %vm1239, %v1623
      %v1658 = vrot.slane %v1204, 7
      %v1659 = vrot.slane %v1207, 7
      %vm1660 = vcmask 1040384
      %v1661 = vsel %vm1660, %v1203, %v1658
      %v1662 = vsel %vm240, %v1203, %v1658
      %v1663 = vrot.slane %v1662, 1
      %v1664 = vsel %vm243, %v1203, %v1658
      %v1665 = vrot.slane %v1664, 2
      %v1666 = vsel %vm246, %v1203, %v1658
      %v1667 = vrot.slane %v1666, 3
      %vm1668 = vcmask 1044484
      %v1669 = vsel %vm1668, %v1203, %v1658
      %v1670 = vrot.slane %v1669, 4
      %v1671 = vsel %vm465, %v1203, %v1658
      %v1672 = vrot.slane %v1671, 5
      %v1673 = vsel %vm468, %v1203, %v1658
      %v1674 = vrot.slane %v1673, 6
      %vm1675 = vcmask 1046528
      %v1676 = vsel %vm1675, %v1658, %v1203
      %v1677 = vrot.slane %v1676, 7
      %v1678 = vsel %vm1660, %v1206, %v1659
      %v1679 = vsel %vm240, %v1206, %v1659
      %v1680 = vrot.slane %v1679, 1
      %v1681 = vsel %vm243, %v1206, %v1659
      %v1682 = vrot.slane %v1681, 2
      %v1683 = vsel %vm246, %v1206, %v1659
      %v1684 = vrot.slane %v1683, 3
      %v1685 = vsel %vm1668, %v1206, %v1659
      %v1686 = vrot.slane %v1685, 4
      %v1687 = vsel %vm465, %v1206, %v1659
      %v1688 = vrot.slane %v1687, 5
      %v1689 = vsel %vm468, %v1206, %v1659
      %v1690 = vrot.slane %v1689, 6
      %v1691 = vsel %vm1675, %v1659, %v1206
      %v1692 = vrot.slane %v1691, 7
      %v1693 = vperm.slane %v1661, 0
      %v1694 = vperm.slane %v1661, 1
      %v1695 = vperm.slane %v1663, 0
      %v1696 = vperm.slane %v1663, 1
      %v1697 = vperm.slane %v1665, 0
      %v1698 = vperm.slane %v1665, 1
      %v1699 = vperm.slane %v1667, 0
      %v1700 = vperm.slane %v1667, 1
      %v1701 = vperm.slane %v1670, 0
      %v1702 = vperm.slane %v1670, 1
      %v1703 = vperm.slane %v1672, 0
      %v1704 = vperm.slane %v1672, 1
      %v1705 = vperm.slane %v1674, 0
      %v1706 = vperm.slane %v1674, 1
      %v1707 = vperm.slane %v1677, 0
      %v1708 = vperm.slane %v1677, 1
      %v1709 = vperm.slane %v1678, 0
      %v1710 = vperm.slane %v1678, 1
      %v1711 = vperm.slane %v1680, 0
      %v1712 = vperm.slane %v1680, 1
      %v1713 = vperm.slane %v1682, 0
      %v1714 = vperm.slane %v1682, 1
      %v1715 = vperm.slane %v1684, 0
      %v1716 = vperm.slane %v1684, 1
      %v1717 = vperm.slane %v1686, 0
      %v1718 = vperm.slane %v1686, 1
      %v1719 = vperm.slane %v1688, 0
      %v1720 = vperm.slane %v1688, 1
      %v1721 = vperm.slane %v1690, 0
      %v1722 = vperm.slane %v1690, 1
      %v1723 = vperm.slane %v1692, 0
      %v1724 = vperm.slane %v1692, 1
      %1725 = vrot.lane.b32.xlu0 %v1693, 9
      %v1726 = vpop.permute.xlu0 %1725
      %1727 = vrot.lane.b32.xlu0 %v1694, 9
      %v1728 = vpop.permute.xlu0 %1727
      %1729 = vrot.lane.b32.xlu0 %v1695, 9
      %v1730 = vpop.permute.xlu0 %1729
      %1731 = vrot.lane.b32.xlu0 %v1696, 9
      %v1732 = vpop.permute.xlu0 %1731
      %1733 = vrot.lane.b32.xlu0 %v1697, 9
      %v1734 = vpop.permute.xlu0 %1733
      %1735 = vrot.lane.b32.xlu0 %v1698, 9
      %v1736 = vpop.permute.xlu0 %1735
      %1737 = vrot.lane.b32.xlu0 %v1699, 9
      %v1738 = vpop.permute.xlu0 %1737
      %1739 = vrot.lane.b32.xlu0 %v1700, 9
      %v1740 = vpop.permute.xlu0 %1739
      %1741 = vrot.lane.b32.xlu0 %v1701, 9
      %v1742 = vpop.permute.xlu0 %1741
      %1743 = vrot.lane.b32.xlu0 %v1702, 9
      %v1744 = vpop.permute.xlu0 %1743
      %1745 = vrot.lane.b32.xlu0 %v1703, 9
      %v1746 = vpop.permute.xlu0 %1745
      %1747 = vrot.lane.b32.xlu0 %v1704, 9
      %v1748 = vpop.permute.xlu0 %1747
      %1749 = vrot.lane.b32.xlu0 %v1705, 9
      %v1750 = vpop.permute.xlu0 %1749
      %1751 = vrot.lane.b32.xlu0 %v1706, 9
      %v1752 = vpop.permute.xlu0 %1751
      %1753 = vrot.lane.b32.xlu0 %v1707, 9
      %v1754 = vpop.permute.xlu0 %1753
      %1755 = vrot.lane.b32.xlu0 %v1708, 9
      %v1756 = vpop.permute.xlu0 %1755
      %1757 = vrot.lane.b32.xlu0 %v1709, 9
      %v1758 = vpop.permute.xlu0 %1757
      %1759 = vrot.lane.b32.xlu0 %v1710, 9
      %v1760 = vpop.permute.xlu0 %1759
      %1761 = vrot.lane.b32.xlu0 %v1711, 9
      %v1762 = vpop.permute.xlu0 %1761
      %1763 = vrot.lane.b32.xlu0 %v1712, 9
      %v1764 = vpop.permute.xlu0 %1763
      %1765 = vrot.lane.b32.xlu0 %v1713, 9
      %v1766 = vpop.permute.xlu0 %1765
      %1767 = vrot.lane.b32.xlu0 %v1714, 9
      %v1768 = vpop.permute.xlu0 %1767
      %1769 = vrot.lane.b32.xlu0 %v1715, 9
      %v1770 = vpop.permute.xlu0 %1769
      %1771 = vrot.lane.b32.xlu0 %v1716, 9
      %v1772 = vpop.permute.xlu0 %1771
      %1773 = vrot.lane.b32.xlu0 %v1717, 9
      %v1774 = vpop.permute.xlu0 %1773
      %1775 = vrot.lane.b32.xlu0 %v1718, 9
      %v1776 = vpop.permute.xlu0 %1775
      %1777 = vrot.lane.b32.xlu0 %v1719, 9
      %v1778 = vpop.permute.xlu0 %1777
      %1779 = vrot.lane.b32.xlu0 %v1720, 9
      %v1780 = vpop.permute.xlu0 %1779
      %1781 = vrot.lane.b32.xlu0 %v1721, 9
      %v1782 = vpop.permute.xlu0 %1781
      %1783 = vrot.lane.b32.xlu0 %v1722, 9
      %v1784 = vpop.permute.xlu0 %1783
      %1785 = vrot.lane.b32.xlu0 %v1723, 9
      %v1786 = vpop.permute.xlu0 %1785
      %1787 = vrot.lane.b32.xlu0 %v1724, 9
      %v1788 = vpop.permute.xlu0 %1787
      %vm1789 = vcmask 72704
      %v1790 = vsel %vm1789, %v1726, %v1728
      %v1791 = vsel %vm1789, %v1730, %v1732
      %v1792 = vsel %vm1789, %v1734, %v1736
      %v1793 = vsel %vm1789, %v1738, %v1740
      %v1794 = vsel %vm1789, %v1742, %v1744
      %v1795 = vsel %vm1789, %v1746, %v1748
      %v1796 = vsel %vm1789, %v1750, %v1752
      %v1797 = vsel %vm1789, %v1754, %v1756
      %v1798 = vsel %vm1789, %v1758, %v1760
      %v1799 = vsel %vm1789, %v1762, %v1764
      %v1800 = vsel %vm1789, %v1766, %v1768
      %v1801 = vsel %vm1789, %v1770, %v1772
      %v1802 = vsel %vm1789, %v1774, %v1776
      %v1803 = vsel %vm1789, %v1778, %v1780
      %v1804 = vsel %vm1789, %v1782, %v1784
      %v1805 = vsel %vm1789, %v1786, %v1788
      %1822 = vst.msk [vmem:[%s219 + $0x7] sm:$0x1] %vm1239, %v1790
      %1823 = vst.msk [vmem:[%s219 + $0x1f] sm:$0x1] %vm1239, %v1791
      %1824 = vst.msk [vmem:[%s219 + $0x37] sm:$0x1] %vm1239, %v1792
      %1825 = vst.msk [vmem:[%s219 + $0x4f] sm:$0x1] %vm1239, %v1793
      %1826 = vst.msk [vmem:[%s219 + $0x67] sm:$0x1] %vm1239, %v1794
      %1827 = vst.msk [vmem:[%s219 + $0x7f] sm:$0x1] %vm1239, %v1795
      %1828 = vst.msk [vmem:[%s219 + $0x97] sm:$0x1] %vm1239, %v1796
      %1829 = vst.msk [vmem:[%s219 + $0xaf] sm:$0x1] %vm1239, %v1797
      %1830 = vst.msk [vmem:[%s219 + $0xc7] sm:$0x1] %vm1239, %v1798
      %1831 = vst.msk [vmem:[%s219 + $0xdf] sm:$0x1] %vm1239, %v1799
      %1832 = vst.msk [vmem:[%s219 + $0xf7] sm:$0x1] %vm1239, %v1800
      %1833 = vst.msk [vmem:[%s219 + $0x10f] sm:$0x1] %vm1239, %v1801
      %1834 = vst.msk [vmem:[%s219 + $0x127] sm:$0x1] %vm1239, %v1802
      %1835 = vst.msk [vmem:[%s219 + $0x13f] sm:$0x1] %vm1239, %v1803
      %1836 = vst.msk [vmem:[%s219 + $0x157] sm:$0x1] %vm1239, %v1804
      %1837 = vst.msk [vmem:[%s219 + $0x16f] sm:$0x1] %vm1239, %v1805
      %v1838 = vrot.slane %v1204, 1
      %v1839 = vrot.slane %v1204, 2
      %v1840 = vrot.slane %v1204, 3
      %v1841 = vrot.slane %v1204, 4
      %v1842 = vrot.slane %v1204, 5
      %v1843 = vrot.slane %v1204, 6
      %v1844 = vrot.slane %v1207, 1
      %v1845 = vrot.slane %v1207, 2
      %v1846 = vrot.slane %v1207, 3
      %v1847 = vrot.slane %v1207, 4
      %v1848 = vrot.slane %v1207, 5
      %v1849 = vrot.slane %v1207, 6
      %v1850 = vperm.slane %v1204, 0
      %v1851 = vperm.slane %v1838, 0
      %v1852 = vperm.slane %v1839, 0
      %v1853 = vperm.slane %v1840, 0
      %v1854 = vperm.slane %v1841, 0
      %v1855 = vperm.slane %v1842, 0
      %v1856 = vperm.slane %v1843, 0
      %v1857 = vperm.slane %v1658, 0
      %v1858 = vperm.slane %v1207, 0
      %v1859 = vperm.slane %v1844, 0
      %v1860 = vperm.slane %v1845, 0
      %v1861 = vperm.slane %v1846, 0
      %v1862 = vperm.slane %v1847, 0
      %v1863 = vperm.slane %v1848, 0
      %v1864 = vperm.slane %v1849, 0
      %v1865 = vperm.slane %v1659, 0
      %1866 = vrot.lane.b32.xlu0 %v1850, 120
      %v1867 = vpop.permute.xlu0 %1866
      %1868 = vrot.lane.b32.xlu0 %v1851, 120
      %v1869 = vpop.permute.xlu0 %1868
      %1870 = vrot.lane.b32.xlu0 %v1852, 120
      %v1871 = vpop.permute.xlu0 %1870
      %1872 = vrot.lane.b32.xlu0 %v1853, 120
      %v1873 = vpop.permute.xlu0 %1872
      %1874 = vrot.lane.b32.xlu0 %v1854, 120
      %v1875 = vpop.permute.xlu0 %1874
      %1876 = vrot.lane.b32.xlu0 %v1855, 120
      %v1877 = vpop.permute.xlu0 %1876
      %1878 = vrot.lane.b32.xlu0 %v1856, 120
      %v1879 = vpop.permute.xlu0 %1878
      %1880 = vrot.lane.b32.xlu0 %v1857, 120
      %v1881 = vpop.permute.xlu0 %1880
      %1882 = vrot.lane.b32.xlu0 %v1858, 120
      %v1883 = vpop.permute.xlu0 %1882
      %1884 = vrot.lane.b32.xlu0 %v1859, 120
      %v1885 = vpop.permute.xlu0 %1884
      %1886 = vrot.lane.b32.xlu0 %v1860, 120
      %v1887 = vpop.permute.xlu0 %1886
      %1888 = vrot.lane.b32.xlu0 %v1861, 120
      %v1889 = vpop.permute.xlu0 %1888
      %1890 = vrot.lane.b32.xlu0 %v1862, 120
      %v1891 = vpop.permute.xlu0 %1890
      %1892 = vrot.lane.b32.xlu0 %v1863, 120
      %v1893 = vpop.permute.xlu0 %1892
      %1894 = vrot.lane.b32.xlu0 %v1864, 120
      %v1895 = vpop.permute.xlu0 %1894
      %1896 = vrot.lane.b32.xlu0 %v1865, 120
      %v1897 = vpop.permute.xlu0 %1896
      %1914 = vst.msk [vmem:[%s219 + $0x8] sm:$0x1] %vm1239, %v1867
      %1915 = vst.msk [vmem:[%s219 + $0x20] sm:$0x1] %vm1239, %v1869
      %1916 = vst.msk [vmem:[%s219 + $0x38] sm:$0x1] %vm1239, %v1871
      %1917 = vst.msk [vmem:[%s219 + $0x50] sm:$0x1] %vm1239, %v1873
      %1918 = vst.msk [vmem:[%s219 + $0x68] sm:$0x1] %vm1239, %v1875
      %1919 = vst.msk [vmem:[%s219 + $0x80] sm:$0x1] %vm1239, %v1877
      %1920 = vst.msk [vmem:[%s219 + $0x98] sm:$0x1] %vm1239, %v1879
      %1921 = vst.msk [vmem:[%s219 + $0xb0] sm:$0x1] %vm1239, %v1881
      %1922 = vst.msk [vmem:[%s219 + $0xc8] sm:$0x1] %vm1239, %v1883
      %1923 = vst.msk [vmem:[%s219 + $0xe0] sm:$0x1] %vm1239, %v1885
      %1924 = vst.msk [vmem:[%s219 + $0xf8] sm:$0x1] %vm1239, %v1887
      %1925 = vst.msk [vmem:[%s219 + $0x110] sm:$0x1] %vm1239, %v1889
      %1926 = vst.msk [vmem:[%s219 + $0x128] sm:$0x1] %vm1239, %v1891
      %1927 = vst.msk [vmem:[%s219 + $0x140] sm:$0x1] %vm1239, %v1893
      %1928 = vst.msk [vmem:[%s219 + $0x158] sm:$0x1] %vm1239, %v1895
      %1929 = vst.msk [vmem:[%s219 + $0x170] sm:$0x1] %vm1239, %v1897
      %1930 = vrot.lane.b32.xlu0 %v1850, 103
      %v1931 = vpop.permute.xlu0 %1930
      %1932 = vrot.lane.b32.xlu0 %v1851, 103
      %v1933 = vpop.permute.xlu0 %1932
      %1934 = vrot.lane.b32.xlu0 %v1852, 103
      %v1935 = vpop.permute.xlu0 %1934
      %1936 = vrot.lane.b32.xlu0 %v1853, 103
      %v1937 = vpop.permute.xlu0 %1936
      %1938 = vrot.lane.b32.xlu0 %v1854, 103
      %v1939 = vpop.permute.xlu0 %1938
      %1940 = vrot.lane.b32.xlu0 %v1855, 103
      %v1941 = vpop.permute.xlu0 %1940
      %1942 = vrot.lane.b32.xlu0 %v1856, 103
      %v1943 = vpop.permute.xlu0 %1942
      %1944 = vrot.lane.b32.xlu0 %v1857, 103
      %v1945 = vpop.permute.xlu0 %1944
      %1946 = vrot.lane.b32.xlu0 %v1858, 103
      %v1947 = vpop.permute.xlu0 %1946
      %1948 = vrot.lane.b32.xlu0 %v1859, 103
      %v1949 = vpop.permute.xlu0 %1948
      %1950 = vrot.lane.b32.xlu0 %v1860, 103
      %v1951 = vpop.permute.xlu0 %1950
      %1952 = vrot.lane.b32.xlu0 %v1861, 103
      %v1953 = vpop.permute.xlu0 %1952
      %1954 = vrot.lane.b32.xlu0 %v1862, 103
      %v1955 = vpop.permute.xlu0 %1954
      %1956 = vrot.lane.b32.xlu0 %v1863, 103
      %v1957 = vpop.permute.xlu0 %1956
      %1958 = vrot.lane.b32.xlu0 %v1864, 103
      %v1959 = vpop.permute.xlu0 %1958
      %1960 = vrot.lane.b32.xlu0 %v1865, 103
      %v1961 = vpop.permute.xlu0 %1960
      %1978 = vst.msk [vmem:[%s219 + $0x9] sm:$0x1] %vm1239, %v1931
      %1979 = vst.msk [vmem:[%s219 + $0x21] sm:$0x1] %vm1239, %v1933
      %1980 = vst.msk [vmem:[%s219 + $0x39] sm:$0x1] %vm1239, %v1935
      %1981 = vst.msk [vmem:[%s219 + $0x51] sm:$0x1] %vm1239, %v1937
      %1982 = vst.msk [vmem:[%s219 + $0x69] sm:$0x1] %vm1239, %v1939
      %1983 = vst.msk [vmem:[%s219 + $0x81] sm:$0x1] %vm1239, %v1941
      %1984 = vst.msk [vmem:[%s219 + $0x99] sm:$0x1] %vm1239, %v1943
      %1985 = vst.msk [vmem:[%s219 + $0xb1] sm:$0x1] %vm1239, %v1945
      %1986 = vst.msk [vmem:[%s219 + $0xc9] sm:$0x1] %vm1239, %v1947
      %1987 = vst.msk [vmem:[%s219 + $0xe1] sm:$0x1] %vm1239, %v1949
      %1988 = vst.msk [vmem:[%s219 + $0xf9] sm:$0x1] %vm1239, %v1951
      %1989 = vst.msk [vmem:[%s219 + $0x111] sm:$0x1] %vm1239, %v1953
      %1990 = vst.msk [vmem:[%s219 + $0x129] sm:$0x1] %vm1239, %v1955
      %1991 = vst.msk [vmem:[%s219 + $0x141] sm:$0x1] %vm1239, %v1957
      %1992 = vst.msk [vmem:[%s219 + $0x159] sm:$0x1] %vm1239, %v1959
      %1993 = vst.msk [vmem:[%s219 + $0x171] sm:$0x1] %vm1239, %v1961
      %1994 = vrot.lane.b32.xlu0 %v1850, 86
      %v1995 = vpop.permute.xlu0 %1994
      %1996 = vrot.lane.b32.xlu0 %v1851, 86
      %v1997 = vpop.permute.xlu0 %1996
      %1998 = vrot.lane.b32.xlu0 %v1852, 86
      %v1999 = vpop.permute.xlu0 %1998
      %2000 = vrot.lane.b32.xlu0 %v1853, 86
      %v2001 = vpop.permute.xlu0 %2000
      %2002 = vrot.lane.b32.xlu0 %v1854, 86
      %v2003 = vpop.permute.xlu0 %2002
      %2004 = vrot.lane.b32.xlu0 %v1855, 86
      %v2005 = vpop.permute.xlu0 %2004
      %2006 = vrot.lane.b32.xlu0 %v1856, 86
      %v2007 = vpop.permute.xlu0 %2006
      %2008 = vrot.lane.b32.xlu0 %v1857, 86
      %v2009 = vpop.permute.xlu0 %2008
      %2010 = vrot.lane.b32.xlu0 %v1858, 86
      %v2011 = vpop.permute.xlu0 %2010
      %2012 = vrot.lane.b32.xlu0 %v1859, 86
      %v2013 = vpop.permute.xlu0 %2012
      %2014 = vrot.lane.b32.xlu0 %v1860, 86
      %v2015 = vpop.permute.xlu0 %2014
      %2016 = vrot.lane.b32.xlu0 %v1861, 86
      %v2017 = vpop.permute.xlu0 %2016
      %2018 = vrot.lane.b32.xlu0 %v1862, 86
      %v2019 = vpop.permute.xlu0 %2018
      %2020 = vrot.lane.b32.xlu0 %v1863, 86
      %v2021 = vpop.permute.xlu0 %2020
      %2022 = vrot.lane.b32.xlu0 %v1864, 86
      %v2023 = vpop.permute.xlu0 %2022
      %2024 = vrot.lane.b32.xlu0 %v1865, 86
      %v2025 = vpop.permute.xlu0 %2024
      %2042 = vst.msk [vmem:[%s219 + $0xa] sm:$0x1] %vm1239, %v1995
      %2043 = vst.msk [vmem:[%s219 + $0x22] sm:$0x1] %vm1239, %v1997
      %2044 = vst.msk [vmem:[%s219 + $0x3a] sm:$0x1] %vm1239, %v1999
      %2045 = vst.msk [vmem:[%s219 + $0x52] sm:$0x1] %vm1239, %v2001
      %2046 = vst.msk [vmem:[%s219 + $0x6a] sm:$0x1] %vm1239, %v2003
      %2047 = vst.msk [vmem:[%s219 + $0x82] sm:$0x1] %vm1239, %v2005
      %2048 = vst.msk [vmem:[%s219 + $0x9a] sm:$0x1] %vm1239, %v2007
      %2049 = vst.msk [vmem:[%s219 + $0xb2] sm:$0x1] %vm1239, %v2009
      %2050 = vst.msk [vmem:[%s219 + $0xca] sm:$0x1] %vm1239, %v2011
      %2051 = vst.msk [vmem:[%s219 + $0xe2] sm:$0x1] %vm1239, %v2013
      %2052 = vst.msk [vmem:[%s219 + $0xfa] sm:$0x1] %vm1239, %v2015
      %2053 = vst.msk [vmem:[%s219 + $0x112] sm:$0x1] %vm1239, %v2017
      %2054 = vst.msk [vmem:[%s219 + $0x12a] sm:$0x1] %vm1239, %v2019
      %2055 = vst.msk [vmem:[%s219 + $0x142] sm:$0x1] %vm1239, %v2021
      %2056 = vst.msk [vmem:[%s219 + $0x15a] sm:$0x1] %vm1239, %v2023
      %2057 = vst.msk [vmem:[%s219 + $0x172] sm:$0x1] %vm1239, %v2025
      %2058 = vrot.lane.b32.xlu0 %v1850, 69
      %v2059 = vpop.permute.xlu0 %2058
      %2060 = vrot.lane.b32.xlu0 %v1851, 69
      %v2061 = vpop.permute.xlu0 %2060
      %2062 = vrot.lane.b32.xlu0 %v1852, 69
      %v2063 = vpop.permute.xlu0 %2062
      %2064 = vrot.lane.b32.xlu0 %v1853, 69
      %v2065 = vpop.permute.xlu0 %2064
      %2066 = vrot.lane.b32.xlu0 %v1854, 69
      %v2067 = vpop.permute.xlu0 %2066
      %2068 = vrot.lane.b32.xlu0 %v1855, 69
      %v2069 = vpop.permute.xlu0 %2068
      %2070 = vrot.lane.b32.xlu0 %v1856, 69
      %v2071 = vpop.permute.xlu0 %2070
      %2072 = vrot.lane.b32.xlu0 %v1857, 69
      %v2073 = vpop.permute.xlu0 %2072
      %2074 = vrot.lane.b32.xlu0 %v1858, 69
      %v2075 = vpop.permute.xlu0 %2074
      %2076 = vrot.lane.b32.xlu0 %v1859, 69
      %v2077 = vpop.permute.xlu0 %2076
      %2078 = vrot.lane.b32.xlu0 %v1860, 69
      %v2079 = vpop.permute.xlu0 %2078
      %2080 = vrot.lane.b32.xlu0 %v1861, 69
      %v2081 = vpop.permute.xlu0 %2080
      %2082 = vrot.lane.b32.xlu0 %v1862, 69
      %v2083 = vpop.permute.xlu0 %2082
      %2084 = vrot.lane.b32.xlu0 %v1863, 69
      %v2085 = vpop.permute.xlu0 %2084
      %2086 = vrot.lane.b32.xlu0 %v1864, 69
      %v2087 = vpop.permute.xlu0 %2086
      %2088 = vrot.lane.b32.xlu0 %v1865, 69
      %v2089 = vpop.permute.xlu0 %2088
      %2106 = vst.msk [vmem:[%s219 + $0xb] sm:$0x1] %vm1239, %v2059
      %2107 = vst.msk [vmem:[%s219 + $0x23] sm:$0x1] %vm1239, %v2061
      %2108 = vst.msk [vmem:[%s219 + $0x3b] sm:$0x1] %vm1239, %v2063
      %2109 = vst.msk [vmem:[%s219 + $0x53] sm:$0x1] %vm1239, %v2065
      %2110 = vst.msk [vmem:[%s219 + $0x6b] sm:$0x1] %vm1239, %v2067
      %2111 = vst.msk [vmem:[%s219 + $0x83] sm:$0x1] %vm1239, %v2069
      %2112 = vst.msk [vmem:[%s219 + $0x9b] sm:$0x1] %vm1239, %v2071
      %2113 = vst.msk [vmem:[%s219 + $0xb3] sm:$0x1] %vm1239, %v2073
      %2114 = vst.msk [vmem:[%s219 + $0xcb] sm:$0x1] %vm1239, %v2075
      %2115 = vst.msk [vmem:[%s219 + $0xe3] sm:$0x1] %vm1239, %v2077
      %2116 = vst.msk [vmem:[%s219 + $0xfb] sm:$0x1] %vm1239, %v2079
      %2117 = vst.msk [vmem:[%s219 + $0x113] sm:$0x1] %vm1239, %v2081
      %2118 = vst.msk [vmem:[%s219 + $0x12b] sm:$0x1] %vm1239, %v2083
      %2119 = vst.msk [vmem:[%s219 + $0x143] sm:$0x1] %vm1239, %v2085
      %2120 = vst.msk [vmem:[%s219 + $0x15b] sm:$0x1] %vm1239, %v2087
      %2121 = vst.msk [vmem:[%s219 + $0x173] sm:$0x1] %vm1239, %v2089
      %2122 = vrot.lane.b32.xlu0 %v1850, 52
      %v2123 = vpop.permute.xlu0 %2122
      %2124 = vrot.lane.b32.xlu0 %v1851, 52
      %v2125 = vpop.permute.xlu0 %2124
      %2126 = vrot.lane.b32.xlu0 %v1852, 52
      %v2127 = vpop.permute.xlu0 %2126
      %2128 = vrot.lane.b32.xlu0 %v1853, 52
      %v2129 = vpop.permute.xlu0 %2128
      %2130 = vrot.lane.b32.xlu0 %v1854, 52
      %v2131 = vpop.permute.xlu0 %2130
      %2132 = vrot.lane.b32.xlu0 %v1855, 52
      %v2133 = vpop.permute.xlu0 %2132
      %2134 = vrot.lane.b32.xlu0 %v1856, 52
      %v2135 = vpop.permute.xlu0 %2134
      %2136 = vrot.lane.b32.xlu0 %v1857, 52
      %v2137 = vpop.permute.xlu0 %2136
      %2138 = vrot.lane.b32.xlu0 %v1858, 52
      %v2139 = vpop.permute.xlu0 %2138
      %2140 = vrot.lane.b32.xlu0 %v1859, 52
      %v2141 = vpop.permute.xlu0 %2140
      %2142 = vrot.lane.b32.xlu0 %v1860, 52
      %v2143 = vpop.permute.xlu0 %2142
      %2144 = vrot.lane.b32.xlu0 %v1861, 52
      %v2145 = vpop.permute.xlu0 %2144
      %2146 = vrot.lane.b32.xlu0 %v1862, 52
      %v2147 = vpop.permute.xlu0 %2146
      %2148 = vrot.lane.b32.xlu0 %v1863, 52
      %v2149 = vpop.permute.xlu0 %2148
      %2150 = vrot.lane.b32.xlu0 %v1864, 52
      %v2151 = vpop.permute.xlu0 %2150
      %2152 = vrot.lane.b32.xlu0 %v1865, 52
      %v2153 = vpop.permute.xlu0 %2152
      %2170 = vst.msk [vmem:[%s219 + $0xc] sm:$0x1] %vm1239, %v2123
      %2171 = vst.msk [vmem:[%s219 + $0x24] sm:$0x1] %vm1239, %v2125
      %2172 = vst.msk [vmem:[%s219 + $0x3c] sm:$0x1] %vm1239, %v2127
      %2173 = vst.msk [vmem:[%s219 + $0x54] sm:$0x1] %vm1239, %v2129
      %2174 = vst.msk [vmem:[%s219 + $0x6c] sm:$0x1] %vm1239, %v2131
      %2175 = vst.msk [vmem:[%s219 + $0x84] sm:$0x1] %vm1239, %v2133
      %2176 = vst.msk [vmem:[%s219 + $0x9c] sm:$0x1] %vm1239, %v2135
      %2177 = vst.msk [vmem:[%s219 + $0xb4] sm:$0x1] %vm1239, %v2137
      %2178 = vst.msk [vmem:[%s219 + $0xcc] sm:$0x1] %vm1239, %v2139
      %2179 = vst.msk [vmem:[%s219 + $0xe4] sm:$0x1] %vm1239, %v2141
      %2180 = vst.msk [vmem:[%s219 + $0xfc] sm:$0x1] %vm1239, %v2143
      %2181 = vst.msk [vmem:[%s219 + $0x114] sm:$0x1] %vm1239, %v2145
      %2182 = vst.msk [vmem:[%s219 + $0x12c] sm:$0x1] %vm1239, %v2147
      %2183 = vst.msk [vmem:[%s219 + $0x144] sm:$0x1] %vm1239, %v2149
      %2184 = vst.msk [vmem:[%s219 + $0x15c] sm:$0x1] %vm1239, %v2151
      %2185 = vst.msk [vmem:[%s219 + $0x174] sm:$0x1] %vm1239, %v2153
      %2186 = vrot.lane.b32.xlu0 %v1850, 35
      %v2187 = vpop.permute.xlu0 %2186
      %2188 = vrot.lane.b32.xlu0 %v1851, 35
      %v2189 = vpop.permute.xlu0 %2188
      %2190 = vrot.lane.b32.xlu0 %v1852, 35
      %v2191 = vpop.permute.xlu0 %2190
      %2192 = vrot.lane.b32.xlu0 %v1853, 35
      %v2193 = vpop.permute.xlu0 %2192
      %2194 = vrot.lane.b32.xlu0 %v1854, 35
      %v2195 = vpop.permute.xlu0 %2194
      %2196 = vrot.lane.b32.xlu0 %v1855, 35
      %v2197 = vpop.permute.xlu0 %2196
      %2198 = vrot.lane.b32.xlu0 %v1856, 35
      %v2199 = vpop.permute.xlu0 %2198
      %2200 = vrot.lane.b32.xlu0 %v1857, 35
      %v2201 = vpop.permute.xlu0 %2200
      %2202 = vrot.lane.b32.xlu0 %v1858, 35
      %v2203 = vpop.permute.xlu0 %2202
      %2204 = vrot.lane.b32.xlu0 %v1859, 35
      %v2205 = vpop.permute.xlu0 %2204
      %2206 = vrot.lane.b32.xlu0 %v1860, 35
      %v2207 = vpop.permute.xlu0 %2206
      %2208 = vrot.lane.b32.xlu0 %v1861, 35
      %v2209 = vpop.permute.xlu0 %2208
      %2210 = vrot.lane.b32.xlu0 %v1862, 35
      %v2211 = vpop.permute.xlu0 %2210
      %2212 = vrot.lane.b32.xlu0 %v1863, 35
      %v2213 = vpop.permute.xlu0 %2212
      %2214 = vrot.lane.b32.xlu0 %v1864, 35
      %v2215 = vpop.permute.xlu0 %2214
      %2216 = vrot.lane.b32.xlu0 %v1865, 35
      %v2217 = vpop.permute.xlu0 %2216
      %2234 = vst.msk [vmem:[%s219 + $0xd] sm:$0x1] %vm1239, %v2187
      %2235 = vst.msk [vmem:[%s219 + $0x25] sm:$0x1] %vm1239, %v2189
      %2236 = vst.msk [vmem:[%s219 + $0x3d] sm:$0x1] %vm1239, %v2191
      %2237 = vst.msk [vmem:[%s219 + $0x55] sm:$0x1] %vm1239, %v2193
      %2238 = vst.msk [vmem:[%s219 + $0x6d] sm:$0x1] %vm1239, %v2195
      %2239 = vst.msk [vmem:[%s219 + $0x85] sm:$0x1] %vm1239, %v2197
      %2240 = vst.msk [vmem:[%s219 + $0x9d] sm:$0x1] %vm1239, %v2199
      %2241 = vst.msk [vmem:[%s219 + $0xb5] sm:$0x1] %vm1239, %v2201
      %2242 = vst.msk [vmem:[%s219 + $0xcd] sm:$0x1] %vm1239, %v2203
      %2243 = vst.msk [vmem:[%s219 + $0xe5] sm:$0x1] %vm1239, %v2205
      %2244 = vst.msk [vmem:[%s219 + $0xfd] sm:$0x1] %vm1239, %v2207
      %2245 = vst.msk [vmem:[%s219 + $0x115] sm:$0x1] %vm1239, %v2209
      %2246 = vst.msk [vmem:[%s219 + $0x12d] sm:$0x1] %vm1239, %v2211
      %2247 = vst.msk [vmem:[%s219 + $0x145] sm:$0x1] %vm1239, %v2213
      %2248 = vst.msk [vmem:[%s219 + $0x15d] sm:$0x1] %vm1239, %v2215
      %2249 = vst.msk [vmem:[%s219 + $0x175] sm:$0x1] %vm1239, %v2217
      %2250 = vrot.lane.b32.xlu0 %v1850, 18
      %v2251 = vpop.permute.xlu0 %2250
      %2252 = vrot.lane.b32.xlu0 %v1851, 18
      %v2253 = vpop.permute.xlu0 %2252
      %2254 = vrot.lane.b32.xlu0 %v1852, 18
      %v2255 = vpop.permute.xlu0 %2254
      %2256 = vrot.lane.b32.xlu0 %v1853, 18
      %v2257 = vpop.permute.xlu0 %2256
      %2258 = vrot.lane.b32.xlu0 %v1854, 18
      %v2259 = vpop.permute.xlu0 %2258
      %2260 = vrot.lane.b32.xlu0 %v1855, 18
      %v2261 = vpop.permute.xlu0 %2260
      %2262 = vrot.lane.b32.xlu0 %v1856, 18
      %v2263 = vpop.permute.xlu0 %2262
      %2264 = vrot.lane.b32.xlu0 %v1857, 18
      %v2265 = vpop.permute.xlu0 %2264
      %2266 = vrot.lane.b32.xlu0 %v1858, 18
      %v2267 = vpop.permute.xlu0 %2266
      %2268 = vrot.lane.b32.xlu0 %v1859, 18
      %v2269 = vpop.permute.xlu0 %2268
      %2270 = vrot.lane.b32.xlu0 %v1860, 18
      %v2271 = vpop.permute.xlu0 %2270
      %2272 = vrot.lane.b32.xlu0 %v1861, 18
      %v2273 = vpop.permute.xlu0 %2272
      %2274 = vrot.lane.b32.xlu0 %v1862, 18
      %v2275 = vpop.permute.xlu0 %2274
      %2276 = vrot.lane.b32.xlu0 %v1863, 18
      %v2277 = vpop.permute.xlu0 %2276
      %2278 = vrot.lane.b32.xlu0 %v1864, 18
      %v2279 = vpop.permute.xlu0 %2278
      %2280 = vrot.lane.b32.xlu0 %v1865, 18
      %v2281 = vpop.permute.xlu0 %2280
      %2298 = vst.msk [vmem:[%s219 + $0xe] sm:$0x1] %vm1239, %v2251
      %2299 = vst.msk [vmem:[%s219 + $0x26] sm:$0x1] %vm1239, %v2253
      %2300 = vst.msk [vmem:[%s219 + $0x3e] sm:$0x1] %vm1239, %v2255
      %2301 = vst.msk [vmem:[%s219 + $0x56] sm:$0x1] %vm1239, %v2257
      %2302 = vst.msk [vmem:[%s219 + $0x6e] sm:$0x1] %vm1239, %v2259
      %2303 = vst.msk [vmem:[%s219 + $0x86] sm:$0x1] %vm1239, %v2261
      %2304 = vst.msk [vmem:[%s219 + $0x9e] sm:$0x1] %vm1239, %v2263
      %2305 = vst.msk [vmem:[%s219 + $0xb6] sm:$0x1] %vm1239, %v2265
      %2306 = vst.msk [vmem:[%s219 + $0xce] sm:$0x1] %vm1239, %v2267
      %2307 = vst.msk [vmem:[%s219 + $0xe6] sm:$0x1] %vm1239, %v2269
      %2308 = vst.msk [vmem:[%s219 + $0xfe] sm:$0x1] %vm1239, %v2271
      %2309 = vst.msk [vmem:[%s219 + $0x116] sm:$0x1] %vm1239, %v2273
      %2310 = vst.msk [vmem:[%s219 + $0x12e] sm:$0x1] %vm1239, %v2275
      %2311 = vst.msk [vmem:[%s219 + $0x146] sm:$0x1] %vm1239, %v2277
      %2312 = vst.msk [vmem:[%s219 + $0x15e] sm:$0x1] %vm1239, %v2279
      %2313 = vst.msk [vmem:[%s219 + $0x176] sm:$0x1] %vm1239, %v2281
      %v2316 = vrot.slane %v1205, 7
      %v2317 = vrot.slane %v1208, 7
      %v2318 = vsel %vm1660, %v1204, %v2316
      %v2319 = vsel %vm240, %v1204, %v2316
      %v2320 = vrot.slane %v2319, 1
      %v2321 = vsel %vm243, %v1204, %v2316
      %v2322 = vrot.slane %v2321, 2
      %v2323 = vsel %vm246, %v1204, %v2316
      %v2324 = vrot.slane %v2323, 3
      %v2325 = vsel %vm1668, %v1204, %v2316
      %v2326 = vrot.slane %v2325, 4
      %v2327 = vsel %vm465, %v1204, %v2316
      %v2328 = vrot.slane %v2327, 5
      %v2329 = vsel %vm468, %v1204, %v2316
      %v2330 = vrot.slane %v2329, 6
      %v2331 = vsel %vm1675, %v2316, %v1204
      %v2332 = vrot.slane %v2331, 7
      %v2333 = vsel %vm1660, %v1207, %v2317
      %v2334 = vsel %vm240, %v1207, %v2317
      %v2335 = vrot.slane %v2334, 1
      %v2336 = vsel %vm243, %v1207, %v2317
      %v2337 = vrot.slane %v2336, 2
      %v2338 = vsel %vm246, %v1207, %v2317
      %v2339 = vrot.slane %v2338, 3
      %v2340 = vsel %vm1668, %v1207, %v2317
      %v2341 = vrot.slane %v2340, 4
      %v2342 = vsel %vm465, %v1207, %v2317
      %v2343 = vrot.slane %v2342, 5
      %v2344 = vsel %vm468, %v1207, %v2317
      %v2345 = vrot.slane %v2344, 6
      %v2346 = vsel %vm1675, %v2317, %v1207
      %v2347 = vrot.slane %v2346, 7
      %v2348 = vperm.slane %v2318, 0
      %v2349 = vperm.slane %v2318, 1
      %v2350 = vperm.slane %v2320, 0
      %v2351 = vperm.slane %v2320, 1
      %v2352 = vperm.slane %v2322, 0
      %v2353 = vperm.slane %v2322, 1
      %v2354 = vperm.slane %v2324, 0
      %v2355 = vperm.slane %v2324, 1
      %v2356 = vperm.slane %v2326, 0
      %v2357 = vperm.slane %v2326, 1
      %v2358 = vperm.slane %v2328, 0
      %v2359 = vperm.slane %v2328, 1
      %v2360 = vperm.slane %v2330, 0
      %v2361 = vperm.slane %v2330, 1
      %v2362 = vperm.slane %v2332, 0
      %v2363 = vperm.slane %v2332, 1
      %v2364 = vperm.slane %v2333, 0
      %v2365 = vperm.slane %v2333, 1
      %v2366 = vperm.slane %v2335, 0
      %v2367 = vperm.slane %v2335, 1
      %v2368 = vperm.slane %v2337, 0
      %v2369 = vperm.slane %v2337, 1
      %v2370 = vperm.slane %v2339, 0
      %v2371 = vperm.slane %v2339, 1
      %v2372 = vperm.slane %v2341, 0
      %v2373 = vperm.slane %v2341, 1
      %v2374 = vperm.slane %v2343, 0
      %v2375 = vperm.slane %v2343, 1
      %v2376 = vperm.slane %v2345, 0
      %v2377 = vperm.slane %v2345, 1
      %v2378 = vperm.slane %v2347, 0
      %v2379 = vperm.slane %v2347, 1
      %2380 = vrot.lane.b32.xlu0 %v2348, 1
      %v2381 = vpop.permute.xlu0 %2380
      %2382 = vrot.lane.b32.xlu0 %v2349, 1
      %v2383 = vpop.permute.xlu0 %2382
      %2384 = vrot.lane.b32.xlu0 %v2350, 1
      %v2385 = vpop.permute.xlu0 %2384
      %2386 = vrot.lane.b32.xlu0 %v2351, 1
      %v2387 = vpop.permute.xlu0 %2386
      %2388 = vrot.lane.b32.xlu0 %v2352, 1
      %v2389 = vpop.permute.xlu0 %2388
      %2390 = vrot.lane.b32.xlu0 %v2353, 1
      %v2391 = vpop.permute.xlu0 %2390
      %2392 = vrot.lane.b32.xlu0 %v2354, 1
      %v2393 = vpop.permute.xlu0 %2392
      %2394 = vrot.lane.b32.xlu0 %v2355, 1
      %v2395 = vpop.permute.xlu0 %2394
      %2396 = vrot.lane.b32.xlu0 %v2356, 1
      %v2397 = vpop.permute.xlu0 %2396
      %2398 = vrot.lane.b32.xlu0 %v2357, 1
      %v2399 = vpop.permute.xlu0 %2398
      %2400 = vrot.lane.b32.xlu0 %v2358, 1
      %v2401 = vpop.permute.xlu0 %2400
      %2402 = vrot.lane.b32.xlu0 %v2359, 1
      %v2403 = vpop.permute.xlu0 %2402
      %2404 = vrot.lane.b32.xlu0 %v2360, 1
      %v2405 = vpop.permute.xlu0 %2404
      %2406 = vrot.lane.b32.xlu0 %v2361, 1
      %v2407 = vpop.permute.xlu0 %2406
      %2408 = vrot.lane.b32.xlu0 %v2362, 1
      %v2409 = vpop.permute.xlu0 %2408
      %2410 = vrot.lane.b32.xlu0 %v2363, 1
      %v2411 = vpop.permute.xlu0 %2410
      %2412 = vrot.lane.b32.xlu0 %v2364, 1
      %v2413 = vpop.permute.xlu0 %2412
      %2414 = vrot.lane.b32.xlu0 %v2365, 1
      %v2415 = vpop.permute.xlu0 %2414
      %2416 = vrot.lane.b32.xlu0 %v2366, 1
      %v2417 = vpop.permute.xlu0 %2416
      %2418 = vrot.lane.b32.xlu0 %v2367, 1
      %v2419 = vpop.permute.xlu0 %2418
      %2420 = vrot.lane.b32.xlu0 %v2368, 1
      %v2421 = vpop.permute.xlu0 %2420
      %2422 = vrot.lane.b32.xlu0 %v2369, 1
      %v2423 = vpop.permute.xlu0 %2422
      %2424 = vrot.lane.b32.xlu0 %v2370, 1
      %v2425 = vpop.permute.xlu0 %2424
      %2426 = vrot.lane.b32.xlu0 %v2371, 1
      %v2427 = vpop.permute.xlu0 %2426
      %2428 = vrot.lane.b32.xlu0 %v2372, 1
      %v2429 = vpop.permute.xlu0 %2428
      %2430 = vrot.lane.b32.xlu0 %v2373, 1
      %v2431 = vpop.permute.xlu0 %2430
      %2432 = vrot.lane.b32.xlu0 %v2374, 1
      %v2433 = vpop.permute.xlu0 %2432
      %2434 = vrot.lane.b32.xlu0 %v2375, 1
      %v2435 = vpop.permute.xlu0 %2434
      %2436 = vrot.lane.b32.xlu0 %v2376, 1
      %v2437 = vpop.permute.xlu0 %2436
      %2438 = vrot.lane.b32.xlu0 %v2377, 1
      %v2439 = vpop.permute.xlu0 %2438
      %2440 = vrot.lane.b32.xlu0 %v2378, 1
      %v2441 = vpop.permute.xlu0 %2440
      %2442 = vrot.lane.b32.xlu0 %v2379, 1
      %v2443 = vpop.permute.xlu0 %2442
      %vm2444 = vcmask 7168
      %v2445 = vsel %vm2444, %v2381, %v2383
      %v2446 = vsel %vm2444, %v2385, %v2387
      %v2447 = vsel %vm2444, %v2389, %v2391
      %v2448 = vsel %vm2444, %v2393, %v2395
      %v2449 = vsel %vm2444, %v2397, %v2399
      %v2450 = vsel %vm2444, %v2401, %v2403
      %v2451 = vsel %vm2444, %v2405, %v2407
      %v2452 = vsel %vm2444, %v2409, %v2411
      %v2453 = vsel %vm2444, %v2413, %v2415
      %v2454 = vsel %vm2444, %v2417, %v2419
      %v2455 = vsel %vm2444, %v2421, %v2423
      %v2456 = vsel %vm2444, %v2425, %v2427
      %v2457 = vsel %vm2444, %v2429, %v2431
      %v2458 = vsel %vm2444, %v2433, %v2435
      %v2459 = vsel %vm2444, %v2437, %v2439
      %v2460 = vsel %vm2444, %v2441, %v2443
      %2477 = vst.msk [vmem:[%s219 + $0xf] sm:$0x1] %vm1239, %v2445
      %2478 = vst.msk [vmem:[%s219 + $0x27] sm:$0x1] %vm1239, %v2446
      %2479 = vst.msk [vmem:[%s219 + $0x3f] sm:$0x1] %vm1239, %v2447
      %2480 = vst.msk [vmem:[%s219 + $0x57] sm:$0x1] %vm1239, %v2448
      %2481 = vst.msk [vmem:[%s219 + $0x6f] sm:$0x1] %vm1239, %v2449
      %2482 = vst.msk [vmem:[%s219 + $0x87] sm:$0x1] %vm1239, %v2450
      %2483 = vst.msk [vmem:[%s219 + $0x9f] sm:$0x1] %vm1239, %v2451
      %2484 = vst.msk [vmem:[%s219 + $0xb7] sm:$0x1] %vm1239, %v2452
      %2485 = vst.msk [vmem:[%s219 + $0xcf] sm:$0x1] %vm1239, %v2453
      %2486 = vst.msk [vmem:[%s219 + $0xe7] sm:$0x1] %vm1239, %v2454
      %2487 = vst.msk [vmem:[%s219 + $0xff] sm:$0x1] %vm1239, %v2455
      %2488 = vst.msk [vmem:[%s219 + $0x117] sm:$0x1] %vm1239, %v2456
      %2489 = vst.msk [vmem:[%s219 + $0x12f] sm:$0x1] %vm1239, %v2457
      %2490 = vst.msk [vmem:[%s219 + $0x147] sm:$0x1] %vm1239, %v2458
      %2491 = vst.msk [vmem:[%s219 + $0x15f] sm:$0x1] %vm1239, %v2459
      %2492 = vst.msk [vmem:[%s219 + $0x177] sm:$0x1] %vm1239, %v2460
      %v2493 = vrot.slane %v1205, 1
      %v2494 = vrot.slane %v1205, 2
      %v2495 = vrot.slane %v1205, 3
      %v2496 = vrot.slane %v1205, 4
      %v2497 = vrot.slane %v1205, 5
      %v2498 = vrot.slane %v1205, 6
      %v2499 = vrot.slane %v1208, 1
      %v2500 = vrot.slane %v1208, 2
      %v2501 = vrot.slane %v1208, 3
      %v2502 = vrot.slane %v1208, 4
      %v2503 = vrot.slane %v1208, 5
      %v2504 = vrot.slane %v1208, 6
      %v2505 = vperm.slane %v1205, 0
      %v2506 = vperm.slane %v2493, 0
      %v2507 = vperm.slane %v2494, 0
      %v2508 = vperm.slane %v2495, 0
      %v2509 = vperm.slane %v2496, 0
      %v2510 = vperm.slane %v2497, 0
      %v2511 = vperm.slane %v2498, 0
      %v2512 = vperm.slane %v2316, 0
      %v2513 = vperm.slane %v1208, 0
      %v2514 = vperm.slane %v2499, 0
      %v2515 = vperm.slane %v2500, 0
      %v2516 = vperm.slane %v2501, 0
      %v2517 = vperm.slane %v2502, 0
      %v2518 = vperm.slane %v2503, 0
      %v2519 = vperm.slane %v2504, 0
      %v2520 = vperm.slane %v2317, 0
      %2521 = vrot.lane.b32.xlu0 %v2505, 112
      %v2522 = vpop.permute.xlu0 %2521
      %2523 = vrot.lane.b32.xlu0 %v2506, 112
      %v2524 = vpop.permute.xlu0 %2523
      %2525 = vrot.lane.b32.xlu0 %v2507, 112
      %v2526 = vpop.permute.xlu0 %2525
      %2527 = vrot.lane.b32.xlu0 %v2508, 112
      %v2528 = vpop.permute.xlu0 %2527
      %2529 = vrot.lane.b32.xlu0 %v2509, 112
      %v2530 = vpop.permute.xlu0 %2529
      %2531 = vrot.lane.b32.xlu0 %v2510, 112
      %v2532 = vpop.permute.xlu0 %2531
      %2533 = vrot.lane.b32.xlu0 %v2511, 112
      %v2534 = vpop.permute.xlu0 %2533
      %2535 = vrot.lane.b32.xlu0 %v2512, 112
      %v2536 = vpop.permute.xlu0 %2535
      %2537 = vrot.lane.b32.xlu0 %v2513, 112
      %v2538 = vpop.permute.xlu0 %2537
      %2539 = vrot.lane.b32.xlu0 %v2514, 112
      %v2540 = vpop.permute.xlu0 %2539
      %2541 = vrot.lane.b32.xlu0 %v2515, 112
      %v2542 = vpop.permute.xlu0 %2541
      %2543 = vrot.lane.b32.xlu0 %v2516, 112
      %v2544 = vpop.permute.xlu0 %2543
      %2545 = vrot.lane.b32.xlu0 %v2517, 112
      %v2546 = vpop.permute.xlu0 %2545
      %2547 = vrot.lane.b32.xlu0 %v2518, 112
      %v2548 = vpop.permute.xlu0 %2547
      %2549 = vrot.lane.b32.xlu0 %v2519, 112
      %v2550 = vpop.permute.xlu0 %2549
      %2551 = vrot.lane.b32.xlu0 %v2520, 112
      %v2552 = vpop.permute.xlu0 %2551
      %2569 = vst.msk [vmem:[%s219 + $0x10] sm:$0x1] %vm1239, %v2522
      %2570 = vst.msk [vmem:[%s219 + $0x28] sm:$0x1] %vm1239, %v2524
      %2571 = vst.msk [vmem:[%s219 + $0x40] sm:$0x1] %vm1239, %v2526
      %2572 = vst.msk [vmem:[%s219 + $0x58] sm:$0x1] %vm1239, %v2528
      %2573 = vst.msk [vmem:[%s219 + $0x70] sm:$0x1] %vm1239, %v2530
      %2574 = vst.msk [vmem:[%s219 + $0x88] sm:$0x1] %vm1239, %v2532
      %2575 = vst.msk [vmem:[%s219 + $0xa0] sm:$0x1] %vm1239, %v2534
      %2576 = vst.msk [vmem:[%s219 + $0xb8] sm:$0x1] %vm1239, %v2536
      %2577 = vst.msk [vmem:[%s219 + $0xd0] sm:$0x1] %vm1239, %v2538
      %2578 = vst.msk [vmem:[%s219 + $0xe8] sm:$0x1] %vm1239, %v2540
      %2579 = vst.msk [vmem:[%s219 + $0x100] sm:$0x1] %vm1239, %v2542
      %2580 = vst.msk [vmem:[%s219 + $0x118] sm:$0x1] %vm1239, %v2544
      %2581 = vst.msk [vmem:[%s219 + $0x130] sm:$0x1] %vm1239, %v2546
      %2582 = vst.msk [vmem:[%s219 + $0x148] sm:$0x1] %vm1239, %v2548
      %2583 = vst.msk [vmem:[%s219 + $0x160] sm:$0x1] %vm1239, %v2550
      %2584 = vst.msk [vmem:[%s219 + $0x178] sm:$0x1] %vm1239, %v2552
      %s2585 = smul.u32 3, %s20
      %p2586 = scmp.lt.s32.totalorder %s19, 1
      %s2587 = scalar_select %p2586, %s19, 1
      %p2588 = scmp.lt.s32.totalorder %s2585, 2
      %s2589 = scalar_select %p2588, %s2585, 2
      %s2590 = smul.addr %s2587, 48
      %s2591 = sadd.s32 %s2589, %s2590
      %s2592 = smul.addr %s2591, 8
      %s2593 = scalar_lea.vmem %s4, %s2592
      // Predicated region
      $region37: #{tpu_custom_call.1} parent=35 // pred_check
        %p2594 = pneg %p136
      $region38: #{tpu_custom_call.1} parent=35 // pred_check_branch
        %2596 = sbr.rel (%p2594) target = $region40
      $region39: #{tpu_custom_call.1} parent=35 // pred_region
        %s2597 = smul.u32 3, %s20
      $region40: #{tpu_custom_call.1} parent=35 // pred_fallthru
        _
    $region36: #{tpu_custom_call.1} parent=5 // pred_fallthru
      _
    %p2598 = scmp.le.s32.totalorder 2, %s10
    // Predicated region
    $region41: #{tpu_custom_call.1} parent=5 // pred_check
      %p2599 = pneg %p2598
    $region42: #{tpu_custom_call.1} parent=5 // pred_check_branch
      %2601 = sbr.rel (%p2599) target = $region44
    $region43: #{tpu_custom_call.1} parent=5 // pred_region
      %s2602 = ssub.s32 %s10, 2
      // Predicated region
      $region45: #{tpu_custom_call.1} parent=43 // pred_check
        %p2603 = pneg %p142
      $region46: #{tpu_custom_call.1} parent=43 // pred_check_branch
        %2605 = sbr.rel (%p2603) target = $region48
      $region47: #{tpu_custom_call.1} parent=43 // pred_region
        %s2606 = smul.u32 3, %s22
        %p2607 = scmp.lt.s32.totalorder %s21, 1
        %s2608 = scalar_select %p2607, %s21, 1
        %p2609 = scmp.lt.s32.totalorder %s2606, 2
        %s2610 = scalar_select %p2609, %s2606, 2
        %s2611 = smul.addr %s2608, 48
        %s2612 = sadd.s32 %s2610, %s2611
        %s2613 = smul.addr %s2612, 8
        %s2614 = scalar_lea.vmem %s4, %s2613
      $region48: #{tpu_custom_call.1} parent=43 // pred_fallthru
        _
    $region44: #{tpu_custom_call.1} parent=5 // pred_fallthru
      _
  $region6: #{tpu_custom_call.1} parent=0 // loop_footer
    %s14 = sadd.s32 1, %s10
  $region7: #{tpu_custom_call.1} parent=0 // loop_footer_branch
    %9 = sbr.rel target = $region3
  $region8: #{tpu_custom_call.1} parent=0 // loop_exit
    _

</llo_original>
